<compile_context>
chip_gen: v7x
topology: tpu7x:2x2x1
jax: 0.10.0
libtpu: 0.0.40
codegen_flags: <defaults>
</compile_context>

<pallas_src>
import math
import functools
import jax
import jax.numpy as jnp
from jax import lax
from jax.experimental import pallas as pl
from jax.experimental.pallas import tpu as pltpu

DTYPE = jnp.bfloat16          # MXU-friendly activation/weight dtype
LN_EPS = 1e-5


# ----------------------------- in-kernel helpers ----------------------------

def _layernorm_f32(z, g, b):
    # z: [M, D] f32, g/b: [1, D] f32
    mu = jnp.mean(z, axis=-1, keepdims=True)
    var = jnp.mean((z - mu) ** 2, axis=-1, keepdims=True)
    return (z - mu) * lax.rsqrt(var + LN_EPS) * g + b


# ----------------------------- Pallas kernels -------------------------------

def _linear_kernel(x_ref, w_ref, b_ref, o_ref):
    # plain x @ w + b (bf16 in, f32 accumulate, bf16 out)
    z = jnp.dot(x_ref[...], w_ref[...], preferred_element_type=jnp.float32)
    o_ref[...] = (z + b_ref[...]).astype(o_ref.dtype)


def _qkv_split_kernel(x_ref, w_ref, b_ref, q_ref, kv_ref, *, d_model):
    # fused Q|K|V projection (one matmul against [D, 3D]), split outputs so the
    # attention kernel can consume Q and KV slabs directly (no HBM slicing).
    z = jnp.dot(x_ref[...], w_ref[...], preferred_element_type=jnp.float32)
    z = z + b_ref[...]
    q_ref[...] = z[:, :d_model].astype(q_ref.dtype)
    kv_ref[...] = z[:, d_model:].astype(kv_ref.dtype)


def _ffn_block_kernel(x_ref, w1_ref, b1_ref, w2_ref, b2_ref, g_ref, beta_ref,
                      o_ref):
    # fused: relu(x @ w1 + b1) @ w2 + b2 + residual -> layernorm
    x = x_ref[...]
    h = jnp.dot(x, w1_ref[...], preferred_element_type=jnp.float32) + b1_ref[...]
    h = jnp.maximum(h, 0.0)
    z = jnp.dot(h.astype(x.dtype), w2_ref[...],
                preferred_element_type=jnp.float32) + b2_ref[...]
    z = z + x.astype(jnp.float32)                       # residual in f32
    o_ref[...] = _layernorm_f32(z, g_ref[...], beta_ref[...]).astype(o_ref.dtype)


def _attn_block_kernel(q_ref, kv_ref, qm_ref, km_ref, x_ref, wo_ref, bo_ref,
                       g_ref, beta_ref, o_ref, *, n_head, causal):
    # One batch element per grid step. Fuses: per-head scaled-dot-product
    # attention (softmax stats in f32, EUP reciprocal), head merge folded into
    # the output projection, output bias, residual add and layernorm.
    q = q_ref[0]                      # [Sq, D]  bf16
    kv = kv_ref[0]                    # [Sk, 2D] bf16
    sq, d_model = q.shape
    sk = kv.shape[0]
    dh = d_model // n_head
    scale = 1.0 / math.sqrt(dh)

    # mask: key-side / query-side pad masks (tiny per-batch vectors) combined
    # with an in-kernel causal tril (no [B*H, Sq, Sk] broadcast in HBM).
    allowed = (qm_ref[0] * km_ref[0]) > 0.0             # [Sq,1]*[1,Sk] -> [Sq,Sk]
    if causal:
        row = lax.broadcasted_iota(jnp.int32, (sq, sk), 0)
        col = lax.broadcasted_iota(jnp.int32, (sq, sk), 1)
        allowed = jnp.logical_and(allowed, row >= col)

    wo = wo_ref[...]                  # [D, D] bf16
    acc = jnp.zeros((sq, d_model), jnp.float32)
    nt_dims = (((1,), (1,)), ((), ()))                  # contract last dims (A @ B^T)
    for h in range(n_head):
        qh = q[:, h * dh:(h + 1) * dh]
        kh = kv[:, h * dh:(h + 1) * dh]
        vh = kv[:, d_model + h * dh: d_model + (h + 1) * dh]
        s = lax.dot_general(qh, kh, nt_dims,
                            preferred_element_type=jnp.float32) * scale
        s = jnp.where(allowed, s, -10000.0)             # masked_fill(mask==0, -1e4)
        s = s - jnp.max(s, axis=-1, keepdims=True)
        p = jnp.exp(s)
        p = p * pl.reciprocal(jnp.sum(p, axis=-1, keepdims=True), approx=True)
        oh = jnp.dot(p.astype(q.dtype), vh, preferred_element_type=jnp.float32)
        # head-merge folded into the output projection: sum_h oh @ wo[h*dh:(h+1)*dh]
        acc = acc + jnp.dot(oh.astype(q.dtype), wo[h * dh:(h + 1) * dh, :],
                            preferred_element_type=jnp.float32)

    z = acc + bo_ref[...] + x_ref[0].astype(jnp.float32)   # bias + residual
    o_ref[0] = _layernorm_f32(z, g_ref[...], beta_ref[...]).astype(o_ref.dtype)


def _generator_kernel(x_ref, w_ref, b_ref, o_ref):
    # fused linear + log_softmax (full vocab block per row tile; stats in f32).
    z = jnp.dot(x_ref[...], w_ref[...], preferred_element_type=jnp.float32)
    z = z + b_ref[...]
    m = jnp.max(z, axis=-1, keepdims=True)
    lse = jnp.log(jnp.sum(jnp.exp(z - m), axis=-1, keepdims=True)) + m
    o_ref[...] = z - lse


# ----------------------------- Pallas wrappers ------------------------------

def _row_tile(rows, cap=256):
    return rows if rows <= cap else cap


def pallas_linear(x, w, b):
    M, K = x.shape
    N = w.shape[1]
    tm = _row_tile(M)
    return pl.pallas_call(
        _linear_kernel,
        out_shape=jax.ShapeDtypeStruct((M, N), DTYPE),
        grid=(pl.cdiv(M, tm),),
        in_specs=[pl.BlockSpec((tm, K), lambda i: (i, 0)),
                  pl.BlockSpec((K, N), lambda i: (0, 0)),
                  pl.BlockSpec((1, N), lambda i: (0, 0))],
        out_specs=pl.BlockSpec((tm, N), lambda i: (i, 0)),
        compiler_params=pltpu.CompilerParams(dimension_semantics=("parallel",)),
    )(x, w, b.reshape(1, N))


def pallas_qkv_proj(x, wqkv, bqkv, d_model):
    M, K = x.shape
    N = wqkv.shape[1]                  # 3 * d_model
    tm = _row_tile(M)
    return pl.pallas_call(
        functools.partial(_qkv_split_kernel, d_model=d_model),
        out_shape=(jax.ShapeDtypeStruct((M, d_model), DTYPE),
                   jax.ShapeDtypeStruct((M, 2 * d_model), DTYPE)),
        grid=(pl.cdiv(M, tm),),
        in_specs=[pl.BlockSpec((tm, K), lambda i: (i, 0)),
                  pl.BlockSpec((K, N), lambda i: (0, 0)),
                  pl.BlockSpec((1, N), lambda i: (0, 0))],
        out_specs=(pl.BlockSpec((tm, d_model), lambda i: (i, 0)),
                   pl.BlockSpec((tm, 2 * d_model), lambda i: (i, 0))),
        compiler_params=pltpu.CompilerParams(dimension_semantics=("parallel",)),
    )(x, wqkv, bqkv.reshape(1, N))


def pallas_attention_block(q, kv, qmask, kmask, resid, wo, bo, g, beta,
                           n_head, causal):
    B, Sq, D = q.shape
    Sk = kv.shape[1]
    kernel = functools.partial(_attn_block_kernel, n_head=n_head, causal=causal)
    return pl.pallas_call(
        kernel,
        out_shape=jax.ShapeDtypeStruct((B, Sq, D), DTYPE),
        grid=(B,),
        in_specs=[pl.BlockSpec((1, Sq, D), lambda b: (b, 0, 0)),
                  pl.BlockSpec((1, Sk, 2 * D), lambda b: (b, 0, 0)),
                  pl.BlockSpec((1, Sq, 1), lambda b: (b, 0, 0)),
                  pl.BlockSpec((1, 1, Sk), lambda b: (b, 0, 0)),
                  pl.BlockSpec((1, Sq, D), lambda b: (b, 0, 0)),
                  pl.BlockSpec((D, D), lambda b: (0, 0)),
                  pl.BlockSpec((1, D), lambda b: (0, 0)),
                  pl.BlockSpec((1, D), lambda b: (0, 0)),
                  pl.BlockSpec((1, D), lambda b: (0, 0))],
        out_specs=pl.BlockSpec((1, Sq, D), lambda b: (b, 0, 0)),
        compiler_params=pltpu.CompilerParams(dimension_semantics=("parallel",)),
    )(q, kv, qmask, kmask, resid, wo, bo.reshape(1, D),
      g.reshape(1, D), beta.reshape(1, D))


def pallas_ffn_block(x, w1, b1, w2, b2, g, beta):
    M, D = x.shape
    F = w1.shape[1]
    tm = _row_tile(M)
    return pl.pallas_call(
        _ffn_block_kernel,
        out_shape=jax.ShapeDtypeStruct((M, D), DTYPE),
        grid=(pl.cdiv(M, tm),),
        in_specs=[pl.BlockSpec((tm, D), lambda i: (i, 0)),
                  pl.BlockSpec((D, F), lambda i: (0, 0)),
                  pl.BlockSpec((1, F), lambda i: (0, 0)),
                  pl.BlockSpec((F, D), lambda i: (0, 0)),
                  pl.BlockSpec((1, D), lambda i: (0, 0)),
                  pl.BlockSpec((1, D), lambda i: (0, 0)),
                  pl.BlockSpec((1, D), lambda i: (0, 0))],
        out_specs=pl.BlockSpec((tm, D), lambda i: (i, 0)),
        compiler_params=pltpu.CompilerParams(dimension_semantics=("parallel",)),
    )(x, w1, b1.reshape(1, F), w2, b2.reshape(1, D),
      g.reshape(1, D), beta.reshape(1, D))


def pallas_generator(x, w, b):
    # TODO(synk): for large vocab (e.g. 32k) tile the vocab axis and compute the
    # LSE with an online running max/sum across N tiles (required on v7x's
    # 64 MiB VMEM); at this toy vocab a single lane block is correct and small.
    M, D = x.shape
    V = w.shape[1]
    tm = _row_tile(M)
    return pl.pallas_call(
        _generator_kernel,
        out_shape=jax.ShapeDtypeStruct((M, V), jnp.float32),
        grid=(pl.cdiv(M, tm),),
        in_specs=[pl.BlockSpec((tm, D), lambda i: (i, 0)),
                  pl.BlockSpec((D, V), lambda i: (0, 0)),
                  pl.BlockSpec((1, V), lambda i: (0, 0))],
        out_specs=pl.BlockSpec((tm, V), lambda i: (i, 0)),
        compiler_params=pltpu.CompilerParams(dimension_semantics=("parallel",)),
    )(x, w, b.reshape(1, V))


# ----------------------------- parameter setup ------------------------------

def _init_linear(key, din, dout):
    w = jax.random.normal(key, (din, dout), jnp.float32) * (1.0 / math.sqrt(din))
    b = jnp.zeros((dout,), jnp.float32)
    return w.astype(DTYPE), b          # bf16 weights, f32 bias


def _sinusoidal_pe(max_len, d_model):
    pos = jnp.arange(max_len, dtype=jnp.float32)[:, None]
    i = jnp.arange(0, d_model, 2, dtype=jnp.float32)
    div = jnp.exp(-jnp.log(10000.0) * i / d_model)
    pe = jnp.zeros((max_len, d_model), jnp.float32)
    pe = pe.at[:, 0::2].set(jnp.sin(pos * div))
    pe = pe.at[:, 1::2].set(jnp.cos(pos * div))
    return pe


def init_params(key, cfg):
    D, F = cfg["d_model"], cfg["d_ff"]
    keys = iter(jax.random.split(key, 256))

    def attn_block():
        wq, bq = _init_linear(next(keys), D, D)
        wk, bk = _init_linear(next(keys), D, D)
        wv, bv = _init_linear(next(keys), D, D)
        wo, bo = _init_linear(next(keys), D, D)
        return dict(
            wq=wq, bq=bq,
            wqkv=jnp.concatenate([wq, wk, wv], axis=1),     # [D, 3D] fused QKV
            bqkv=jnp.concatenate([bq, bk, bv]),
            wkv=jnp.concatenate([wk, wv], axis=1),          # [D, 2D] fused KV (cross)
            bkv=jnp.concatenate([bk, bv]),
            wo=wo, bo=bo)

    def ln_block():
        return dict(g=jnp.ones((D,), jnp.float32), b=jnp.zeros((D,), jnp.float32))

    def ffn_block():
        w1, b1 = _init_linear(next(keys), D, F)
        w2, b2 = _init_linear(next(keys), F, D)
        return dict(w1=w1, b1=b1, w2=w2, b2=b2)

    enc_layers = [dict(attn=attn_block(), ln1=ln_block(),
                       ffn=ffn_block(), ln2=ln_block())
                  for _ in range(cfg["n_layers"])]
    dec_layers = [dict(self_attn=attn_block(), ln1=ln_block(),
                       cross_attn=attn_block(), ln2=ln_block(),
                       ffn=ffn_block(), ln3=ln_block())
                  for _ in range(cfg["n_layers"])]

    enc_emb = (jax.random.normal(next(keys), (cfg["enc_voc_size"], D), jnp.float32)
               * 0.02).astype(DTYPE)
    dec_emb = (jax.random.normal(next(keys), (cfg["dec_voc_size"], D), jnp.float32)
               * 0.02).astype(DTYPE)
    gen_w, gen_b = _init_linear(next(keys), D, cfg["dec_voc_size"])

    return dict(enc_emb=enc_emb, dec_emb=dec_emb,
                pos_enc=_sinusoidal_pe(cfg["max_len"], D),
                enc_layers=enc_layers, dec_layers=dec_layers,
                gen_w=gen_w, gen_b=gen_b)


# ----------------------------- model forward --------------------------------

def transformer_forward(params, src, tgt, cfg):
    B, Ss = src.shape
    _, St = tgt.shape
    D = cfg["d_model"]
    H = cfg["n_head"]

    # pad masks kept tiny (per-batch vectors); causal tril is built in-kernel.
    src_kmask = (src != cfg["src_pad_idx"]).astype(jnp.float32)[:, None, :]   # [B,1,Ss]
    tgt_qmask = (tgt != cfg["tgt_pad_idx"]).astype(jnp.float32)[:, :, None]   # [B,St,1]
    ones_q_s = jnp.ones((B, Ss, 1), jnp.float32)
    ones_q_t = jnp.ones((B, St, 1), jnp.float32)
    ones_k_t = jnp.ones((B, 1, St), jnp.float32)

    # TODO(synk): embedding gather + positional add kept in plain JAX.
    def embed(ids, table):
        S = ids.shape[1]
        return (table[ids].astype(jnp.float32)
                + params["pos_enc"][:S][None, :, :]).astype(DTYPE)

    def self_attn_block(x, qmask, kmask, causal, ap, lnp):
        B_, S, _ = x.shape
        q, kv = pallas_qkv_proj(x.reshape(B_ * S, D), ap["wqkv"], ap["bqkv"], D)
        return pallas_attention_block(
            q.reshape(B_, S, D), kv.reshape(B_, S, 2 * D),
            qmask, kmask, x, ap["wo"], ap["bo"], lnp["g"], lnp["b"],
            n_head=H, causal=causal)

    def cross_attn_block(y, enc, qmask, kmask, ap, lnp):
        B_, Sq, _ = y.shape
        Sk = enc.shape[1]
        q = pallas_linear(y.reshape(B_ * Sq, D), ap["wq"], ap["bq"])
        kv = pallas_linear(enc.reshape(B_ * Sk, D), ap["wkv"], ap["bkv"])
        return pallas_attention_block(
            q.reshape(B_, Sq, D), kv.reshape(B_, Sk, 2 * D),
            qmask, kmask, y, ap["wo"], ap["bo"], lnp["g"], lnp["b"],
            n_head=H, causal=False)

    def ffn_block(x, fp, lnp):
        B_, S, _ = x.shape
        return pallas_ffn_block(x.reshape(B_ * S, D), fp["w1"], fp["b1"],
                                fp["w2"], fp["b2"],
                                lnp["g"], lnp["b"]).reshape(B_, S, D)

    # TODO(synk): dropout is treated as identity (eval-mode forward).

    # ---- Encoder ----
    x = embed(src, params["enc_emb"])
    for lp in params["enc_layers"]:
        x = self_attn_block(x, ones_q_s, src_kmask, False, lp["attn"], lp["ln1"])
        x = ffn_block(x, lp["ffn"], lp["ln2"])
    enc_out = x

    # ---- Decoder ----
    y = embed(tgt, params["dec_emb"])
    for lp in params["dec_layers"]:
        y = self_attn_block(y, tgt_qmask, ones_k_t, True, lp["self_attn"], lp["ln1"])
        y = cross_attn_block(y, enc_out, ones_q_t, src_kmask,
                             lp["cross_attn"], lp["ln2"])
        y = ffn_block(y, lp["ffn"], lp["ln3"])

    # ---- Generator: fused linear + log_softmax ----
    logp = pallas_generator(y.reshape(B * St, D), params["gen_w"], params["gen_b"])
    return logp.reshape(B, St, cfg["dec_voc_size"])


# ---------------------------------- main -------------------------------------

if __name__ == "__main__":
    cfg = dict(src_pad_idx=0, tgt_pad_idx=0, tgt_bos_idx=1,
               enc_voc_size=16, dec_voc_size=16, d_model=32, n_head=4,
               max_len=32, d_ff=64, n_layers=2, dropout=0.0)

    root = jax.random.PRNGKey(0)
    kp, ks, kt = jax.random.split(root, 3)
    params = init_params(kp, cfg)

    B, S = 2, 8
    src = jax.random.randint(ks, (B, S), 1, cfg["enc_voc_size"], dtype=jnp.int32)
    tgt = jax.random.randint(kt, (B, S), 1, cfg["dec_voc_size"], dtype=jnp.int32)
    # include some padding tokens so the masks actually do something
    src = src.at[:, -2:].set(cfg["src_pad_idx"])
    tgt = tgt.at[:, -1:].set(cfg["tgt_pad_idx"])

    fwd = jax.jit(lambda p, s, t: transformer_forward(p, s, t, cfg))
    out = fwd(params, src, tgt)
    out = jax.block_until_ready(out)

    assert out.shape == (B, S, cfg["dec_voc_size"]), out.shape
    assert bool(jnp.all(jnp.isfinite(out)))
    # rows of log_softmax must (approximately) sum to 1 in prob space
    assert bool(jnp.allclose(jnp.sum(jnp.exp(out), axis=-1), 1.0, atol=1e-4))
    print("KERNEL_OK")
</pallas_src>

<mosaic_0001>
module attributes {stable_mosaic.version = 11 : i64} {
  func.func @_linear_kernel(%arg0: i32, %arg1: memref<16x32xbf16, #tpu.memory_space<vmem>>, %arg2: memref<32x64xbf16, #tpu.memory_space<vmem>>, %arg3: memref<1x64xf32, #tpu.memory_space<vmem>>, %arg4: memref<16x64xbf16, #tpu.memory_space<vmem>>) attributes {dimension_semantics = [#tpu.dimension_semantics<parallel>], iteration_bounds = array<i64: 1>, scalar_prefetch = 0 : i64, scratch_operands = 0 : i64, tpu.core_type = #tpu.core_type<tc>, window_params = [{transform_indices = @transform_0, window_bounds = array<i64: 16, 32>}, {pipeline_mode = #tpu.pipeline_mode<synchronous>, transform_indices = @transform_1, window_bounds = array<i64: 32, 64>}, {pipeline_mode = #tpu.pipeline_mode<synchronous>, transform_indices = @transform_2, window_bounds = array<i64: 1, 64>}, {transform_indices = @transform_3, window_bounds = array<i64: 16, 64>}]} {
    %c0 = arith.constant 0 : index
    %c0_0 = arith.constant 0 : index
    %0 = vector.load %arg1[%c0, %c0_0] : memref<16x32xbf16, #tpu.memory_space<vmem>>, vector<16x32xbf16>
    %c0_1 = arith.constant 0 : index
    %c0_2 = arith.constant 0 : index
    %1 = vector.load %arg2[%c0_1, %c0_2] : memref<32x64xbf16, #tpu.memory_space<vmem>>, vector<32x64xbf16>
    %cst = arith.constant dense<0.000000e+00> : vector<16x64xf32>
    %2 = tpu.matmul %0, %1, %cst {dimension_numbers = #tpu.dot_dimension_numbers<[1], [0], [0], [1], [0, 0, 1, 1], [], []>} : vector<16x32xbf16>, vector<32x64xbf16>, vector<16x64xf32> -> vector<16x64xf32>
    %c0_3 = arith.constant 0 : index
    %c0_4 = arith.constant 0 : index
    %3 = vector.load %arg3[%c0_3, %c0_4] : memref<1x64xf32, #tpu.memory_space<vmem>>, vector<1x64xf32>
    %4 = vector.broadcast %3 : vector<1x64xf32> to vector<16x64xf32>
    %5 = arith.addf %2, %4 : vector<16x64xf32>
    %6 = arith.truncf %5 : vector<16x64xf32> to vector<16x64xbf16>
    %c0_5 = arith.constant 0 : index
    %c0_6 = arith.constant 0 : index
    %7 = vector.load %arg4[%c0_5, %c0_6] : memref<16x64xbf16, #tpu.memory_space<vmem>>, vector<16x64xbf16>
    tpu.vector_store %arg4[%c0_5, %c0_6], %6 {strides = array<i32>} : memref<16x64xbf16, #tpu.memory_space<vmem>>, vector<16x64xbf16>,
    return
  }
  func.func @transform_0(%arg0: i32) -> (i32, i32) {
    %c0_i32 = arith.constant 0 : i32
    %c0_i32_0 = arith.constant 0 : i32
    return %arg0, %c0_i32 : i32, i32
  }
  func.func @transform_1(%arg0: i32) -> (i32, i32) {
    %c0_i32 = arith.constant 0 : i32
    %c0_i32_0 = arith.constant 0 : i32
    %c0_i32_1 = arith.constant 0 : i32
    return %c0_i32, %c0_i32_0 : i32, i32
  }
  func.func @transform_2(%arg0: i32) -> (i32, i32) {
    %c0_i32 = arith.constant 0 : i32
    %c0_i32_0 = arith.constant 0 : i32
    %c0_i32_1 = arith.constant 0 : i32
    return %c0_i32, %c0_i32_0 : i32, i32
  }
  func.func @transform_3(%arg0: i32) -> (i32, i32) {
    %c0_i32 = arith.constant 0 : i32
    %c0_i32_0 = arith.constant 0 : i32
    return %arg0, %c0_i32 : i32, i32
  }
}

module attributes {stable_mosaic.version = 11 : i64} {
  func.func @_qkv_split_kernel(%arg0: i32, %arg1: memref<16x32xbf16, #tpu.memory_space<vmem>>, %arg2: memref<32x96xbf16, #tpu.memory_space<vmem>>, %arg3: memref<1x96xf32, #tpu.memory_space<vmem>>, %arg4: memref<16x32xbf16, #tpu.memory_space<vmem>>, %arg5: memref<16x64xbf16, #tpu.memory_space<vmem>>) attributes {dimension_semantics = [#tpu.dimension_semantics<parallel>], iteration_bounds = array<i64: 1>, scalar_prefetch = 0 : i64, scratch_operands = 0 : i64, tpu.core_type = #tpu.core_type<tc>, window_params = [{transform_indices = @transform_0, window_bounds = array<i64: 16, 32>}, {pipeline_mode = #tpu.pipeline_mode<synchronous>, transform_indices = @transform_1, window_bounds = array<i64: 32, 96>}, {pipeline_mode = #tpu.pipeline_mode<synchronous>, transform_indices = @transform_2, window_bounds = array<i64: 1, 96>}, {transform_indices = @transform_3, window_bounds = array<i64: 16, 32>}, {transform_indices = @transform_4, window_bounds = array<i64: 16, 64>}]} {
    %c0 = arith.constant 0 : index
    %c0_0 = arith.constant 0 : index
    %0 = vector.load %arg1[%c0, %c0_0] : memref<16x32xbf16, #tpu.memory_space<vmem>>, vector<16x32xbf16>
    %c0_1 = arith.constant 0 : index
    %c0_2 = arith.constant 0 : index
    %1 = vector.load %arg2[%c0_1, %c0_2] : memref<32x96xbf16, #tpu.memory_space<vmem>>, vector<32x96xbf16>
    %cst = arith.constant dense<0.000000e+00> : vector<16x96xf32>
    %2 = tpu.matmul %0, %1, %cst {dimension_numbers = #tpu.dot_dimension_numbers<[1], [0], [0], [1], [0, 0, 1, 1], [], []>} : vector<16x32xbf16>, vector<32x96xbf16>, vector<16x96xf32> -> vector<16x96xf32>
    %c0_3 = arith.constant 0 : index
    %c0_4 = arith.constant 0 : index
    %3 = vector.load %arg3[%c0_3, %c0_4] : memref<1x96xf32, #tpu.memory_space<vmem>>, vector<1x96xf32>
    %4 = vector.broadcast %3 : vector<1x96xf32> to vector<16x96xf32>
    %5 = arith.addf %2, %4 : vector<16x96xf32>
    %6 = vector.extract_strided_slice %5 {offsets = [0, 0], sizes = [16, 32], strides = [1, 1]} : vector<16x96xf32> to vector<16x32xf32>
    %7 = arith.truncf %6 : vector<16x32xf32> to vector<16x32xbf16>
    %c0_5 = arith.constant 0 : index
    %c0_6 = arith.constant 0 : index
    %8 = vector.load %arg4[%c0_5, %c0_6] : memref<16x32xbf16, #tpu.memory_space<vmem>>, vector<16x32xbf16>
    tpu.vector_store %arg4[%c0_5, %c0_6], %7 {strides = array<i32>} : memref<16x32xbf16, #tpu.memory_space<vmem>>, vector<16x32xbf16>,
    %9 = vector.extract_strided_slice %5 {offsets = [0, 32], sizes = [16, 64], strides = [1, 1]} : vector<16x96xf32> to vector<16x64xf32>
    %10 = arith.truncf %9 : vector<16x64xf32> to vector<16x64xbf16>
    %c0_7 = arith.constant 0 : index
    %c0_8 = arith.constant 0 : index
    %11 = vector.load %arg5[%c0_7, %c0_8] : memref<16x64xbf16, #tpu.memory_space<vmem>>, vector<16x64xbf16>
    tpu.vector_store %arg5[%c0_7, %c0_8], %10 {strides = array<i32>} : memref<16x64xbf16, #tpu.memory_space<vmem>>, vector<16x64xbf16>,
    return
  }
  func.func @transform_0(%arg0: i32) -> (i32, i32) {
    %c0_i32 = arith.constant 0 : i32
    %c0_i32_0 = arith.constant 0 : i32
    return %arg0, %c0_i32 : i32, i32
  }
  func.func @transform_1(%arg0: i32) -> (i32, i32) {
    %c0_i32 = arith.constant 0 : i32
    %c0_i32_0 = arith.constant 0 : i32
    %c0_i32_1 = arith.constant 0 : i32
    return %c0_i32, %c0_i32_0 : i32, i32
  }
  func.func @transform_2(%arg0: i32) -> (i32, i32) {
    %c0_i32 = arith.constant 0 : i32
    %c0_i32_0 = arith.constant 0 : i32
    %c0_i32_1 = arith.constant 0 : i32
    return %c0_i32, %c0_i32_0 : i32, i32
  }
  func.func @transform_3(%arg0: i32) -> (i32, i32) {
    %c0_i32 = arith.constant 0 : i32
    %c0_i32_0 = arith.constant 0 : i32
    return %arg0, %c0_i32 : i32, i32
  }
  func.func @transform_4(%arg0: i32) -> (i32, i32) {
    %c0_i32 = arith.constant 0 : i32
    %c0_i32_0 = arith.constant 0 : i32
    return %arg0, %c0_i32 : i32, i32
  }
}

module attributes {stable_mosaic.version = 11 : i64} {
  func.func @_attn_block_kernel(%arg0: i32, %arg1: memref<1x8x32xbf16, #tpu.memory_space<vmem>>, %arg2: memref<1x8x64xbf16, #tpu.memory_space<vmem>>, %arg3: memref<1x8x1xf32, #tpu.memory_space<vmem>>, %arg4: memref<1x1x8xf32, #tpu.memory_space<vmem>>, %arg5: memref<1x8x32xbf16, #tpu.memory_space<vmem>>, %arg6: memref<32x32xbf16, #tpu.memory_space<vmem>>, %arg7: memref<1x32xf32, #tpu.memory_space<vmem>>, %arg8: memref<1x32xf32, #tpu.memory_space<vmem>>, %arg9: memref<1x32xf32, #tpu.memory_space<vmem>>, %arg10: memref<1x8x32xbf16, #tpu.memory_space<vmem>>) attributes {dimension_semantics = [#tpu.dimension_semantics<parallel>], iteration_bounds = array<i64: 2>, scalar_prefetch = 0 : i64, scratch_operands = 0 : i64, tpu.core_type = #tpu.core_type<tc>, window_params = [{transform_indices = @transform_0, window_bounds = array<i64: 1, 8, 32>}, {transform_indices = @transform_1, window_bounds = array<i64: 1, 8, 64>}, {transform_indices = @transform_2, window_bounds = array<i64: 1, 8, 1>}, {transform_indices = @transform_3, window_bounds = array<i64: 1, 1, 8>}, {transform_indices = @transform_4, window_bounds = array<i64: 1, 8, 32>}, {pipeline_mode = #tpu.pipeline_mode<synchronous>, transform_indices = @transform_5, window_bounds = array<i64: 32, 32>}, {pipeline_mode = #tpu.pipeline_mode<synchronous>, transform_indices = @transform_6, window_bounds = array<i64: 1, 32>}, {pipeline_mode = #tpu.pipeline_mode<synchronous>, transform_indices = @transform_7, window_bounds = array<i64: 1, 32>}, {pipeline_mode = #tpu.pipeline_mode<synchronous>, transform_indices = @transform_8, window_bounds = array<i64: 1, 32>}, {transform_indices = @transform_9, window_bounds = array<i64: 1, 8, 32>}]} {
    %c0 = arith.constant 0 : index
    %c0_0 = arith.constant 0 : index
    %c0_1 = arith.constant 0 : index
    %0 = vector.load %arg1[%c0, %c0_0, %c0_1] : memref<1x8x32xbf16, #tpu.memory_space<vmem>>, vector<1x8x32xbf16>
    %1 = vector.shape_cast %0 : vector<1x8x32xbf16> to vector<8x32xbf16>
    %c0_2 = arith.constant 0 : index
    %c0_3 = arith.constant 0 : index
    %c0_4 = arith.constant 0 : index
    %2 = vector.load %arg2[%c0_2, %c0_3, %c0_4] : memref<1x8x64xbf16, #tpu.memory_space<vmem>>, vector<1x8x64xbf16>
    %3 = vector.shape_cast %2 : vector<1x8x64xbf16> to vector<8x64xbf16>
    %c0_5 = arith.constant 0 : index
    %c0_6 = arith.constant 0 : index
    %c0_7 = arith.constant 0 : index
    %4 = vector.load %arg3[%c0_5, %c0_6, %c0_7] : memref<1x8x1xf32, #tpu.memory_space<vmem>>, vector<1x8x1xf32>
    %5 = vector.shape_cast %4 : vector<1x8x1xf32> to vector<8x1xf32>
    %c0_8 = arith.constant 0 : index
    %c0_9 = arith.constant 0 : index
    %c0_10 = arith.constant 0 : index
    %6 = vector.load %arg4[%c0_8, %c0_9, %c0_10] : memref<1x1x8xf32, #tpu.memory_space<vmem>>, vector<1x1x8xf32>
    %7 = vector.shape_cast %6 : vector<1x1x8xf32> to vector<1x8xf32>
    %8 = vector.broadcast %5 : vector<8x1xf32> to vector<8x8xf32>
    %9 = vector.broadcast %7 : vector<1x8xf32> to vector<8x8xf32>
    %10 = arith.mulf %8, %9 : vector<8x8xf32>
    %cst = arith.constant 0.000000e+00 : f32
    %11 = vector.broadcast %cst : f32 to vector<8x8xf32>
    %12 = arith.cmpf ogt, %10, %11 : vector<8x8xf32>
    %c0_11 = arith.constant 0 : index
    %c0_12 = arith.constant 0 : index
    %13 = vector.load %arg6[%c0_11, %c0_12] : memref<32x32xbf16, #tpu.memory_space<vmem>>, vector<32x32xbf16>
    %cst_13 = arith.constant 0.000000e+00 : f32
    %14 = vector.broadcast %cst_13 : f32 to vector<8x32xf32>
    %15 = vector.extract_strided_slice %1 {offsets = [0, 0], sizes = [8, 8], strides = [1, 1]} : vector<8x32xbf16> to vector<8x8xbf16>
    %16 = vector.extract_strided_slice %3 {offsets = [0, 0], sizes = [8, 8], strides = [1, 1]} : vector<8x64xbf16> to vector<8x8xbf16>
    %17 = vector.extract_strided_slice %3 {offsets = [0, 32], sizes = [8, 8], strides = [1, 1]} : vector<8x64xbf16> to vector<8x8xbf16>
    %cst_14 = arith.constant dense<0.000000e+00> : vector<8x8xf32>
    %18 = tpu.matmul %15, %16, %cst_14 {dimension_numbers = #tpu.dot_dimension_numbers<[1], [1], [0], [0], [0, 0, 1, 0], [], []>} : vector<8x8xbf16>, vector<8x8xbf16>, vector<8x8xf32> -> vector<8x8xf32>
    %cst_15 = arith.constant 0.353553385 : f32
    %19 = vector.broadcast %cst_15 : f32 to vector<8x8xf32>
    %20 = arith.mulf %18, %19 : vector<8x8xf32>
    %cst_16 = arith.constant -1.000000e+04 : f32
    %21 = vector.broadcast %cst_16 : f32 to vector<8x8xf32>
    %22 = arith.select %12, %20, %21 : vector<8x8xi1>, vector<8x8xf32>
    %cst_17 = arith.constant dense<0xFF800000> : vector<8xf32>
    %23 = vector.multi_reduction <maximumf>, %22, %cst_17 [1] : vector<8x8xf32> to vector<8xf32>
    %24 = vector.shape_cast %23 : vector<8xf32> to vector<8x1xf32>
    %25 = vector.broadcast %24 : vector<8x1xf32> to vector<8x8xf32>
    %26 = arith.subf %22, %25 : vector<8x8xf32>
    %27 = math.exp %26 : vector<8x8xf32>
    %cst_18 = arith.constant dense<0.000000e+00> : vector<8xf32>
    %28 = vector.multi_reduction <add>, %27, %cst_18 [1] : vector<8x8xf32> to vector<8xf32>
    %29 = vector.shape_cast %28 : vector<8xf32> to vector<8x1xf32>
    %30 = tpu.reciprocal %29 {approx = true} : vector<8x1xf32> -> vector<8x1xf32>
    %31 = vector.broadcast %30 : vector<8x1xf32> to vector<8x8xf32>
    %32 = arith.mulf %27, %31 : vector<8x8xf32>
    %33 = arith.truncf %32 : vector<8x8xf32> to vector<8x8xbf16>
    %cst_19 = arith.constant dense<0.000000e+00> : vector<8x8xf32>
    %34 = tpu.matmul %33, %17, %cst_19 {dimension_numbers = #tpu.dot_dimension_numbers<[1], [0], [0], [1], [0, 0, 1, 1], [], []>} : vector<8x8xbf16>, vector<8x8xbf16>, vector<8x8xf32> -> vector<8x8xf32>
    %35 = arith.truncf %34 : vector<8x8xf32> to vector<8x8xbf16>
    %36 = vector.extract_strided_slice %13 {offsets = [0, 0], sizes = [8, 32], strides = [1, 1]} : vector<32x32xbf16> to vector<8x32xbf16>
    %cst_20 = arith.constant dense<0.000000e+00> : vector<8x32xf32>
    %37 = tpu.matmul %35, %36, %cst_20 {dimension_numbers = #tpu.dot_dimension_numbers<[1], [0], [0], [1], [0, 0, 1, 1], [], []>} : vector<8x8xbf16>, vector<8x32xbf16>, vector<8x32xf32> -> vector<8x32xf32>
    %38 = arith.addf %14, %37 : vector<8x32xf32>
    %39 = vector.extract_strided_slice %1 {offsets = [0, 8], sizes = [8, 8], strides = [1, 1]} : vector<8x32xbf16> to vector<8x8xbf16>
    %40 = vector.extract_strided_slice %3 {offsets = [0, 8], sizes = [8, 8], strides = [1, 1]} : vector<8x64xbf16> to vector<8x8xbf16>
    %41 = vector.extract_strided_slice %3 {offsets = [0, 40], sizes = [8, 8], strides = [1, 1]} : vector<8x64xbf16> to vector<8x8xbf16>
    %cst_21 = arith.constant dense<0.000000e+00> : vector<8x8xf32>
    %42 = tpu.matmul %39, %40, %cst_21 {dimension_numbers = #tpu.dot_dimension_numbers<[1], [1], [0], [0], [0, 0, 1, 0], [], []>} : vector<8x8xbf16>, vector<8x8xbf16>, vector<8x8xf32> -> vector<8x8xf32>
    %cst_22 = arith.constant 0.353553385 : f32
    %43 = vector.broadcast %cst_22 : f32 to vector<8x8xf32>
    %44 = arith.mulf %42, %43 : vector<8x8xf32>
    %cst_23 = arith.constant -1.000000e+04 : f32
    %45 = vector.broadcast %cst_23 : f32 to vector<8x8xf32>
    %46 = arith.select %12, %44, %45 : vector<8x8xi1>, vector<8x8xf32>
    %cst_24 = arith.constant dense<0xFF800000> : vector<8xf32>
    %47 = vector.multi_reduction <maximumf>, %46, %cst_24 [1] : vector<8x8xf32> to vector<8xf32>
    %48 = vector.shape_cast %47 : vector<8xf32> to vector<8x1xf32>
    %49 = vector.broadcast %48 : vector<8x1xf32> to vector<8x8xf32>
    %50 = arith.subf %46, %49 : vector<8x8xf32>
    %51 = math.exp %50 : vector<8x8xf32>
    %cst_25 = arith.constant dense<0.000000e+00> : vector<8xf32>
    %52 = vector.multi_reduction <add>, %51, %cst_25 [1] : vector<8x8xf32> to vector<8xf32>
    %53 = vector.shape_cast %52 : vector<8xf32> to vector<8x1xf32>
    %54 = tpu.reciprocal %53 {approx = true} : vector<8x1xf32> -> vector<8x1xf32>
    %55 = vector.broadcast %54 : vector<8x1xf32> to vector<8x8xf32>
    %56 = arith.mulf %51, %55 : vector<8x8xf32>
    %57 = arith.truncf %56 : vector<8x8xf32> to vector<8x8xbf16>
    %cst_26 = arith.constant dense<0.000000e+00> : vector<8x8xf32>
    %58 = tpu.matmul %57, %41, %cst_26 {dimension_numbers = #tpu.dot_dimension_numbers<[1], [0], [0], [1], [0, 0, 1, 1], [], []>} : vector<8x8xbf16>, vector<8x8xbf16>, vector<8x8xf32> -> vector<8x8xf32>
    %59 = arith.truncf %58 : vector<8x8xf32> to vector<8x8xbf16>
    %60 = vector.extract_strided_slice %13 {offsets = [8, 0], sizes = [8, 32], strides = [1, 1]} : vector<32x32xbf16> to vector<8x32xbf16>
    %cst_27 = arith.constant dense<0.000000e+00> : vector<8x32xf32>
    %61 = tpu.matmul %59, %60, %cst_27 {dimension_numbers = #tpu.dot_dimension_numbers<[1], [0], [0], [1], [0, 0, 1, 1], [], []>} : vector<8x8xbf16>, vector<8x32xbf16>, vector<8x32xf32> -> vector<8x32xf32>
    %62 = arith.addf %38, %61 : vector<8x32xf32>
    %63 = vector.extract_strided_slice %1 {offsets = [0, 16], sizes = [8, 8], strides = [1, 1]} : vector<8x32xbf16> to vector<8x8xbf16>
    %64 = vector.extract_strided_slice %3 {offsets = [0, 16], sizes = [8, 8], strides = [1, 1]} : vector<8x64xbf16> to vector<8x8xbf16>
    %65 = vector.extract_strided_slice %3 {offsets = [0, 48], sizes = [8, 8], strides = [1, 1]} : vector<8x64xbf16> to vector<8x8xbf16>
    %cst_28 = arith.constant dense<0.000000e+00> : vector<8x8xf32>
    %66 = tpu.matmul %63, %64, %cst_28 {dimension_numbers = #tpu.dot_dimension_numbers<[1], [1], [0], [0], [0, 0, 1, 0], [], []>} : vector<8x8xbf16>, vector<8x8xbf16>, vector<8x8xf32> -> vector<8x8xf32>
    %cst_29 = arith.constant 0.353553385 : f32
    %67 = vector.broadcast %cst_29 : f32 to vector<8x8xf32>
    %68 = arith.mulf %66, %67 : vector<8x8xf32>
    %cst_30 = arith.constant -1.000000e+04 : f32
    %69 = vector.broadcast %cst_30 : f32 to vector<8x8xf32>
    %70 = arith.select %12, %68, %69 : vector<8x8xi1>, vector<8x8xf32>
    %cst_31 = arith.constant dense<0xFF800000> : vector<8xf32>
    %71 = vector.multi_reduction <maximumf>, %70, %cst_31 [1] : vector<8x8xf32> to vector<8xf32>
    %72 = vector.shape_cast %71 : vector<8xf32> to vector<8x1xf32>
    %73 = vector.broadcast %72 : vector<8x1xf32> to vector<8x8xf32>
    %74 = arith.subf %70, %73 : vector<8x8xf32>
    %75 = math.exp %74 : vector<8x8xf32>
    %cst_32 = arith.constant dense<0.000000e+00> : vector<8xf32>
    %76 = vector.multi_reduction <add>, %75, %cst_32 [1] : vector<8x8xf32> to vector<8xf32>
    %77 = vector.shape_cast %76 : vector<8xf32> to vector<8x1xf32>
    %78 = tpu.reciprocal %77 {approx = true} : vector<8x1xf32> -> vector<8x1xf32>
    %79 = vector.broadcast %78 : vector<8x1xf32> to vector<8x8xf32>
    %80 = arith.mulf %75, %79 : vector<8x8xf32>
    %81 = arith.truncf %80 : vector<8x8xf32> to vector<8x8xbf16>
    %cst_33 = arith.constant dense<0.000000e+00> : vector<8x8xf32>
    %82 = tpu.matmul %81, %65, %cst_33 {dimension_numbers = #tpu.dot_dimension_numbers<[1], [0], [0], [1], [0, 0, 1, 1], [], []>} : vector<8x8xbf16>, vector<8x8xbf16>, vector<8x8xf32> -> vector<8x8xf32>
    %83 = arith.truncf %82 : vector<8x8xf32> to vector<8x8xbf16>
    %84 = vector.extract_strided_slice %13 {offsets = [16, 0], sizes = [8, 32], strides = [1, 1]} : vector<32x32xbf16> to vector<8x32xbf16>
    %cst_34 = arith.constant dense<0.000000e+00> : vector<8x32xf32>
    %85 = tpu.matmul %83, %84, %cst_34 {dimension_numbers = #tpu.dot_dimension_numbers<[1], [0], [0], [1], [0, 0, 1, 1], [], []>} : vector<8x8xbf16>, vector<8x32xbf16>, vector<8x32xf32> -> vector<8x32xf32>
    %86 = arith.addf %62, %85 : vector<8x32xf32>
    %87 = vector.extract_strided_slice %1 {offsets = [0, 24], sizes = [8, 8], strides = [1, 1]} : vector<8x32xbf16> to vector<8x8xbf16>
    %88 = vector.extract_strided_slice %3 {offsets = [0, 24], sizes = [8, 8], strides = [1, 1]} : vector<8x64xbf16> to vector<8x8xbf16>
    %89 = vector.extract_strided_slice %3 {offsets = [0, 56], sizes = [8, 8], strides = [1, 1]} : vector<8x64xbf16> to vector<8x8xbf16>
    %cst_35 = arith.constant dense<0.000000e+00> : vector<8x8xf32>
    %90 = tpu.matmul %87, %88, %cst_35 {dimension_numbers = #tpu.dot_dimension_numbers<[1], [1], [0], [0], [0, 0, 1, 0], [], []>} : vector<8x8xbf16>, vector<8x8xbf16>, vector<8x8xf32> -> vector<8x8xf32>
    %cst_36 = arith.constant 0.353553385 : f32
    %91 = vector.broadcast %cst_36 : f32 to vector<8x8xf32>
    %92 = arith.mulf %90, %91 : vector<8x8xf32>
    %cst_37 = arith.constant -1.000000e+04 : f32
    %93 = vector.broadcast %cst_37 : f32 to vector<8x8xf32>
    %94 = arith.select %12, %92, %93 : vector<8x8xi1>, vector<8x8xf32>
    %cst_38 = arith.constant dense<0xFF800000> : vector<8xf32>
    %95 = vector.multi_reduction <maximumf>, %94, %cst_38 [1] : vector<8x8xf32> to vector<8xf32>
    %96 = vector.shape_cast %95 : vector<8xf32> to vector<8x1xf32>
    %97 = vector.broadcast %96 : vector<8x1xf32> to vector<8x8xf32>
    %98 = arith.subf %94, %97 : vector<8x8xf32>
    %99 = math.exp %98 : vector<8x8xf32>
    %cst_39 = arith.constant dense<0.000000e+00> : vector<8xf32>
    %100 = vector.multi_reduction <add>, %99, %cst_39 [1] : vector<8x8xf32> to vector<8xf32>
    %101 = vector.shape_cast %100 : vector<8xf32> to vector<8x1xf32>
    %102 = tpu.reciprocal %101 {approx = true} : vector<8x1xf32> -> vector<8x1xf32>
    %103 = vector.broadcast %102 : vector<8x1xf32> to vector<8x8xf32>
    %104 = arith.mulf %99, %103 : vector<8x8xf32>
    %105 = arith.truncf %104 : vector<8x8xf32> to vector<8x8xbf16>
    %cst_40 = arith.constant dense<0.000000e+00> : vector<8x8xf32>
    %106 = tpu.matmul %105, %89, %cst_40 {dimension_numbers = #tpu.dot_dimension_numbers<[1], [0], [0], [1], [0, 0, 1, 1], [], []>} : vector<8x8xbf16>, vector<8x8xbf16>, vector<8x8xf32> -> vector<8x8xf32>
    %107 = arith.truncf %106 : vector<8x8xf32> to vector<8x8xbf16>
    %108 = vector.extract_strided_slice %13 {offsets = [24, 0], sizes = [8, 32], strides = [1, 1]} : vector<32x32xbf16> to vector<8x32xbf16>
    %cst_41 = arith.constant dense<0.000000e+00> : vector<8x32xf32>
    %109 = tpu.matmul %107, %108, %cst_41 {dimension_numbers = #tpu.dot_dimension_numbers<[1], [0], [0], [1], [0, 0, 1, 1], [], []>} : vector<8x8xbf16>, vector<8x32xbf16>, vector<8x32xf32> -> vector<8x32xf32>
    %110 = arith.addf %86, %109 : vector<8x32xf32>
    %c0_42 = arith.constant 0 : index
    %c0_43 = arith.constant 0 : index
    %111 = vector.load %arg7[%c0_42, %c0_43] : memref<1x32xf32, #tpu.memory_space<vmem>>, vector<1x32xf32>
    %112 = vector.broadcast %111 : vector<1x32xf32> to vector<8x32xf32>
    %113 = arith.addf %110, %112 : vector<8x32xf32>
    %c0_44 = arith.constant 0 : index
    %c0_45 = arith.constant 0 : index
    %c0_46 = arith.constant 0 : index
    %114 = vector.load %arg5[%c0_44, %c0_45, %c0_46] : memref<1x8x32xbf16, #tpu.memory_space<vmem>>, vector<1x8x32xbf16>
    %115 = vector.shape_cast %114 : vector<1x8x32xbf16> to vector<8x32xbf16>
    %116 = arith.extf %115 : vector<8x32xbf16> to vector<8x32xf32>
    %117 = arith.addf %113, %116 : vector<8x32xf32>
    %c0_47 = arith.constant 0 : index
    %c0_48 = arith.constant 0 : index
    %118 = vector.load %arg8[%c0_47, %c0_48] : memref<1x32xf32, #tpu.memory_space<vmem>>, vector<1x32xf32>
    %c0_49 = arith.constant 0 : index
    %c0_50 = arith.constant 0 : index
    %119 = vector.load %arg9[%c0_49, %c0_50] : memref<1x32xf32, #tpu.memory_space<vmem>>, vector<1x32xf32>
    %cst_51 = arith.constant dense<0.000000e+00> : vector<8xf32>
    %120 = vector.multi_reduction <add>, %117, %cst_51 [1] : vector<8x32xf32> to vector<8xf32>
    %121 = vector.shape_cast %120 : vector<8xf32> to vector<8x1xf32>
    %cst_52 = arith.constant 3.200000e+01 : f32
    %122 = vector.broadcast %cst_52 : f32 to vector<8x1xf32>
    %123 = arith.divf %121, %122 : vector<8x1xf32>
    %124 = vector.broadcast %123 : vector<8x1xf32> to vector<8x32xf32>
    %125 = arith.subf %117, %124 : vector<8x32xf32>
    %126 = arith.mulf %125, %125 : vector<8x32xf32>
    %cst_53 = arith.constant dense<0.000000e+00> : vector<8xf32>
    %127 = vector.multi_reduction <add>, %126, %cst_53 [1] : vector<8x32xf32> to vector<8xf32>
    %128 = vector.shape_cast %127 : vector<8xf32> to vector<8x1xf32>
    %cst_54 = arith.constant 3.200000e+01 : f32
    %129 = vector.broadcast %cst_54 : f32 to vector<8x1xf32>
    %130 = arith.divf %128, %129 : vector<8x1xf32>
    %131 = vector.broadcast %123 : vector<8x1xf32> to vector<8x32xf32>
    %132 = arith.subf %117, %131 : vector<8x32xf32>
    %cst_55 = arith.constant 9.99999974E-6 : f32
    %133 = vector.broadcast %cst_55 : f32 to vector<8x1xf32>
    %134 = arith.addf %130, %133 : vector<8x1xf32>
    %135 = math.rsqrt %134 : vector<8x1xf32>
    %136 = vector.broadcast %135 : vector<8x1xf32> to vector<8x32xf32>
    %137 = arith.mulf %132, %136 : vector<8x32xf32>
    %138 = vector.broadcast %118 : vector<1x32xf32> to vector<8x32xf32>
    %139 = arith.mulf %137, %138 : vector<8x32xf32>
    %140 = vector.broadcast %119 : vector<1x32xf32> to vector<8x32xf32>
    %141 = arith.addf %139, %140 : vector<8x32xf32>
    %142 = arith.truncf %141 : vector<8x32xf32> to vector<8x32xbf16>
    %c0_56 = arith.constant 0 : index
    %c0_57 = arith.constant 0 : index
    %c0_58 = arith.constant 0 : index
    %143 = vector.load %arg10[%c0_56, %c0_57, %c0_58] : memref<1x8x32xbf16, #tpu.memory_space<vmem>>, vector<1x8x32xbf16>
    %144 = vector.shape_cast %143 : vector<1x8x32xbf16> to vector<8x32xbf16>
    %145 = vector.shape_cast %142 : vector<8x32xbf16> to vector<1x8x32xbf16>
    tpu.vector_store %arg10[%c0_56, %c0_57, %c0_58], %145 {strides = array<i32>} : memref<1x8x32xbf16, #tpu.memory_space<vmem>>, vector<1x8x32xbf16>,
    return
  }
  func.func @transform_0(%arg0: i32) -> (i32, i32, i32) {
    %c0_i32 = arith.constant 0 : i32
    %c0_i32_0 = arith.constant 0 : i32
    %c0_i32_1 = arith.constant 0 : i32
    return %arg0, %c0_i32, %c0_i32_0 : i32, i32, i32
  }
  func.func @transform_1(%arg0: i32) -> (i32, i32, i32) {
    %c0_i32 = arith.constant 0 : i32
    %c0_i32_0 = arith.constant 0 : i32
    %c0_i32_1 = arith.constant 0 : i32
    return %arg0, %c0_i32, %c0_i32_0 : i32, i32, i32
  }
  func.func @transform_2(%arg0: i32) -> (i32, i32, i32) {
    %c0_i32 = arith.constant 0 : i32
    %c0_i32_0 = arith.constant 0 : i32
    %c0_i32_1 = arith.constant 0 : i32
    return %arg0, %c0_i32, %c0_i32_0 : i32, i32, i32
  }
  func.func @transform_3(%arg0: i32) -> (i32, i32, i32) {
    %c0_i32 = arith.constant 0 : i32
    %c0_i32_0 = arith.constant 0 : i32
    %c0_i32_1 = arith.constant 0 : i32
    return %arg0, %c0_i32, %c0_i32_0 : i32, i32, i32
  }
  func.func @transform_4(%arg0: i32) -> (i32, i32, i32) {
    %c0_i32 = arith.constant 0 : i32
    %c0_i32_0 = arith.constant 0 : i32
    %c0_i32_1 = arith.constant 0 : i32
    return %arg0, %c0_i32, %c0_i32_0 : i32, i32, i32
  }
  func.func @transform_5(%arg0: i32) -> (i32, i32) {
    %c0_i32 = arith.constant 0 : i32
    %c0_i32_0 = arith.constant 0 : i32
    %c0_i32_1 = arith.constant 0 : i32
    return %c0_i32, %c0_i32_0 : i32, i32
  }
  func.func @transform_6(%arg0: i32) -> (i32, i32) {
    %c0_i32 = arith.constant 0 : i32
    %c0_i32_0 = arith.constant 0 : i32
    %c0_i32_1 = arith.constant 0 : i32
    return %c0_i32, %c0_i32_0 : i32, i32
  }
  func.func @transform_7(%arg0: i32) -> (i32, i32) {
    %c0_i32 = arith.constant 0 : i32
    %c0_i32_0 = arith.constant 0 : i32
    %c0_i32_1 = arith.constant 0 : i32
    return %c0_i32, %c0_i32_0 : i32, i32
  }
  func.func @transform_8(%arg0: i32) -> (i32, i32) {
    %c0_i32 = arith.constant 0 : i32
    %c0_i32_0 = arith.constant 0 : i32
    %c0_i32_1 = arith.constant 0 : i32
    return %c0_i32, %c0_i32_0 : i32, i32
  }
  func.func @transform_9(%arg0: i32) -> (i32, i32, i32) {
    %c0_i32 = arith.constant 0 : i32
    %c0_i32_0 = arith.constant 0 : i32
    %c0_i32_1 = arith.constant 0 : i32
    return %arg0, %c0_i32, %c0_i32_0 : i32, i32, i32
  }
}

module attributes {stable_mosaic.version = 11 : i64} {
  func.func @_ffn_block_kernel(%arg0: i32, %arg1: memref<16x32xbf16, #tpu.memory_space<vmem>>, %arg2: memref<32x64xbf16, #tpu.memory_space<vmem>>, %arg3: memref<1x64xf32, #tpu.memory_space<vmem>>, %arg4: memref<64x32xbf16, #tpu.memory_space<vmem>>, %arg5: memref<1x32xf32, #tpu.memory_space<vmem>>, %arg6: memref<1x32xf32, #tpu.memory_space<vmem>>, %arg7: memref<1x32xf32, #tpu.memory_space<vmem>>, %arg8: memref<16x32xbf16, #tpu.memory_space<vmem>>) attributes {dimension_semantics = [#tpu.dimension_semantics<parallel>], iteration_bounds = array<i64: 1>, scalar_prefetch = 0 : i64, scratch_operands = 0 : i64, tpu.core_type = #tpu.core_type<tc>, window_params = [{transform_indices = @transform_0, window_bounds = array<i64: 16, 32>}, {pipeline_mode = #tpu.pipeline_mode<synchronous>, transform_indices = @transform_1, window_bounds = array<i64: 32, 64>}, {pipeline_mode = #tpu.pipeline_mode<synchronous>, transform_indices = @transform_2, window_bounds = array<i64: 1, 64>}, {pipeline_mode = #tpu.pipeline_mode<synchronous>, transform_indices = @transform_3, window_bounds = array<i64: 64, 32>}, {pipeline_mode = #tpu.pipeline_mode<synchronous>, transform_indices = @transform_4, window_bounds = array<i64: 1, 32>}, {pipeline_mode = #tpu.pipeline_mode<synchronous>, transform_indices = @transform_5, window_bounds = array<i64: 1, 32>}, {pipeline_mode = #tpu.pipeline_mode<synchronous>, transform_indices = @transform_6, window_bounds = array<i64: 1, 32>}, {transform_indices = @transform_7, window_bounds = array<i64: 16, 32>}]} {
    %c0 = arith.constant 0 : index
    %c0_0 = arith.constant 0 : index
    %0 = vector.load %arg1[%c0, %c0_0] : memref<16x32xbf16, #tpu.memory_space<vmem>>, vector<16x32xbf16>
    %c0_1 = arith.constant 0 : index
    %c0_2 = arith.constant 0 : index
    %1 = vector.load %arg2[%c0_1, %c0_2] : memref<32x64xbf16, #tpu.memory_space<vmem>>, vector<32x64xbf16>
    %cst = arith.constant dense<0.000000e+00> : vector<16x64xf32>
    %2 = tpu.matmul %0, %1, %cst {dimension_numbers = #tpu.dot_dimension_numbers<[1], [0], [0], [1], [0, 0, 1, 1], [], []>} : vector<16x32xbf16>, vector<32x64xbf16>, vector<16x64xf32> -> vector<16x64xf32>
    %c0_3 = arith.constant 0 : index
    %c0_4 = arith.constant 0 : index
    %3 = vector.load %arg3[%c0_3, %c0_4] : memref<1x64xf32, #tpu.memory_space<vmem>>, vector<1x64xf32>
    %4 = vector.broadcast %3 : vector<1x64xf32> to vector<16x64xf32>
    %5 = arith.addf %2, %4 : vector<16x64xf32>
    %cst_5 = arith.constant 0.000000e+00 : f32
    %6 = vector.broadcast %cst_5 : f32 to vector<16x64xf32>
    %7 = arith.maximumf %5, %6 : vector<16x64xf32>
    %8 = arith.truncf %7 : vector<16x64xf32> to vector<16x64xbf16>
    %c0_6 = arith.constant 0 : index
    %c0_7 = arith.constant 0 : index
    %9 = vector.load %arg4[%c0_6, %c0_7] : memref<64x32xbf16, #tpu.memory_space<vmem>>, vector<64x32xbf16>
    %cst_8 = arith.constant dense<0.000000e+00> : vector<16x32xf32>
    %10 = tpu.matmul %8, %9, %cst_8 {dimension_numbers = #tpu.dot_dimension_numbers<[1], [0], [0], [1], [0, 0, 1, 1], [], []>} : vector<16x64xbf16>, vector<64x32xbf16>, vector<16x32xf32> -> vector<16x32xf32>
    %c0_9 = arith.constant 0 : index
    %c0_10 = arith.constant 0 : index
    %11 = vector.load %arg5[%c0_9, %c0_10] : memref<1x32xf32, #tpu.memory_space<vmem>>, vector<1x32xf32>
    %12 = vector.broadcast %11 : vector<1x32xf32> to vector<16x32xf32>
    %13 = arith.addf %10, %12 : vector<16x32xf32>
    %14 = arith.extf %0 : vector<16x32xbf16> to vector<16x32xf32>
    %15 = arith.addf %13, %14 : vector<16x32xf32>
    %c0_11 = arith.constant 0 : index
    %c0_12 = arith.constant 0 : index
    %16 = vector.load %arg6[%c0_11, %c0_12] : memref<1x32xf32, #tpu.memory_space<vmem>>, vector<1x32xf32>
    %c0_13 = arith.constant 0 : index
    %c0_14 = arith.constant 0 : index
    %17 = vector.load %arg7[%c0_13, %c0_14] : memref<1x32xf32, #tpu.memory_space<vmem>>, vector<1x32xf32>
    %cst_15 = arith.constant dense<0.000000e+00> : vector<16xf32>
    %18 = vector.multi_reduction <add>, %15, %cst_15 [1] : vector<16x32xf32> to vector<16xf32>
    %19 = vector.shape_cast %18 : vector<16xf32> to vector<16x1xf32>
    %cst_16 = arith.constant 3.200000e+01 : f32
    %20 = vector.broadcast %cst_16 : f32 to vector<16x1xf32>
    %21 = arith.divf %19, %20 : vector<16x1xf32>
    %22 = vector.broadcast %21 : vector<16x1xf32> to vector<16x32xf32>
    %23 = arith.subf %15, %22 : vector<16x32xf32>
    %24 = arith.mulf %23, %23 : vector<16x32xf32>
    %cst_17 = arith.constant dense<0.000000e+00> : vector<16xf32>
    %25 = vector.multi_reduction <add>, %24, %cst_17 [1] : vector<16x32xf32> to vector<16xf32>
    %26 = vector.shape_cast %25 : vector<16xf32> to vector<16x1xf32>
    %cst_18 = arith.constant 3.200000e+01 : f32
    %27 = vector.broadcast %cst_18 : f32 to vector<16x1xf32>
    %28 = arith.divf %26, %27 : vector<16x1xf32>
    %29 = vector.broadcast %21 : vector<16x1xf32> to vector<16x32xf32>
    %30 = arith.subf %15, %29 : vector<16x32xf32>
    %cst_19 = arith.constant 9.99999974E-6 : f32
    %31 = vector.broadcast %cst_19 : f32 to vector<16x1xf32>
    %32 = arith.addf %28, %31 : vector<16x1xf32>
    %33 = math.rsqrt %32 : vector<16x1xf32>
    %34 = vector.broadcast %33 : vector<16x1xf32> to vector<16x32xf32>
    %35 = arith.mulf %30, %34 : vector<16x32xf32>
    %36 = vector.broadcast %16 : vector<1x32xf32> to vector<16x32xf32>
    %37 = arith.mulf %35, %36 : vector<16x32xf32>
    %38 = vector.broadcast %17 : vector<1x32xf32> to vector<16x32xf32>
    %39 = arith.addf %37, %38 : vector<16x32xf32>
    %40 = arith.truncf %39 : vector<16x32xf32> to vector<16x32xbf16>
    %c0_20 = arith.constant 0 : index
    %c0_21 = arith.constant 0 : index
    %41 = vector.load %arg8[%c0_20, %c0_21] : memref<16x32xbf16, #tpu.memory_space<vmem>>, vector<16x32xbf16>
    tpu.vector_store %arg8[%c0_20, %c0_21], %40 {strides = array<i32>} : memref<16x32xbf16, #tpu.memory_space<vmem>>, vector<16x32xbf16>,
    return
  }
  func.func @transform_0(%arg0: i32) -> (i32, i32) {
    %c0_i32 = arith.constant 0 : i32
    %c0_i32_0 = arith.constant 0 : i32
    return %arg0, %c0_i32 : i32, i32
  }
  func.func @transform_1(%arg0: i32) -> (i32, i32) {
    %c0_i32 = arith.constant 0 : i32
    %c0_i32_0 = arith.constant 0 : i32
    %c0_i32_1 = arith.constant 0 : i32
    return %c0_i32, %c0_i32_0 : i32, i32
  }
  func.func @transform_2(%arg0: i32) -> (i32, i32) {
    %c0_i32 = arith.constant 0 : i32
    %c0_i32_0 = arith.constant 0 : i32
    %c0_i32_1 = arith.constant 0 : i32
    return %c0_i32, %c0_i32_0 : i32, i32
  }
  func.func @transform_3(%arg0: i32) -> (i32, i32) {
    %c0_i32 = arith.constant 0 : i32
    %c0_i32_0 = arith.constant 0 : i32
    %c0_i32_1 = arith.constant 0 : i32
    return %c0_i32, %c0_i32_0 : i32, i32
  }
  func.func @transform_4(%arg0: i32) -> (i32, i32) {
    %c0_i32 = arith.constant 0 : i32
    %c0_i32_0 = arith.constant 0 : i32
    %c0_i32_1 = arith.constant 0 : i32
    return %c0_i32, %c0_i32_0 : i32, i32
  }
  func.func @transform_5(%arg0: i32) -> (i32, i32) {
    %c0_i32 = arith.constant 0 : i32
    %c0_i32_0 = arith.constant 0 : i32
    %c0_i32_1 = arith.constant 0 : i32
    return %c0_i32, %c0_i32_0 : i32, i32
  }
  func.func @transform_6(%arg0: i32) -> (i32, i32) {
    %c0_i32 = arith.constant 0 : i32
    %c0_i32_0 = arith.constant 0 : i32
    %c0_i32_1 = arith.constant 0 : i32
    return %c0_i32, %c0_i32_0 : i32, i32
  }
  func.func @transform_7(%arg0: i32) -> (i32, i32) {
    %c0_i32 = arith.constant 0 : i32
    %c0_i32_0 = arith.constant 0 : i32
    return %arg0, %c0_i32 : i32, i32
  }
}

module attributes {stable_mosaic.version = 11 : i64} {
  func.func @_linear_kernel(%arg0: i32, %arg1: memref<16x32xbf16, #tpu.memory_space<vmem>>, %arg2: memref<32x32xbf16, #tpu.memory_space<vmem>>, %arg3: memref<1x32xf32, #tpu.memory_space<vmem>>, %arg4: memref<16x32xbf16, #tpu.memory_space<vmem>>) attributes {dimension_semantics = [#tpu.dimension_semantics<parallel>], iteration_bounds = array<i64: 1>, scalar_prefetch = 0 : i64, scratch_operands = 0 : i64, tpu.core_type = #tpu.core_type<tc>, window_params = [{transform_indices = @transform_0, window_bounds = array<i64: 16, 32>}, {pipeline_mode = #tpu.pipeline_mode<synchronous>, transform_indices = @transform_1, window_bounds = array<i64: 32, 32>}, {pipeline_mode = #tpu.pipeline_mode<synchronous>, transform_indices = @transform_2, window_bounds = array<i64: 1, 32>}, {transform_indices = @transform_3, window_bounds = array<i64: 16, 32>}]} {
    %c0 = arith.constant 0 : index
    %c0_0 = arith.constant 0 : index
    %0 = vector.load %arg1[%c0, %c0_0] : memref<16x32xbf16, #tpu.memory_space<vmem>>, vector<16x32xbf16>
    %c0_1 = arith.constant 0 : index
    %c0_2 = arith.constant 0 : index
    %1 = vector.load %arg2[%c0_1, %c0_2] : memref<32x32xbf16, #tpu.memory_space<vmem>>, vector<32x32xbf16>
    %cst = arith.constant dense<0.000000e+00> : vector<16x32xf32>
    %2 = tpu.matmul %0, %1, %cst {dimension_numbers = #tpu.dot_dimension_numbers<[1], [0], [0], [1], [0, 0, 1, 1], [], []>} : vector<16x32xbf16>, vector<32x32xbf16>, vector<16x32xf32> -> vector<16x32xf32>
    %c0_3 = arith.constant 0 : index
    %c0_4 = arith.constant 0 : index
    %3 = vector.load %arg3[%c0_3, %c0_4] : memref<1x32xf32, #tpu.memory_space<vmem>>, vector<1x32xf32>
    %4 = vector.broadcast %3 : vector<1x32xf32> to vector<16x32xf32>
    %5 = arith.addf %2, %4 : vector<16x32xf32>
    %6 = arith.truncf %5 : vector<16x32xf32> to vector<16x32xbf16>
    %c0_5 = arith.constant 0 : index
    %c0_6 = arith.constant 0 : index
    %7 = vector.load %arg4[%c0_5, %c0_6] : memref<16x32xbf16, #tpu.memory_space<vmem>>, vector<16x32xbf16>
    tpu.vector_store %arg4[%c0_5, %c0_6], %6 {strides = array<i32>} : memref<16x32xbf16, #tpu.memory_space<vmem>>, vector<16x32xbf16>,
    return
  }
  func.func @transform_0(%arg0: i32) -> (i32, i32) {
    %c0_i32 = arith.constant 0 : i32
    %c0_i32_0 = arith.constant 0 : i32
    return %arg0, %c0_i32 : i32, i32
  }
  func.func @transform_1(%arg0: i32) -> (i32, i32) {
    %c0_i32 = arith.constant 0 : i32
    %c0_i32_0 = arith.constant 0 : i32
    %c0_i32_1 = arith.constant 0 : i32
    return %c0_i32, %c0_i32_0 : i32, i32
  }
  func.func @transform_2(%arg0: i32) -> (i32, i32) {
    %c0_i32 = arith.constant 0 : i32
    %c0_i32_0 = arith.constant 0 : i32
    %c0_i32_1 = arith.constant 0 : i32
    return %c0_i32, %c0_i32_0 : i32, i32
  }
  func.func @transform_3(%arg0: i32) -> (i32, i32) {
    %c0_i32 = arith.constant 0 : i32
    %c0_i32_0 = arith.constant 0 : i32
    return %arg0, %c0_i32 : i32, i32
  }
}

module attributes {stable_mosaic.version = 11 : i64} {
  func.func @_generator_kernel(%arg0: i32, %arg1: memref<16x32xbf16, #tpu.memory_space<vmem>>, %arg2: memref<32x16xbf16, #tpu.memory_space<vmem>>, %arg3: memref<1x16xf32, #tpu.memory_space<vmem>>, %arg4: memref<16x16xf32, #tpu.memory_space<vmem>>) attributes {dimension_semantics = [#tpu.dimension_semantics<parallel>], iteration_bounds = array<i64: 1>, scalar_prefetch = 0 : i64, scratch_operands = 0 : i64, tpu.core_type = #tpu.core_type<tc>, window_params = [{transform_indices = @transform_0, window_bounds = array<i64: 16, 32>}, {pipeline_mode = #tpu.pipeline_mode<synchronous>, transform_indices = @transform_1, window_bounds = array<i64: 32, 16>}, {pipeline_mode = #tpu.pipeline_mode<synchronous>, transform_indices = @transform_2, window_bounds = array<i64: 1, 16>}, {transform_indices = @transform_3, window_bounds = array<i64: 16, 16>}]} {
    %c0 = arith.constant 0 : index
    %c0_0 = arith.constant 0 : index
    %0 = vector.load %arg1[%c0, %c0_0] : memref<16x32xbf16, #tpu.memory_space<vmem>>, vector<16x32xbf16>
    %c0_1 = arith.constant 0 : index
    %c0_2 = arith.constant 0 : index
    %1 = vector.load %arg2[%c0_1, %c0_2] : memref<32x16xbf16, #tpu.memory_space<vmem>>, vector<32x16xbf16>
    %cst = arith.constant dense<0.000000e+00> : vector<16x16xf32>
    %2 = tpu.matmul %0, %1, %cst {dimension_numbers = #tpu.dot_dimension_numbers<[1], [0], [0], [1], [0, 0, 1, 1], [], []>} : vector<16x32xbf16>, vector<32x16xbf16>, vector<16x16xf32> -> vector<16x16xf32>
    %c0_3 = arith.constant 0 : index
    %c0_4 = arith.constant 0 : index
    %3 = vector.load %arg3[%c0_3, %c0_4] : memref<1x16xf32, #tpu.memory_space<vmem>>, vector<1x16xf32>
    %4 = vector.broadcast %3 : vector<1x16xf32> to vector<16x16xf32>
    %5 = arith.addf %2, %4 : vector<16x16xf32>
    %cst_5 = arith.constant dense<0xFF800000> : vector<16xf32>
    %6 = vector.multi_reduction <maximumf>, %5, %cst_5 [1] : vector<16x16xf32> to vector<16xf32>
    %7 = vector.shape_cast %6 : vector<16xf32> to vector<16x1xf32>
    %8 = vector.broadcast %7 : vector<16x1xf32> to vector<16x16xf32>
    %9 = arith.subf %5, %8 : vector<16x16xf32>
    %10 = math.exp %9 : vector<16x16xf32>
    %cst_6 = arith.constant dense<0.000000e+00> : vector<16xf32>
    %11 = vector.multi_reduction <add>, %10, %cst_6 [1] : vector<16x16xf32> to vector<16xf32>
    %12 = vector.shape_cast %11 : vector<16xf32> to vector<16x1xf32>
    %13 = math.log %12 : vector<16x1xf32>
    %14 = arith.addf %13, %7 : vector<16x1xf32>
    %15 = vector.broadcast %14 : vector<16x1xf32> to vector<16x16xf32>
    %16 = arith.subf %5, %15 : vector<16x16xf32>
    %c0_7 = arith.constant 0 : index
    %c0_8 = arith.constant 0 : index
    %17 = vector.load %arg4[%c0_7, %c0_8] : memref<16x16xf32, #tpu.memory_space<vmem>>, vector<16x16xf32>
    tpu.vector_store %arg4[%c0_7, %c0_8], %16 {strides = array<i32>} : memref<16x16xf32, #tpu.memory_space<vmem>>, vector<16x16xf32>,
    return
  }
  func.func @transform_0(%arg0: i32) -> (i32, i32) {
    %c0_i32 = arith.constant 0 : i32
    %c0_i32_0 = arith.constant 0 : i32
    return %arg0, %c0_i32 : i32, i32
  }
  func.func @transform_1(%arg0: i32) -> (i32, i32) {
    %c0_i32 = arith.constant 0 : i32
    %c0_i32_0 = arith.constant 0 : i32
    %c0_i32_1 = arith.constant 0 : i32
    return %c0_i32, %c0_i32_0 : i32, i32
  }
  func.func @transform_2(%arg0: i32) -> (i32, i32) {
    %c0_i32 = arith.constant 0 : i32
    %c0_i32_0 = arith.constant 0 : i32
    %c0_i32_1 = arith.constant 0 : i32
    return %c0_i32, %c0_i32_0 : i32, i32
  }
  func.func @transform_3(%arg0: i32) -> (i32, i32) {
    %c0_i32 = arith.constant 0 : i32
    %c0_i32_0 = arith.constant 0 : i32
    return %arg0, %c0_i32 : i32, i32
  }
}

module attributes {stable_mosaic.version = 11 : i64} {
  func.func @_attn_block_kernel(%arg0: i32, %arg1: memref<1x8x32xbf16, #tpu.memory_space<vmem>>, %arg2: memref<1x8x64xbf16, #tpu.memory_space<vmem>>, %arg3: memref<1x8x1xf32, #tpu.memory_space<vmem>>, %arg4: memref<1x1x8xf32, #tpu.memory_space<vmem>>, %arg5: memref<1x8x32xbf16, #tpu.memory_space<vmem>>, %arg6: memref<32x32xbf16, #tpu.memory_space<vmem>>, %arg7: memref<1x32xf32, #tpu.memory_space<vmem>>, %arg8: memref<1x32xf32, #tpu.memory_space<vmem>>, %arg9: memref<1x32xf32, #tpu.memory_space<vmem>>, %arg10: memref<1x8x32xbf16, #tpu.memory_space<vmem>>) attributes {dimension_semantics = [#tpu.dimension_semantics<parallel>], iteration_bounds = array<i64: 2>, scalar_prefetch = 0 : i64, scratch_operands = 0 : i64, tpu.core_type = #tpu.core_type<tc>, window_params = [{transform_indices = @transform_0, window_bounds = array<i64: 1, 8, 32>}, {transform_indices = @transform_1, window_bounds = array<i64: 1, 8, 64>}, {transform_indices = @transform_2, window_bounds = array<i64: 1, 8, 1>}, {transform_indices = @transform_3, window_bounds = array<i64: 1, 1, 8>}, {transform_indices = @transform_4, window_bounds = array<i64: 1, 8, 32>}, {pipeline_mode = #tpu.pipeline_mode<synchronous>, transform_indices = @transform_5, window_bounds = array<i64: 32, 32>}, {pipeline_mode = #tpu.pipeline_mode<synchronous>, transform_indices = @transform_6, window_bounds = array<i64: 1, 32>}, {pipeline_mode = #tpu.pipeline_mode<synchronous>, transform_indices = @transform_7, window_bounds = array<i64: 1, 32>}, {pipeline_mode = #tpu.pipeline_mode<synchronous>, transform_indices = @transform_8, window_bounds = array<i64: 1, 32>}, {transform_indices = @transform_9, window_bounds = array<i64: 1, 8, 32>}]} {
    %c0 = arith.constant 0 : index
    %c0_0 = arith.constant 0 : index
    %c0_1 = arith.constant 0 : index
    %0 = vector.load %arg1[%c0, %c0_0, %c0_1] : memref<1x8x32xbf16, #tpu.memory_space<vmem>>, vector<1x8x32xbf16>
    %1 = vector.shape_cast %0 : vector<1x8x32xbf16> to vector<8x32xbf16>
    %c0_2 = arith.constant 0 : index
    %c0_3 = arith.constant 0 : index
    %c0_4 = arith.constant 0 : index
    %2 = vector.load %arg2[%c0_2, %c0_3, %c0_4] : memref<1x8x64xbf16, #tpu.memory_space<vmem>>, vector<1x8x64xbf16>
    %3 = vector.shape_cast %2 : vector<1x8x64xbf16> to vector<8x64xbf16>
    %c0_5 = arith.constant 0 : index
    %c0_6 = arith.constant 0 : index
    %c0_7 = arith.constant 0 : index
    %4 = vector.load %arg3[%c0_5, %c0_6, %c0_7] : memref<1x8x1xf32, #tpu.memory_space<vmem>>, vector<1x8x1xf32>
    %5 = vector.shape_cast %4 : vector<1x8x1xf32> to vector<8x1xf32>
    %c0_8 = arith.constant 0 : index
    %c0_9 = arith.constant 0 : index
    %c0_10 = arith.constant 0 : index
    %6 = vector.load %arg4[%c0_8, %c0_9, %c0_10] : memref<1x1x8xf32, #tpu.memory_space<vmem>>, vector<1x1x8xf32>
    %7 = vector.shape_cast %6 : vector<1x1x8xf32> to vector<1x8xf32>
    %8 = vector.broadcast %5 : vector<8x1xf32> to vector<8x8xf32>
    %9 = vector.broadcast %7 : vector<1x8xf32> to vector<8x8xf32>
    %10 = arith.mulf %8, %9 : vector<8x8xf32>
    %cst = arith.constant 0.000000e+00 : f32
    %11 = vector.broadcast %cst : f32 to vector<8x8xf32>
    %12 = arith.cmpf ogt, %10, %11 : vector<8x8xf32>
    %13 = tpu.iota {dimensions = array<i32: 0>} : vector<8x8xi32>
    %14 = tpu.iota {dimensions = array<i32: 1>} : vector<8x8xi32>
    %15 = arith.cmpi sge, %13, %14 : vector<8x8xi32>
    %16 = arith.andi %12, %15 : vector<8x8xi1>
    %c0_11 = arith.constant 0 : index
    %c0_12 = arith.constant 0 : index
    %17 = vector.load %arg6[%c0_11, %c0_12] : memref<32x32xbf16, #tpu.memory_space<vmem>>, vector<32x32xbf16>
    %cst_13 = arith.constant 0.000000e+00 : f32
    %18 = vector.broadcast %cst_13 : f32 to vector<8x32xf32>
    %19 = vector.extract_strided_slice %1 {offsets = [0, 0], sizes = [8, 8], strides = [1, 1]} : vector<8x32xbf16> to vector<8x8xbf16>
    %20 = vector.extract_strided_slice %3 {offsets = [0, 0], sizes = [8, 8], strides = [1, 1]} : vector<8x64xbf16> to vector<8x8xbf16>
    %21 = vector.extract_strided_slice %3 {offsets = [0, 32], sizes = [8, 8], strides = [1, 1]} : vector<8x64xbf16> to vector<8x8xbf16>
    %cst_14 = arith.constant dense<0.000000e+00> : vector<8x8xf32>
    %22 = tpu.matmul %19, %20, %cst_14 {dimension_numbers = #tpu.dot_dimension_numbers<[1], [1], [0], [0], [0, 0, 1, 0], [], []>} : vector<8x8xbf16>, vector<8x8xbf16>, vector<8x8xf32> -> vector<8x8xf32>
    %cst_15 = arith.constant 0.353553385 : f32
    %23 = vector.broadcast %cst_15 : f32 to vector<8x8xf32>
    %24 = arith.mulf %22, %23 : vector<8x8xf32>
    %cst_16 = arith.constant -1.000000e+04 : f32
    %25 = vector.broadcast %cst_16 : f32 to vector<8x8xf32>
    %26 = arith.select %16, %24, %25 : vector<8x8xi1>, vector<8x8xf32>
    %cst_17 = arith.constant dense<0xFF800000> : vector<8xf32>
    %27 = vector.multi_reduction <maximumf>, %26, %cst_17 [1] : vector<8x8xf32> to vector<8xf32>
    %28 = vector.shape_cast %27 : vector<8xf32> to vector<8x1xf32>
    %29 = vector.broadcast %28 : vector<8x1xf32> to vector<8x8xf32>
    %30 = arith.subf %26, %29 : vector<8x8xf32>
    %31 = math.exp %30 : vector<8x8xf32>
    %cst_18 = arith.constant dense<0.000000e+00> : vector<8xf32>
    %32 = vector.multi_reduction <add>, %31, %cst_18 [1] : vector<8x8xf32> to vector<8xf32>
    %33 = vector.shape_cast %32 : vector<8xf32> to vector<8x1xf32>
    %34 = tpu.reciprocal %33 {approx = true} : vector<8x1xf32> -> vector<8x1xf32>
    %35 = vector.broadcast %34 : vector<8x1xf32> to vector<8x8xf32>
    %36 = arith.mulf %31, %35 : vector<8x8xf32>
    %37 = arith.truncf %36 : vector<8x8xf32> to vector<8x8xbf16>
    %cst_19 = arith.constant dense<0.000000e+00> : vector<8x8xf32>
    %38 = tpu.matmul %37, %21, %cst_19 {dimension_numbers = #tpu.dot_dimension_numbers<[1], [0], [0], [1], [0, 0, 1, 1], [], []>} : vector<8x8xbf16>, vector<8x8xbf16>, vector<8x8xf32> -> vector<8x8xf32>
    %39 = arith.truncf %38 : vector<8x8xf32> to vector<8x8xbf16>
    %40 = vector.extract_strided_slice %17 {offsets = [0, 0], sizes = [8, 32], strides = [1, 1]} : vector<32x32xbf16> to vector<8x32xbf16>
    %cst_20 = arith.constant dense<0.000000e+00> : vector<8x32xf32>
    %41 = tpu.matmul %39, %40, %cst_20 {dimension_numbers = #tpu.dot_dimension_numbers<[1], [0], [0], [1], [0, 0, 1, 1], [], []>} : vector<8x8xbf16>, vector<8x32xbf16>, vector<8x32xf32> -> vector<8x32xf32>
    %42 = arith.addf %18, %41 : vector<8x32xf32>
    %43 = vector.extract_strided_slice %1 {offsets = [0, 8], sizes = [8, 8], strides = [1, 1]} : vector<8x32xbf16> to vector<8x8xbf16>
    %44 = vector.extract_strided_slice %3 {offsets = [0, 8], sizes = [8, 8], strides = [1, 1]} : vector<8x64xbf16> to vector<8x8xbf16>
    %45 = vector.extract_strided_slice %3 {offsets = [0, 40], sizes = [8, 8], strides = [1, 1]} : vector<8x64xbf16> to vector<8x8xbf16>
    %cst_21 = arith.constant dense<0.000000e+00> : vector<8x8xf32>
    %46 = tpu.matmul %43, %44, %cst_21 {dimension_numbers = #tpu.dot_dimension_numbers<[1], [1], [0], [0], [0, 0, 1, 0], [], []>} : vector<8x8xbf16>, vector<8x8xbf16>, vector<8x8xf32> -> vector<8x8xf32>
    %cst_22 = arith.constant 0.353553385 : f32
    %47 = vector.broadcast %cst_22 : f32 to vector<8x8xf32>
    %48 = arith.mulf %46, %47 : vector<8x8xf32>
    %cst_23 = arith.constant -1.000000e+04 : f32
    %49 = vector.broadcast %cst_23 : f32 to vector<8x8xf32>
    %50 = arith.select %16, %48, %49 : vector<8x8xi1>, vector<8x8xf32>
    %cst_24 = arith.constant dense<0xFF800000> : vector<8xf32>
    %51 = vector.multi_reduction <maximumf>, %50, %cst_24 [1] : vector<8x8xf32> to vector<8xf32>
    %52 = vector.shape_cast %51 : vector<8xf32> to vector<8x1xf32>
    %53 = vector.broadcast %52 : vector<8x1xf32> to vector<8x8xf32>
    %54 = arith.subf %50, %53 : vector<8x8xf32>
    %55 = math.exp %54 : vector<8x8xf32>
    %cst_25 = arith.constant dense<0.000000e+00> : vector<8xf32>
    %56 = vector.multi_reduction <add>, %55, %cst_25 [1] : vector<8x8xf32> to vector<8xf32>
    %57 = vector.shape_cast %56 : vector<8xf32> to vector<8x1xf32>
    %58 = tpu.reciprocal %57 {approx = true} : vector<8x1xf32> -> vector<8x1xf32>
    %59 = vector.broadcast %58 : vector<8x1xf32> to vector<8x8xf32>
    %60 = arith.mulf %55, %59 : vector<8x8xf32>
    %61 = arith.truncf %60 : vector<8x8xf32> to vector<8x8xbf16>
    %cst_26 = arith.constant dense<0.000000e+00> : vector<8x8xf32>
    %62 = tpu.matmul %61, %45, %cst_26 {dimension_numbers = #tpu.dot_dimension_numbers<[1], [0], [0], [1], [0, 0, 1, 1], [], []>} : vector<8x8xbf16>, vector<8x8xbf16>, vector<8x8xf32> -> vector<8x8xf32>
    %63 = arith.truncf %62 : vector<8x8xf32> to vector<8x8xbf16>
    %64 = vector.extract_strided_slice %17 {offsets = [8, 0], sizes = [8, 32], strides = [1, 1]} : vector<32x32xbf16> to vector<8x32xbf16>
    %cst_27 = arith.constant dense<0.000000e+00> : vector<8x32xf32>
    %65 = tpu.matmul %63, %64, %cst_27 {dimension_numbers = #tpu.dot_dimension_numbers<[1], [0], [0], [1], [0, 0, 1, 1], [], []>} : vector<8x8xbf16>, vector<8x32xbf16>, vector<8x32xf32> -> vector<8x32xf32>
    %66 = arith.addf %42, %65 : vector<8x32xf32>
    %67 = vector.extract_strided_slice %1 {offsets = [0, 16], sizes = [8, 8], strides = [1, 1]} : vector<8x32xbf16> to vector<8x8xbf16>
    %68 = vector.extract_strided_slice %3 {offsets = [0, 16], sizes = [8, 8], strides = [1, 1]} : vector<8x64xbf16> to vector<8x8xbf16>
    %69 = vector.extract_strided_slice %3 {offsets = [0, 48], sizes = [8, 8], strides = [1, 1]} : vector<8x64xbf16> to vector<8x8xbf16>
    %cst_28 = arith.constant dense<0.000000e+00> : vector<8x8xf32>
    %70 = tpu.matmul %67, %68, %cst_28 {dimension_numbers = #tpu.dot_dimension_numbers<[1], [1], [0], [0], [0, 0, 1, 0], [], []>} : vector<8x8xbf16>, vector<8x8xbf16>, vector<8x8xf32> -> vector<8x8xf32>
    %cst_29 = arith.constant 0.353553385 : f32
    %71 = vector.broadcast %cst_29 : f32 to vector<8x8xf32>
    %72 = arith.mulf %70, %71 : vector<8x8xf32>
    %cst_30 = arith.constant -1.000000e+04 : f32
    %73 = vector.broadcast %cst_30 : f32 to vector<8x8xf32>
    %74 = arith.select %16, %72, %73 : vector<8x8xi1>, vector<8x8xf32>
    %cst_31 = arith.constant dense<0xFF800000> : vector<8xf32>
    %75 = vector.multi_reduction <maximumf>, %74, %cst_31 [1] : vector<8x8xf32> to vector<8xf32>
    %76 = vector.shape_cast %75 : vector<8xf32> to vector<8x1xf32>
    %77 = vector.broadcast %76 : vector<8x1xf32> to vector<8x8xf32>
    %78 = arith.subf %74, %77 : vector<8x8xf32>
    %79 = math.exp %78 : vector<8x8xf32>
    %cst_32 = arith.constant dense<0.000000e+00> : vector<8xf32>
    %80 = vector.multi_reduction <add>, %79, %cst_32 [1] : vector<8x8xf32> to vector<8xf32>
    %81 = vector.shape_cast %80 : vector<8xf32> to vector<8x1xf32>
    %82 = tpu.reciprocal %81 {approx = true} : vector<8x1xf32> -> vector<8x1xf32>
    %83 = vector.broadcast %82 : vector<8x1xf32> to vector<8x8xf32>
    %84 = arith.mulf %79, %83 : vector<8x8xf32>
    %85 = arith.truncf %84 : vector<8x8xf32> to vector<8x8xbf16>
    %cst_33 = arith.constant dense<0.000000e+00> : vector<8x8xf32>
    %86 = tpu.matmul %85, %69, %cst_33 {dimension_numbers = #tpu.dot_dimension_numbers<[1], [0], [0], [1], [0, 0, 1, 1], [], []>} : vector<8x8xbf16>, vector<8x8xbf16>, vector<8x8xf32> -> vector<8x8xf32>
    %87 = arith.truncf %86 : vector<8x8xf32> to vector<8x8xbf16>
    %88 = vector.extract_strided_slice %17 {offsets = [16, 0], sizes = [8, 32], strides = [1, 1]} : vector<32x32xbf16> to vector<8x32xbf16>
    %cst_34 = arith.constant dense<0.000000e+00> : vector<8x32xf32>
    %89 = tpu.matmul %87, %88, %cst_34 {dimension_numbers = #tpu.dot_dimension_numbers<[1], [0], [0], [1], [0, 0, 1, 1], [], []>} : vector<8x8xbf16>, vector<8x32xbf16>, vector<8x32xf32> -> vector<8x32xf32>
    %90 = arith.addf %66, %89 : vector<8x32xf32>
    %91 = vector.extract_strided_slice %1 {offsets = [0, 24], sizes = [8, 8], strides = [1, 1]} : vector<8x32xbf16> to vector<8x8xbf16>
    %92 = vector.extract_strided_slice %3 {offsets = [0, 24], sizes = [8, 8], strides = [1, 1]} : vector<8x64xbf16> to vector<8x8xbf16>
    %93 = vector.extract_strided_slice %3 {offsets = [0, 56], sizes = [8, 8], strides = [1, 1]} : vector<8x64xbf16> to vector<8x8xbf16>
    %cst_35 = arith.constant dense<0.000000e+00> : vector<8x8xf32>
    %94 = tpu.matmul %91, %92, %cst_35 {dimension_numbers = #tpu.dot_dimension_numbers<[1], [1], [0], [0], [0, 0, 1, 0], [], []>} : vector<8x8xbf16>, vector<8x8xbf16>, vector<8x8xf32> -> vector<8x8xf32>
    %cst_36 = arith.constant 0.353553385 : f32
    %95 = vector.broadcast %cst_36 : f32 to vector<8x8xf32>
    %96 = arith.mulf %94, %95 : vector<8x8xf32>
    %cst_37 = arith.constant -1.000000e+04 : f32
    %97 = vector.broadcast %cst_37 : f32 to vector<8x8xf32>
    %98 = arith.select %16, %96, %97 : vector<8x8xi1>, vector<8x8xf32>
    %cst_38 = arith.constant dense<0xFF800000> : vector<8xf32>
    %99 = vector.multi_reduction <maximumf>, %98, %cst_38 [1] : vector<8x8xf32> to vector<8xf32>
    %100 = vector.shape_cast %99 : vector<8xf32> to vector<8x1xf32>
    %101 = vector.broadcast %100 : vector<8x1xf32> to vector<8x8xf32>
    %102 = arith.subf %98, %101 : vector<8x8xf32>
    %103 = math.exp %102 : vector<8x8xf32>
    %cst_39 = arith.constant dense<0.000000e+00> : vector<8xf32>
    %104 = vector.multi_reduction <add>, %103, %cst_39 [1] : vector<8x8xf32> to vector<8xf32>
    %105 = vector.shape_cast %104 : vector<8xf32> to vector<8x1xf32>
    %106 = tpu.reciprocal %105 {approx = true} : vector<8x1xf32> -> vector<8x1xf32>
    %107 = vector.broadcast %106 : vector<8x1xf32> to vector<8x8xf32>
    %108 = arith.mulf %103, %107 : vector<8x8xf32>
    %109 = arith.truncf %108 : vector<8x8xf32> to vector<8x8xbf16>
    %cst_40 = arith.constant dense<0.000000e+00> : vector<8x8xf32>
    %110 = tpu.matmul %109, %93, %cst_40 {dimension_numbers = #tpu.dot_dimension_numbers<[1], [0], [0], [1], [0, 0, 1, 1], [], []>} : vector<8x8xbf16>, vector<8x8xbf16>, vector<8x8xf32> -> vector<8x8xf32>
    %111 = arith.truncf %110 : vector<8x8xf32> to vector<8x8xbf16>
    %112 = vector.extract_strided_slice %17 {offsets = [24, 0], sizes = [8, 32], strides = [1, 1]} : vector<32x32xbf16> to vector<8x32xbf16>
    %cst_41 = arith.constant dense<0.000000e+00> : vector<8x32xf32>
    %113 = tpu.matmul %111, %112, %cst_41 {dimension_numbers = #tpu.dot_dimension_numbers<[1], [0], [0], [1], [0, 0, 1, 1], [], []>} : vector<8x8xbf16>, vector<8x32xbf16>, vector<8x32xf32> -> vector<8x32xf32>
    %114 = arith.addf %90, %113 : vector<8x32xf32>
    %c0_42 = arith.constant 0 : index
    %c0_43 = arith.constant 0 : index
    %115 = vector.load %arg7[%c0_42, %c0_43] : memref<1x32xf32, #tpu.memory_space<vmem>>, vector<1x32xf32>
    %116 = vector.broadcast %115 : vector<1x32xf32> to vector<8x32xf32>
    %117 = arith.addf %114, %116 : vector<8x32xf32>
    %c0_44 = arith.constant 0 : index
    %c0_45 = arith.constant 0 : index
    %c0_46 = arith.constant 0 : index
    %118 = vector.load %arg5[%c0_44, %c0_45, %c0_46] : memref<1x8x32xbf16, #tpu.memory_space<vmem>>, vector<1x8x32xbf16>
    %119 = vector.shape_cast %118 : vector<1x8x32xbf16> to vector<8x32xbf16>
    %120 = arith.extf %119 : vector<8x32xbf16> to vector<8x32xf32>
    %121 = arith.addf %117, %120 : vector<8x32xf32>
    %c0_47 = arith.constant 0 : index
    %c0_48 = arith.constant 0 : index
    %122 = vector.load %arg8[%c0_47, %c0_48] : memref<1x32xf32, #tpu.memory_space<vmem>>, vector<1x32xf32>
    %c0_49 = arith.constant 0 : index
    %c0_50 = arith.constant 0 : index
    %123 = vector.load %arg9[%c0_49, %c0_50] : memref<1x32xf32, #tpu.memory_space<vmem>>, vector<1x32xf32>
    %cst_51 = arith.constant dense<0.000000e+00> : vector<8xf32>
    %124 = vector.multi_reduction <add>, %121, %cst_51 [1] : vector<8x32xf32> to vector<8xf32>
    %125 = vector.shape_cast %124 : vector<8xf32> to vector<8x1xf32>
    %cst_52 = arith.constant 3.200000e+01 : f32
    %126 = vector.broadcast %cst_52 : f32 to vector<8x1xf32>
    %127 = arith.divf %125, %126 : vector<8x1xf32>
    %128 = vector.broadcast %127 : vector<8x1xf32> to vector<8x32xf32>
    %129 = arith.subf %121, %128 : vector<8x32xf32>
    %130 = arith.mulf %129, %129 : vector<8x32xf32>
    %cst_53 = arith.constant dense<0.000000e+00> : vector<8xf32>
    %131 = vector.multi_reduction <add>, %130, %cst_53 [1] : vector<8x32xf32> to vector<8xf32>
    %132 = vector.shape_cast %131 : vector<8xf32> to vector<8x1xf32>
    %cst_54 = arith.constant 3.200000e+01 : f32
    %133 = vector.broadcast %cst_54 : f32 to vector<8x1xf32>
    %134 = arith.divf %132, %133 : vector<8x1xf32>
    %135 = vector.broadcast %127 : vector<8x1xf32> to vector<8x32xf32>
    %136 = arith.subf %121, %135 : vector<8x32xf32>
    %cst_55 = arith.constant 9.99999974E-6 : f32
    %137 = vector.broadcast %cst_55 : f32 to vector<8x1xf32>
    %138 = arith.addf %134, %137 : vector<8x1xf32>
    %139 = math.rsqrt %138 : vector<8x1xf32>
    %140 = vector.broadcast %139 : vector<8x1xf32> to vector<8x32xf32>
    %141 = arith.mulf %136, %140 : vector<8x32xf32>
    %142 = vector.broadcast %122 : vector<1x32xf32> to vector<8x32xf32>
    %143 = arith.mulf %141, %142 : vector<8x32xf32>
    %144 = vector.broadcast %123 : vector<1x32xf32> to vector<8x32xf32>
    %145 = arith.addf %143, %144 : vector<8x32xf32>
    %146 = arith.truncf %145 : vector<8x32xf32> to vector<8x32xbf16>
    %c0_56 = arith.constant 0 : index
    %c0_57 = arith.constant 0 : index
    %c0_58 = arith.constant 0 : index
    %147 = vector.load %arg10[%c0_56, %c0_57, %c0_58] : memref<1x8x32xbf16, #tpu.memory_space<vmem>>, vector<1x8x32xbf16>
    %148 = vector.shape_cast %147 : vector<1x8x32xbf16> to vector<8x32xbf16>
    %149 = vector.shape_cast %146 : vector<8x32xbf16> to vector<1x8x32xbf16>
    tpu.vector_store %arg10[%c0_56, %c0_57, %c0_58], %149 {strides = array<i32>} : memref<1x8x32xbf16, #tpu.memory_space<vmem>>, vector<1x8x32xbf16>,
    return
  }
  func.func @transform_0(%arg0: i32) -> (i32, i32, i32) {
    %c0_i32 = arith.constant 0 : i32
    %c0_i32_0 = arith.constant 0 : i32
    %c0_i32_1 = arith.constant 0 : i32
    return %arg0, %c0_i32, %c0_i32_0 : i32, i32, i32
  }
  func.func @transform_1(%arg0: i32) -> (i32, i32, i32) {
    %c0_i32 = arith.constant 0 : i32
    %c0_i32_0 = arith.constant 0 : i32
    %c0_i32_1 = arith.constant 0 : i32
    return %arg0, %c0_i32, %c0_i32_0 : i32, i32, i32
  }
  func.func @transform_2(%arg0: i32) -> (i32, i32, i32) {
    %c0_i32 = arith.constant 0 : i32
    %c0_i32_0 = arith.constant 0 : i32
    %c0_i32_1 = arith.constant 0 : i32
    return %arg0, %c0_i32, %c0_i32_0 : i32, i32, i32
  }
  func.func @transform_3(%arg0: i32) -> (i32, i32, i32) {
    %c0_i32 = arith.constant 0 : i32
    %c0_i32_0 = arith.constant 0 : i32
    %c0_i32_1 = arith.constant 0 : i32
    return %arg0, %c0_i32, %c0_i32_0 : i32, i32, i32
  }
  func.func @transform_4(%arg0: i32) -> (i32, i32, i32) {
    %c0_i32 = arith.constant 0 : i32
    %c0_i32_0 = arith.constant 0 : i32
    %c0_i32_1 = arith.constant 0 : i32
    return %arg0, %c0_i32, %c0_i32_0 : i32, i32, i32
  }
  func.func @transform_5(%arg0: i32) -> (i32, i32) {
    %c0_i32 = arith.constant 0 : i32
    %c0_i32_0 = arith.constant 0 : i32
    %c0_i32_1 = arith.constant 0 : i32
    return %c0_i32, %c0_i32_0 : i32, i32
  }
  func.func @transform_6(%arg0: i32) -> (i32, i32) {
    %c0_i32 = arith.constant 0 : i32
    %c0_i32_0 = arith.constant 0 : i32
    %c0_i32_1 = arith.constant 0 : i32
    return %c0_i32, %c0_i32_0 : i32, i32
  }
  func.func @transform_7(%arg0: i32) -> (i32, i32) {
    %c0_i32 = arith.constant 0 : i32
    %c0_i32_0 = arith.constant 0 : i32
    %c0_i32_1 = arith.constant 0 : i32
    return %c0_i32, %c0_i32_0 : i32, i32
  }
  func.func @transform_8(%arg0: i32) -> (i32, i32) {
    %c0_i32 = arith.constant 0 : i32
    %c0_i32_0 = arith.constant 0 : i32
    %c0_i32_1 = arith.constant 0 : i32
    return %c0_i32, %c0_i32_0 : i32, i32
  }
  func.func @transform_9(%arg0: i32) -> (i32, i32, i32) {
    %c0_i32 = arith.constant 0 : i32
    %c0_i32_0 = arith.constant 0 : i32
    %c0_i32_1 = arith.constant 0 : i32
    return %arg0, %c0_i32, %c0_i32_0 : i32, i32, i32
  }
}

</mosaic_0001>

<llo_original>
// kernel: _lambda_.28
$region0: #{_lambda_.28}
  #allocation0 [shape = 'u32[]', space=smem, size = 0x4, offset = 0x4, fixed_abs, tag = 'smem constant byte address 0x4 - core index']
  #allocation1 [shape = 'u32[144,128]{1,0:T(1,128)}', space=vmem, size = 0x12000, scoped, tag = 'internal scratch']
  %s0 = inlined_call_operand.vmem [shape: bf16[16,32], index: 0, kind: input, shape index: {}]
  %s1 = inlined_call_operand.vmem [shape: bf16[32,64], index: 1, kind: input, shape index: {}]
  %s2 = inlined_call_operand.vmem [shape: f32[1,64], index: 2, kind: input, shape index: {}]
  %s3 = inlined_call_operand.vmem [shape: bf16[16,64], index: 3, kind: output, shape index: {}]
  %s4 = sld [smem:[#allocation0]]
  $region22: #{_lambda_.28} parent=0
    _
  %s6 = ssub.s32 1, %s4
  %s7 = scalar_select 0, %s6, %s4
  // Predicated region
  $region2: #{_lambda_.28} parent=0 // pred_check
    _
  $region3: #{_lambda_.28} parent=0 // pred_check_branch
    %9 = sbr.rel (0) target = $region5
  $region4: #{_lambda_.28} parent=0 // pred_region
    _
  $region5: #{_lambda_.28} parent=0 // pred_fallthru
    _
  // Predicated region
  $region6: #{_lambda_.28} parent=0 // pred_check
    _
  $region7: #{_lambda_.28} parent=0 // pred_check_branch
    %11 = sbr.rel (0) target = $region9
  $region8: #{_lambda_.28} parent=0 // pred_region
    _
  $region9: #{_lambda_.28} parent=0 // pred_fallthru
    _
  // Predicated region
  $region10: #{_lambda_.28} parent=0 // pred_check
    _
  $region11: #{_lambda_.28} parent=0 // pred_check_branch
    %13 = sbr.rel (0) target = $region13
  $region12: #{_lambda_.28} parent=0 // pred_region
    _
  $region13: #{_lambda_.28} parent=0 // pred_fallthru
    _
  %v15 = vld [vmem:[%s0] sm:$0xf]
  %v16 = vld [vmem:[%s0 + $0x4] sm:$0xf]
  %v17 = vld [vmem:[%s1] sm:$0xf]
  %v18 = vld [vmem:[%s1 + $0x4] sm:$0xf]
  %v19 = vld [vmem:[%s1 + $0x8] sm:$0xf]
  %v20 = vld [vmem:[%s1 + $0xc] sm:$0xf]
  %v21 = vld [vmem:[%s2] sm:$0x1]
  %v23 = vlaneseq
  %v24 = vshrl.u32 %v23, 7
  %v25 = vsub.s32 0, %v24
  %v26 = vrot.slane %v21, %v25
  %v30 = vunpack.c.l.b16 %v15
  %v31 = vunpack.c.l.b16 %v16
  %v32 = vpack.c.b16 %v31, %v30
  %v37 = vunpack.c.l.b16 %v17
  %v38 = vunpack.c.l.b16 %v18
  %v39 = vunpack.c.l.b16 %v19
  %v40 = vunpack.c.l.b16 %v20
  %v41 = vpack.c.b16 %v38, %v37
  %v42 = vpack.c.b16 %v40, %v39
  %vm45 = vcmask 261120
  %v47 = vsel %vm45, %v32, 0
  %49 = vmatprep.subr.bf16.mxu0 0
  %50 = vmatpush1.bf16.msra.mxu0 %v41
  %51 = vmatprep.subr.bf16.mxu0 0
  %52 = vmatpush1.bf16.msra.mxu0 %v42
  %53 = vmatprep.subr.bf16.mxu0 0
  %54 = vmatpush1.bf16.msra.mxu0 0
  %55 = vmatprep.subr.bf16.mxu0 0
  %56 = vmatpush1.bf16.msra.mxu0 0
  %57 = vmatprep.subr.bf16.mxu0 0
  %58 = vmatpush1.bf16.msra.mxu0 0
  %59 = vmatprep.subr.bf16.mxu0 0
  %60 = vmatpush1.bf16.msra.mxu0 0
  %61 = vmatprep.subr.bf16.mxu0 0
  %62 = vmatpush1.bf16.msra.mxu0 0
  %63 = vmatprep.subr.bf16.mxu0 0
  %64 = vmatpush1.bf16.msra.mxu0 0
  %65 = vmatprep.subr.bf16.mxu0 0
  %66 = vmatpush1.bf16.msra.mxu0 0
  %67 = vmatprep.subr.bf16.mxu0 0
  %68 = vmatpush1.bf16.msra.mxu0 0
  %69 = vmatprep.subr.bf16.mxu0 0
  %70 = vmatpush1.bf16.msra.mxu0 0
  %71 = vmatprep.subr.bf16.mxu0 0
  %72 = vmatpush1.bf16.msra.mxu0 0
  %73 = vmatprep.subr.bf16.mxu0 0
  %74 = vmatpush1.bf16.msra.mxu0 0
  %75 = vmatprep.subr.bf16.mxu0 0
  %76 = vmatpush1.bf16.msra.mxu0 0
  %77 = vmatprep.subr.bf16.mxu0 0
  %78 = vmatpush1.bf16.msra.mxu0 0
  %79 = vmatprep.subr.bf16.mxu0 0
  %80 = vmatpush1.bf16.msra.mxu0 0
  %81 = vmatprep.mubr.bf16.mxu0 0
  %82 = vmatmul.mubr.bf16.gmra.mrb[0].mxu0 %v47
  %v83 = vpop.f32.mrb[0].mxu0
  %v84 = vadd.f32 %v26, %v83
  %v85 = vpop.f32.mrb[0].mxu0
  %v86 = vpop.f32.mrb[0].mxu0
  %v87 = vadd.f32 %v26, %v86
  %v88 = vpop.f32.mrb[0].mxu0
  %89 = vdwg.mxu0
  %v90 = vpack.c.bf16 %v87, %v84
  %v92 = vunpack.c.l.b16 %v90
  %v93 = vunpack.c.h.b16 %v90
  %v94 = vpack.c.b16 %v92, %v92
  %v95 = vpack.c.b16 %v93, %v93
  %vm98 = vcmask 519168
  %99 = vst.msk [vmem:[%s3] sm:$0xf] %vm98, %v94
  %100 = vst.msk [vmem:[%s3 + $0x4] sm:$0xf] %vm98, %v95
  // Predicated region
  $region14: #{_lambda_.28} parent=0 // pred_check
    _
  $region15: #{_lambda_.28} parent=0 // pred_check_branch
    %102 = sbr.rel (0) target = $region17
  $region16: #{_lambda_.28} parent=0 // pred_region
    _
  $region17: #{_lambda_.28} parent=0 // pred_fallthru
    _
  // Predicated region
  $region18: #{_lambda_.28} parent=0 // pred_check
    _
  $region19: #{_lambda_.28} parent=0 // pred_check_branch
    %104 = sbr.rel (0) target = $region21
  $region20: #{_lambda_.28} parent=0 // pred_region
    _
  $region21: #{_lambda_.28} parent=0 // pred_fallthru
    _

// kernel: _lambda_.19
$region0: #{_lambda_.19}
  #allocation0 [shape = 'u32[]', space=smem, size = 0x4, offset = 0x4, fixed_abs, tag = 'smem constant byte address 0x4 - core index']
  #allocation1 [shape = 'u32[144,128]{1,0:T(1,128)}', space=vmem, size = 0x12000, scoped, tag = 'internal scratch']
  %s0 = inlined_call_operand.vmem [shape: bf16[16,32], index: 0, kind: input, shape index: {}]
  %s1 = inlined_call_operand.vmem [shape: bf16[32,96], index: 1, kind: input, shape index: {}]
  %s2 = inlined_call_operand.vmem [shape: f32[1,96], index: 2, kind: input, shape index: {}]
  %s3 = inlined_call_operand.vmem [shape: bf16[16,32], index: 3, kind: output, shape index: {0}]
  %s4 = inlined_call_operand.vmem [shape: bf16[16,64], index: 4, kind: output, shape index: {1}]
  %5 = xla_tuple %s3, %s4
  %s6 = sld [smem:[#allocation0]]
  $region30: #{_lambda_.19} parent=0
    _
  %s8 = ssub.s32 1, %s6
  %s9 = scalar_select 0, %s8, %s6
  // Predicated region
  $region2: #{_lambda_.19} parent=0 // pred_check
    _
  $region3: #{_lambda_.19} parent=0 // pred_check_branch
    %11 = sbr.rel (0) target = $region5
  $region4: #{_lambda_.19} parent=0 // pred_region
    _
  $region5: #{_lambda_.19} parent=0 // pred_fallthru
    _
  // Predicated region
  $region6: #{_lambda_.19} parent=0 // pred_check
    _
  $region7: #{_lambda_.19} parent=0 // pred_check_branch
    %13 = sbr.rel (0) target = $region9
  $region8: #{_lambda_.19} parent=0 // pred_region
    _
  $region9: #{_lambda_.19} parent=0 // pred_fallthru
    _
  // Predicated region
  $region10: #{_lambda_.19} parent=0 // pred_check
    _
  $region11: #{_lambda_.19} parent=0 // pred_check_branch
    %15 = sbr.rel (0) target = $region13
  $region12: #{_lambda_.19} parent=0 // pred_region
    _
  $region13: #{_lambda_.19} parent=0 // pred_fallthru
    _
  %v17 = vld [vmem:[%s0] sm:$0xf]
  %v18 = vld [vmem:[%s0 + $0x4] sm:$0xf]
  %v19 = vld [vmem:[%s1] sm:$0xf]
  %v20 = vld [vmem:[%s1 + $0x4] sm:$0xf]
  %v21 = vld [vmem:[%s1 + $0x8] sm:$0xf]
  %v22 = vld [vmem:[%s1 + $0xc] sm:$0xf]
  %v23 = vld [vmem:[%s2] sm:$0x1]
  %v25 = vlaneseq
  %v26 = vshrl.u32 %v25, 7
  %v27 = vsub.s32 0, %v26
  %v28 = vrot.slane %v23, %v27
  %v32 = vunpack.c.l.b16 %v17
  %v33 = vunpack.c.l.b16 %v18
  %v34 = vpack.c.b16 %v33, %v32
  %v39 = vunpack.c.l.b16 %v19
  %v40 = vunpack.c.l.b16 %v20
  %v41 = vunpack.c.l.b16 %v21
  %v42 = vunpack.c.l.b16 %v22
  %v43 = vpack.c.b16 %v40, %v39
  %v44 = vpack.c.b16 %v42, %v41
  %vm47 = vcmask 261120
  %v49 = vsel %vm47, %v34, 0
  %51 = vmatprep.subr.bf16.mxu0 0
  %52 = vmatpush1.bf16.msra.mxu0 %v43
  %53 = vmatprep.subr.bf16.mxu0 0
  %54 = vmatpush1.bf16.msra.mxu0 %v44
  %55 = vmatprep.subr.bf16.mxu0 0
  %56 = vmatpush1.bf16.msra.mxu0 0
  %57 = vmatprep.subr.bf16.mxu0 0
  %58 = vmatpush1.bf16.msra.mxu0 0
  %59 = vmatprep.subr.bf16.mxu0 0
  %60 = vmatpush1.bf16.msra.mxu0 0
  %61 = vmatprep.subr.bf16.mxu0 0
  %62 = vmatpush1.bf16.msra.mxu0 0
  %63 = vmatprep.subr.bf16.mxu0 0
  %64 = vmatpush1.bf16.msra.mxu0 0
  %65 = vmatprep.subr.bf16.mxu0 0
  %66 = vmatpush1.bf16.msra.mxu0 0
  %67 = vmatprep.subr.bf16.mxu0 0
  %68 = vmatpush1.bf16.msra.mxu0 0
  %69 = vmatprep.subr.bf16.mxu0 0
  %70 = vmatpush1.bf16.msra.mxu0 0
  %71 = vmatprep.subr.bf16.mxu0 0
  %72 = vmatpush1.bf16.msra.mxu0 0
  %73 = vmatprep.subr.bf16.mxu0 0
  %74 = vmatpush1.bf16.msra.mxu0 0
  %75 = vmatprep.subr.bf16.mxu0 0
  %76 = vmatpush1.bf16.msra.mxu0 0
  %77 = vmatprep.subr.bf16.mxu0 0
  %78 = vmatpush1.bf16.msra.mxu0 0
  %79 = vmatprep.subr.bf16.mxu0 0
  %80 = vmatpush1.bf16.msra.mxu0 0
  %81 = vmatprep.subr.bf16.mxu0 0
  %82 = vmatpush1.bf16.msra.mxu0 0
  %83 = vmatprep.mubr.bf16.mxu0 0
  %84 = vmatmul.mubr.bf16.gmra.mrb[0].mxu0 %v49
  %v85 = vpop.f32.mrb[0].mxu0
  %v86 = vadd.f32 %v28, %v85
  %v87 = vpop.f32.mrb[0].mxu0
  %v88 = vpop.f32.mrb[0].mxu0
  %v89 = vadd.f32 %v28, %v88
  %v90 = vpop.f32.mrb[0].mxu0
  %91 = vdwg.mxu0
  %v92 = vpack.c.bf16 %v89, %v86
  %v94 = vunpack.c.l.b16 %v92
  %v95 = vunpack.c.h.b16 %v92
  %v96 = vpack.c.b16 %v94, %v94
  %v97 = vpack.c.b16 %v95, %v95
  %vm100 = vcmask 257024
  %101 = vst.msk [vmem:[%s3] sm:$0xf] %vm100, %v96
  %102 = vst.msk [vmem:[%s3 + $0x4] sm:$0xf] %vm100, %v97
  %103 = vrot.lane.b32.xlu0 %v96, 96
  %v104 = vpop.permute.xlu0 %103
  %105 = vrot.lane.b32.xlu0 %v97, 96
  %v106 = vpop.permute.xlu0 %105
  %vm109 = vcmask 519168
  %110 = vst.msk [vmem:[%s4] sm:$0xf] %vm109, %v104
  %111 = vst.msk [vmem:[%s4 + $0x4] sm:$0xf] %vm109, %v106
  // Predicated region
  $region14: #{_lambda_.19} parent=0 // pred_check
    _
  $region15: #{_lambda_.19} parent=0 // pred_check_branch
    %113 = sbr.rel (0) target = $region17
  $region16: #{_lambda_.19} parent=0 // pred_region
    _
  $region17: #{_lambda_.19} parent=0 // pred_fallthru
    _
  // Predicated region
  $region18: #{_lambda_.19} parent=0 // pred_check
    _
  $region19: #{_lambda_.19} parent=0 // pred_check_branch
    %115 = sbr.rel (0) target = $region21
  $region20: #{_lambda_.19} parent=0 // pred_region
    _
  $region21: #{_lambda_.19} parent=0 // pred_fallthru
    _
  // Predicated region
  $region22: #{_lambda_.19} parent=0 // pred_check
    _
  $region23: #{_lambda_.19} parent=0 // pred_check_branch
    %117 = sbr.rel (0) target = $region25
  $region24: #{_lambda_.19} parent=0 // pred_region
    _
  $region25: #{_lambda_.19} parent=0 // pred_fallthru
    _
  // Predicated region
  $region26: #{_lambda_.19} parent=0 // pred_check
    _
  $region27: #{_lambda_.19} parent=0 // pred_check_branch
    %119 = sbr.rel (0) target = $region29
  $region28: #{_lambda_.19} parent=0 // pred_region
    _
  $region29: #{_lambda_.19} parent=0 // pred_fallthru
    _

// kernel: _lambda_.21
$region0: #{_lambda_.21}
  #allocation0 [shape = 'u32[]', space=smem, size = 0x4, offset = 0x4, fixed_abs, tag = 'smem constant byte address 0x4 - core index']
  #allocation1 [shape = 'u32[144,128]{1,0:T(1,128)}', space=vmem, size = 0x12000, scoped, tag = 'internal scratch']
  %s0 = inlined_call_operand.vmem [shape: bf16[16,32], index: 0, kind: input, shape index: {}]
  %s1 = inlined_call_operand.vmem [shape: bf16[32,64], index: 1, kind: input, shape index: {}]
  %s2 = inlined_call_operand.vmem [shape: f32[1,64], index: 2, kind: input, shape index: {}]
  %s3 = inlined_call_operand.vmem [shape: bf16[64,32], index: 3, kind: input, shape index: {}]
  %s4 = inlined_call_operand.vmem [shape: f32[1,32], index: 4, kind: input, shape index: {}]
  %s5 = inlined_call_operand.vmem [shape: f32[1,32], index: 5, kind: input, shape index: {}]
  %s6 = inlined_call_operand.vmem [shape: f32[1,32], index: 6, kind: input, shape index: {}]
  %s7 = inlined_call_operand.vmem [shape: bf16[16,32], index: 7, kind: output, shape index: {}]
  %s8 = sld [smem:[#allocation0]]
  $region38: #{_lambda_.21} parent=0
    _
  %s10 = ssub.s32 1, %s8
  %s11 = scalar_select 0, %s10, %s8
  // Predicated region
  $region2: #{_lambda_.21} parent=0 // pred_check
    _
  $region3: #{_lambda_.21} parent=0 // pred_check_branch
    %13 = sbr.rel (0) target = $region5
  $region4: #{_lambda_.21} parent=0 // pred_region
    _
  $region5: #{_lambda_.21} parent=0 // pred_fallthru
    _
  // Predicated region
  $region6: #{_lambda_.21} parent=0 // pred_check
    _
  $region7: #{_lambda_.21} parent=0 // pred_check_branch
    %15 = sbr.rel (0) target = $region9
  $region8: #{_lambda_.21} parent=0 // pred_region
    _
  $region9: #{_lambda_.21} parent=0 // pred_fallthru
    _
  // Predicated region
  $region10: #{_lambda_.21} parent=0 // pred_check
    _
  $region11: #{_lambda_.21} parent=0 // pred_check_branch
    %17 = sbr.rel (0) target = $region13
  $region12: #{_lambda_.21} parent=0 // pred_region
    _
  $region13: #{_lambda_.21} parent=0 // pred_fallthru
    _
  // Predicated region
  $region14: #{_lambda_.21} parent=0 // pred_check
    _
  $region15: #{_lambda_.21} parent=0 // pred_check_branch
    %19 = sbr.rel (0) target = $region17
  $region16: #{_lambda_.21} parent=0 // pred_region
    _
  $region17: #{_lambda_.21} parent=0 // pred_fallthru
    _
  // Predicated region
  $region18: #{_lambda_.21} parent=0 // pred_check
    _
  $region19: #{_lambda_.21} parent=0 // pred_check_branch
    %21 = sbr.rel (0) target = $region21
  $region20: #{_lambda_.21} parent=0 // pred_region
    _
  $region21: #{_lambda_.21} parent=0 // pred_fallthru
    _
  // Predicated region
  $region22: #{_lambda_.21} parent=0 // pred_check
    _
  $region23: #{_lambda_.21} parent=0 // pred_check_branch
    %23 = sbr.rel (0) target = $region25
  $region24: #{_lambda_.21} parent=0 // pred_region
    _
  $region25: #{_lambda_.21} parent=0 // pred_fallthru
    _
  // Predicated region
  $region26: #{_lambda_.21} parent=0 // pred_check
    _
  $region27: #{_lambda_.21} parent=0 // pred_check_branch
    %25 = sbr.rel (0) target = $region29
  $region28: #{_lambda_.21} parent=0 // pred_region
    _
  $region29: #{_lambda_.21} parent=0 // pred_fallthru
    _
  %v27 = vld [vmem:[%s0] sm:$0xf]
  %v28 = vld [vmem:[%s0 + $0x4] sm:$0xf]
  %v29 = vld [vmem:[%s1] sm:$0xf]
  %v30 = vld [vmem:[%s1 + $0x4] sm:$0xf]
  %v31 = vld [vmem:[%s1 + $0x8] sm:$0xf]
  %v32 = vld [vmem:[%s1 + $0xc] sm:$0xf]
  %v33 = vld [vmem:[%s2] sm:$0x1]
  %v35 = vlaneseq
  %v36 = vshrl.u32 %v35, 7
  %v37 = vsub.s32 0, %v36
  %v38 = vrot.slane %v33, %v37
  %v42 = vunpack.c.l.b16 %v27
  %v43 = vunpack.c.l.b16 %v28
  %v44 = vpack.c.b16 %v43, %v42
  %v49 = vunpack.c.l.b16 %v29
  %v50 = vunpack.c.l.b16 %v30
  %v51 = vunpack.c.l.b16 %v31
  %v52 = vunpack.c.l.b16 %v32
  %v53 = vpack.c.b16 %v50, %v49
  %v54 = vpack.c.b16 %v52, %v51
  %vm57 = vcmask 261120
  %v59 = vsel %vm57, %v44, 0
  %61 = vmatprep.subr.bf16.mxu0 0
  %62 = vmatpush1.bf16.msra.mxu0 %v53
  %63 = vmatprep.subr.bf16.mxu0 0
  %64 = vmatpush1.bf16.msra.mxu0 %v54
  %65 = vmatprep.subr.bf16.mxu0 0
  %66 = vmatpush1.bf16.msra.mxu0 0
  %67 = vmatprep.subr.bf16.mxu0 0
  %68 = vmatpush1.bf16.msra.mxu0 0
  %69 = vmatprep.subr.bf16.mxu0 0
  %70 = vmatpush1.bf16.msra.mxu0 0
  %71 = vmatprep.subr.bf16.mxu0 0
  %72 = vmatpush1.bf16.msra.mxu0 0
  %73 = vmatprep.subr.bf16.mxu0 0
  %74 = vmatpush1.bf16.msra.mxu0 0
  %75 = vmatprep.subr.bf16.mxu0 0
  %76 = vmatpush1.bf16.msra.mxu0 0
  %77 = vmatprep.subr.bf16.mxu0 0
  %78 = vmatpush1.bf16.msra.mxu0 0
  %79 = vmatprep.subr.bf16.mxu0 0
  %80 = vmatpush1.bf16.msra.mxu0 0
  %81 = vmatprep.subr.bf16.mxu0 0
  %82 = vmatpush1.bf16.msra.mxu0 0
  %83 = vmatprep.subr.bf16.mxu0 0
  %84 = vmatpush1.bf16.msra.mxu0 0
  %85 = vmatprep.subr.bf16.mxu0 0
  %86 = vmatpush1.bf16.msra.mxu0 0
  %87 = vmatprep.subr.bf16.mxu0 0
  %88 = vmatpush1.bf16.msra.mxu0 0
  %89 = vmatprep.subr.bf16.mxu0 0
  %90 = vmatpush1.bf16.msra.mxu0 0
  %91 = vmatprep.subr.bf16.mxu0 0
  %92 = vmatpush1.bf16.msra.mxu0 0
  %93 = vmatprep.mubr.bf16.mxu0 0
  %94 = vmatmul.mubr.bf16.gmra.mrb[0].mxu0 %v59
  %v95 = vpop.f32.mrb[0].mxu0
  %v96 = vadd.f32 %v38, %v95
  %v97 = vpop.f32.mrb[0].mxu0
  %v98 = vpop.f32.mrb[0].mxu0
  %v99 = vadd.f32 %v38, %v98
  %v100 = vpop.f32.mrb[0].mxu0
  %101 = vdwg.mxu0
  %v102 = vmax.f32 %v96, 0.0
  %v103 = vmax.f32 %v99, 0.0
  %v104 = vpack.c.bf16 %v103, %v102
  %v105 = vld [vmem:[%s3] sm:$0xf]
  %v106 = vld [vmem:[%s3 + $0x4] sm:$0xf]
  %v107 = vld [vmem:[%s3 + $0x8] sm:$0xf]
  %v108 = vld [vmem:[%s3 + $0xc] sm:$0xf]
  %v109 = vld [vmem:[%s3 + $0x10] sm:$0xf]
  %v110 = vld [vmem:[%s3 + $0x14] sm:$0xf]
  %v111 = vld [vmem:[%s3 + $0x18] sm:$0xf]
  %v112 = vld [vmem:[%s3 + $0x1c] sm:$0xf]
  %v113 = vld [vmem:[%s4] sm:$0x1]
  %v115 = vlaneseq
  %v116 = vshrl.u32 %v115, 7
  %v117 = vsub.s32 0, %v116
  %v118 = vrot.slane %v113, %v117
  %v128 = vunpack.c.l.b16 %v105
  %v129 = vunpack.c.l.b16 %v106
  %v130 = vunpack.c.l.b16 %v107
  %v131 = vunpack.c.l.b16 %v108
  %v132 = vunpack.c.l.b16 %v109
  %v133 = vunpack.c.l.b16 %v110
  %v134 = vunpack.c.l.b16 %v111
  %v135 = vunpack.c.l.b16 %v112
  %v136 = vpack.c.b16 %v129, %v128
  %v137 = vpack.c.b16 %v131, %v130
  %v138 = vpack.c.b16 %v133, %v132
  %v139 = vpack.c.b16 %v135, %v134
  %vm144 = vcmask 523264
  %v146 = vsel %vm144, %v104, 0
  %148 = vmatprep.subr.bf16.mxu0 0
  %149 = vmatpush1.bf16.msra.mxu0 %v136
  %150 = vmatprep.subr.bf16.mxu0 0
  %151 = vmatpush1.bf16.msra.mxu0 %v137
  %152 = vmatprep.subr.bf16.mxu0 0
  %153 = vmatpush1.bf16.msra.mxu0 %v138
  %154 = vmatprep.subr.bf16.mxu0 0
  %155 = vmatpush1.bf16.msra.mxu0 %v139
  %156 = vmatprep.subr.bf16.mxu0 0
  %157 = vmatpush1.bf16.msra.mxu0 0
  %158 = vmatprep.subr.bf16.mxu0 0
  %159 = vmatpush1.bf16.msra.mxu0 0
  %160 = vmatprep.subr.bf16.mxu0 0
  %161 = vmatpush1.bf16.msra.mxu0 0
  %162 = vmatprep.subr.bf16.mxu0 0
  %163 = vmatpush1.bf16.msra.mxu0 0
  %164 = vmatprep.subr.bf16.mxu0 0
  %165 = vmatpush1.bf16.msra.mxu0 0
  %166 = vmatprep.subr.bf16.mxu0 0
  %167 = vmatpush1.bf16.msra.mxu0 0
  %168 = vmatprep.subr.bf16.mxu0 0
  %169 = vmatpush1.bf16.msra.mxu0 0
  %170 = vmatprep.subr.bf16.mxu0 0
  %171 = vmatpush1.bf16.msra.mxu0 0
  %172 = vmatprep.subr.bf16.mxu0 0
  %173 = vmatpush1.bf16.msra.mxu0 0
  %174 = vmatprep.subr.bf16.mxu0 0
  %175 = vmatpush1.bf16.msra.mxu0 0
  %176 = vmatprep.subr.bf16.mxu0 0
  %177 = vmatpush1.bf16.msra.mxu0 0
  %178 = vmatprep.subr.bf16.mxu0 0
  %179 = vmatpush1.bf16.msra.mxu0 0
  %180 = vmatprep.mubr.bf16.mxu0 0
  %181 = vmatmul.mubr.bf16.gmra.mrb[0].mxu0 %v146
  %v182 = vpop.f32.mrb[0].mxu0
  %v183 = vadd.f32 %v118, %v182
  %v184 = vpop.f32.mrb[0].mxu0
  %v185 = vpop.f32.mrb[0].mxu0
  %v186 = vadd.f32 %v118, %v185
  %v187 = vpop.f32.mrb[0].mxu0
  %188 = vdwg.mxu0
  %v189 = vunpack.c.l.bf16 %v27
  %v190 = vunpack.c.l.bf16 %v28
  %v191 = vadd.f32 %v183, %v189
  %v192 = vadd.f32 %v186, %v190
  %v193 = vld [vmem:[%s5] sm:$0x1]
  %v194 = vld [vmem:[%s6] sm:$0x1]
  %v195 = vsel %vm57, %v191, 0.0
  %196 = vadd.xlane.f32.xlu0 %v195
  %v197 = vpop.xlane.xlu0 %196
  %v198 = vsel %vm57, %v192, 0.0
  %199 = vadd.xlane.f32.xlu0 %v198
  %v200 = vpop.xlane.xlu0 %199
  %v201 = vrcp.pop 32.0
  %v202 = vmul.f32 %v197, %v201
  %v203 = vmul.f32 %v200, %v201
  %v204 = vsub.f32 %v191, %v202
  %v205 = vsub.f32 %v192, %v203
  %v206 = vmul.f32 %v204, %v204
  %v207 = vmul.f32 %v205, %v205
  %v208 = vsel %vm57, %v206, 0.0
  %209 = vadd.xlane.f32.xlu0 %v208
  %v210 = vpop.xlane.xlu0 %209
  %v211 = vsel %vm57, %v207, 0.0
  %212 = vadd.xlane.f32.xlu0 %v211
  %v213 = vpop.xlane.xlu0 %212
  %v214 = vmul.f32 %v210, %v201
  %v215 = vmul.f32 %v213, %v201
  %v216 = vadd.f32 %v214, 1e-05
  %v217 = vadd.f32 %v215, 1e-05
  %v218 = vrsqrt.pop %v216
  %v219 = vrsqrt.pop %v217
  %v220 = vmul.f32 %v204, %v218
  %v221 = vmul.f32 %v205, %v219
  %v223 = vlaneseq
  %v224 = vshrl.u32 %v223, 7
  %v225 = vsub.s32 0, %v224
  %v226 = vrot.slane %v193, %v225
  %v228 = vmul.f32 %v220, %v226
  %v229 = vmul.f32 %v221, %v226
  %v231 = vlaneseq
  %v232 = vshrl.u32 %v231, 7
  %v233 = vsub.s32 0, %v232
  %v234 = vrot.slane %v194, %v233
  %v236 = vadd.f32 %v228, %v234
  %v237 = vadd.f32 %v229, %v234
  %v238 = vpack.c.bf16 %v237, %v236
  %v240 = vunpack.c.l.b16 %v238
  %v241 = vunpack.c.h.b16 %v238
  %v242 = vpack.c.b16 %v240, %v240
  %v243 = vpack.c.b16 %v241, %v241
  %vm246 = vcmask 257024
  %247 = vst.msk [vmem:[%s7] sm:$0xf] %vm246, %v242
  %248 = vst.msk [vmem:[%s7 + $0x4] sm:$0xf] %vm246, %v243
  // Predicated region
  $region30: #{_lambda_.21} parent=0 // pred_check
    _
  $region31: #{_lambda_.21} parent=0 // pred_check_branch
    %250 = sbr.rel (0) target = $region33
  $region32: #{_lambda_.21} parent=0 // pred_region
    _
  $region33: #{_lambda_.21} parent=0 // pred_fallthru
    _
  // Predicated region
  $region34: #{_lambda_.21} parent=0 // pred_check
    _
  $region35: #{_lambda_.21} parent=0 // pred_check_branch
    %252 = sbr.rel (0) target = $region37
  $region36: #{_lambda_.21} parent=0 // pred_region
    _
  $region37: #{_lambda_.21} parent=0 // pred_fallthru
    _

// kernel: _lambda_.20
$region0: #{_lambda_.20}
  #allocation0 [shape = 'u32[]', space=smem, size = 0x4, offset = 0x4, fixed_abs, tag = 'smem constant byte address 0x4 - core index']
  #allocation1 [shape = 'u32[144,128]{1,0:T(1,128)}', space=vmem, size = 0x12000, scoped, tag = 'internal scratch']
  %s0 = inlined_call_operand.vmem [shape: bf16[2,8,32], index: 0, kind: input, shape index: {}]
  %s1 = inlined_call_operand.vmem [shape: bf16[2,8,64], index: 1, kind: input, shape index: {}]
  %s2 = inlined_call_operand.vmem [shape: f32[2,8,1], index: 2, kind: input, shape index: {}]
  %s3 = inlined_call_operand.vmem [shape: f32[2,1,8], index: 3, kind: input, shape index: {}]
  %s4 = inlined_call_operand.vmem [shape: bf16[2,8,32], index: 4, kind: input, shape index: {}]
  %s5 = inlined_call_operand.vmem [shape: bf16[32,32], index: 5, kind: input, shape index: {}]
  %s6 = inlined_call_operand.vmem [shape: f32[1,32], index: 6, kind: input, shape index: {}]
  %s7 = inlined_call_operand.vmem [shape: f32[1,32], index: 7, kind: input, shape index: {}]
  %s8 = inlined_call_operand.vmem [shape: f32[1,32], index: 8, kind: input, shape index: {}]
  %s9 = inlined_call_operand.vmem [shape: bf16[2,8,32], index: 9, kind: output, shape index: {}]
  %s10 = sld [smem:[#allocation0]]
  $region69: #{_lambda_.20} parent=0
    _
  %s12 = ssub.s32 1, %s10
  %s13 = scalar_select 0, %s12, %s10
  loop: start=0, step=1, limit=4
  $region2: #{_lambda_.20} parent=0 // loop_pre_header
    _
  $region3: #{_lambda_.20} parent=0 // loop_header
    %s15 = sphi 0, %s19
    %p16 = scmp.ge.s32.totalorder %s15, 4
    %s25 = sphi 0, %s27
    %s28 = sphi 0, %s25
    %s29 = sphi 0, %s28
    %s45 = sphi 0, %s29
    %s51 = sphi 0, %s53
    %s54 = sphi 0, %s51
    %s55 = sphi 0, %s54
    %s71 = sphi 0, %s55
    %s77 = sphi 0, %s79
    %s80 = sphi 0, %s77
    %s81 = sphi 0, %s80
    %s97 = sphi 0, %s81
    %s103 = sphi 0, %s105
    %s106 = sphi 0, %s103
    %s107 = sphi 0, %s106
    %s123 = sphi 0, %s107
    %s129 = sphi 0, %s131
    %s132 = sphi 0, %s129
    %s133 = sphi 0, %s132
    %s149 = sphi 0, %s133
    %s153 = sphi 0, %s153
    %s155 = sphi 0, %s153
    %s156 = sphi 0, %s155
    %s170 = sphi 0, %s156
    %s174 = sphi 0, %s174
    %s176 = sphi 0, %s174
    %s177 = sphi 0, %s176
    %s191 = sphi 0, %s177
    %s195 = sphi 0, %s195
    %s197 = sphi 0, %s195
    %s198 = sphi 0, %s197
    %s212 = sphi 0, %s198
    %s216 = sphi 0, %s216
    %s218 = sphi 0, %s216
    %s219 = sphi 0, %s218
    %s233 = sphi 0, %s219
    %s239 = sphi 0, %s241
    %s242 = sphi 0, %s239
    %s243 = sphi 0, %s242
    %s259 = sphi 0, %s243
  $region4: #{_lambda_.20} parent=0 // loop_header_branch
    %18 = sbr.rel (%p16) target = $region8
  $region5: #{_lambda_.20} parent=0 // loop_body
    %s20 = ssub.s32 %s15, 1
    %s21 = ssub.s32 %s15, 2
    %s22 = sadd.s32 %s15, 1
    %s23 = ssub.s32 %s15, %s22
    %p24 = scmp.eq.s32.totalorder %s23, 0
    %s26 = sadd.s32 %s25, 1
    %s27 = scalar_select %p24, %s25, %s26
    %p30 = pneg %p24
    %p31 = scmp.eq.s32.totalorder %s15, 1
    %p32 = por %p30, %p31
    %p33 = scmp.ne.s32.totalorder %s25, %s28
    %p34 = scmp.eq.s32.totalorder %s15, 0
    %p35 = por %p33, %p34
    %p36 = scmp.ne.s32.totalorder %s25, %s28
    %p37 = scmp.eq.s32.totalorder %s20, 1
    %p38 = por %p36, %p37
    %p39 = scmp.ne.s32.totalorder %s28, %s29
    %p40 = scmp.eq.s32.totalorder %s20, 0
    %p41 = por %p39, %p40
    %p42 = scmp.ne.s32.totalorder %s28, %s29
    %p43 = scmp.eq.s32.totalorder %s21, 1
    %p44 = por %p42, %p43
    %p46 = scmp.ne.s32.totalorder %s29, %s45
    %p47 = scmp.eq.s32.totalorder %s21, 0
    %p48 = por %p46, %p47
    %s49 = ssub.s32 %s15, %s22
    %p50 = scmp.eq.s32.totalorder %s49, 0
    %s52 = sadd.s32 %s51, 1
    %s53 = scalar_select %p50, %s51, %s52
    %p56 = pneg %p50
    %p57 = scmp.eq.s32.totalorder %s15, 1
    %p58 = por %p56, %p57
    %p59 = scmp.ne.s32.totalorder %s51, %s54
    %p60 = scmp.eq.s32.totalorder %s15, 0
    %p61 = por %p59, %p60
    %p62 = scmp.ne.s32.totalorder %s51, %s54
    %p63 = scmp.eq.s32.totalorder %s20, 1
    %p64 = por %p62, %p63
    %p65 = scmp.ne.s32.totalorder %s54, %s55
    %p66 = scmp.eq.s32.totalorder %s20, 0
    %p67 = por %p65, %p66
    %p68 = scmp.ne.s32.totalorder %s54, %s55
    %p69 = scmp.eq.s32.totalorder %s21, 1
    %p70 = por %p68, %p69
    %p72 = scmp.ne.s32.totalorder %s55, %s71
    %p73 = scmp.eq.s32.totalorder %s21, 0
    %p74 = por %p72, %p73
    %s75 = ssub.s32 %s15, %s22
    %p76 = scmp.eq.s32.totalorder %s75, 0
    %s78 = sadd.s32 %s77, 1
    %s79 = scalar_select %p76, %s77, %s78
    %p82 = pneg %p76
    %p83 = scmp.eq.s32.totalorder %s15, 1
    %p84 = por %p82, %p83
    %p85 = scmp.ne.s32.totalorder %s77, %s80
    %p86 = scmp.eq.s32.totalorder %s15, 0
    %p87 = por %p85, %p86
    %p88 = scmp.ne.s32.totalorder %s77, %s80
    %p89 = scmp.eq.s32.totalorder %s20, 1
    %p90 = por %p88, %p89
    %p91 = scmp.ne.s32.totalorder %s80, %s81
    %p92 = scmp.eq.s32.totalorder %s20, 0
    %p93 = por %p91, %p92
    %p94 = scmp.ne.s32.totalorder %s80, %s81
    %p95 = scmp.eq.s32.totalorder %s21, 1
    %p96 = por %p94, %p95
    %p98 = scmp.ne.s32.totalorder %s81, %s97
    %p99 = scmp.eq.s32.totalorder %s21, 0
    %p100 = por %p98, %p99
    %s101 = ssub.s32 %s15, %s22
    %p102 = scmp.eq.s32.totalorder %s101, 0
    %s104 = sadd.s32 %s103, 1
    %s105 = scalar_select %p102, %s103, %s104
    %p108 = pneg %p102
    %p109 = scmp.eq.s32.totalorder %s15, 1
    %p110 = por %p108, %p109
    %p111 = scmp.ne.s32.totalorder %s103, %s106
    %p112 = scmp.eq.s32.totalorder %s15, 0
    %p113 = por %p111, %p112
    %p114 = scmp.ne.s32.totalorder %s103, %s106
    %p115 = scmp.eq.s32.totalorder %s20, 1
    %p116 = por %p114, %p115
    %p117 = scmp.ne.s32.totalorder %s106, %s107
    %p118 = scmp.eq.s32.totalorder %s20, 0
    %p119 = por %p117, %p118
    %p120 = scmp.ne.s32.totalorder %s106, %s107
    %p121 = scmp.eq.s32.totalorder %s21, 1
    %p122 = por %p120, %p121
    %p124 = scmp.ne.s32.totalorder %s107, %s123
    %p125 = scmp.eq.s32.totalorder %s21, 0
    %p126 = por %p124, %p125
    %s127 = ssub.s32 %s15, %s22
    %p128 = scmp.eq.s32.totalorder %s127, 0
    %s130 = sadd.s32 %s129, 1
    %s131 = scalar_select %p128, %s129, %s130
    %p134 = pneg %p128
    %p135 = scmp.eq.s32.totalorder %s15, 1
    %p136 = por %p134, %p135
    %p137 = scmp.ne.s32.totalorder %s129, %s132
    %p138 = scmp.eq.s32.totalorder %s15, 0
    %p139 = por %p137, %p138
    %p140 = scmp.ne.s32.totalorder %s129, %s132
    %p141 = scmp.eq.s32.totalorder %s20, 1
    %p142 = por %p140, %p141
    %p143 = scmp.ne.s32.totalorder %s132, %s133
    %p144 = scmp.eq.s32.totalorder %s20, 0
    %p145 = por %p143, %p144
    %p146 = scmp.ne.s32.totalorder %s132, %s133
    %p147 = scmp.eq.s32.totalorder %s21, 1
    %p148 = por %p146, %p147
    %p150 = scmp.ne.s32.totalorder %s133, %s149
    %p151 = scmp.eq.s32.totalorder %s21, 0
    %p152 = por %p150, %p151
    %s154 = sadd.s32 %s153, 1
    %p157 = scmp.eq.s32.totalorder %s15, 1
    %p158 = scmp.ne.s32.totalorder %s153, %s155
    %p159 = scmp.eq.s32.totalorder %s15, 0
    %p160 = por %p158, %p159
    %p161 = scmp.ne.s32.totalorder %s153, %s155
    %p162 = scmp.eq.s32.totalorder %s20, 1
    %p163 = por %p161, %p162
    %p164 = scmp.ne.s32.totalorder %s155, %s156
    %p165 = scmp.eq.s32.totalorder %s20, 0
    %p166 = por %p164, %p165
    %p167 = scmp.ne.s32.totalorder %s155, %s156
    %p168 = scmp.eq.s32.totalorder %s21, 1
    %p169 = por %p167, %p168
    %p171 = scmp.ne.s32.totalorder %s156, %s170
    %p172 = scmp.eq.s32.totalorder %s21, 0
    %p173 = por %p171, %p172
    %s175 = sadd.s32 %s174, 1
    %p178 = scmp.eq.s32.totalorder %s15, 1
    %p179 = scmp.ne.s32.totalorder %s174, %s176
    %p180 = scmp.eq.s32.totalorder %s15, 0
    %p181 = por %p179, %p180
    %p182 = scmp.ne.s32.totalorder %s174, %s176
    %p183 = scmp.eq.s32.totalorder %s20, 1
    %p184 = por %p182, %p183
    %p185 = scmp.ne.s32.totalorder %s176, %s177
    %p186 = scmp.eq.s32.totalorder %s20, 0
    %p187 = por %p185, %p186
    %p188 = scmp.ne.s32.totalorder %s176, %s177
    %p189 = scmp.eq.s32.totalorder %s21, 1
    %p190 = por %p188, %p189
    %p192 = scmp.ne.s32.totalorder %s177, %s191
    %p193 = scmp.eq.s32.totalorder %s21, 0
    %p194 = por %p192, %p193
    %s196 = sadd.s32 %s195, 1
    %p199 = scmp.eq.s32.totalorder %s15, 1
    %p200 = scmp.ne.s32.totalorder %s195, %s197
    %p201 = scmp.eq.s32.totalorder %s15, 0
    %p202 = por %p200, %p201
    %p203 = scmp.ne.s32.totalorder %s195, %s197
    %p204 = scmp.eq.s32.totalorder %s20, 1
    %p205 = por %p203, %p204
    %p206 = scmp.ne.s32.totalorder %s197, %s198
    %p207 = scmp.eq.s32.totalorder %s20, 0
    %p208 = por %p206, %p207
    %p209 = scmp.ne.s32.totalorder %s197, %s198
    %p210 = scmp.eq.s32.totalorder %s21, 1
    %p211 = por %p209, %p210
    %p213 = scmp.ne.s32.totalorder %s198, %s212
    %p214 = scmp.eq.s32.totalorder %s21, 0
    %p215 = por %p213, %p214
    %s217 = sadd.s32 %s216, 1
    %p220 = scmp.eq.s32.totalorder %s15, 1
    %p221 = scmp.ne.s32.totalorder %s216, %s218
    %p222 = scmp.eq.s32.totalorder %s15, 0
    %p223 = por %p221, %p222
    %p224 = scmp.ne.s32.totalorder %s216, %s218
    %p225 = scmp.eq.s32.totalorder %s20, 1
    %p226 = por %p224, %p225
    %p227 = scmp.ne.s32.totalorder %s218, %s219
    %p228 = scmp.eq.s32.totalorder %s20, 0
    %p229 = por %p227, %p228
    %p230 = scmp.ne.s32.totalorder %s218, %s219
    %p231 = scmp.eq.s32.totalorder %s21, 1
    %p232 = por %p230, %p231
    %p234 = scmp.ne.s32.totalorder %s219, %s233
    %p235 = scmp.eq.s32.totalorder %s21, 0
    %p236 = por %p234, %p235
    %s237 = ssub.s32 %s15, %s22
    %p238 = scmp.eq.s32.totalorder %s237, 0
    %s240 = sadd.s32 %s239, 1
    %s241 = scalar_select %p238, %s239, %s240
    %p244 = pneg %p238
    %p245 = scmp.eq.s32.totalorder %s15, 1
    %p246 = por %p244, %p245
    %p247 = scmp.ne.s32.totalorder %s239, %s242
    %p248 = scmp.eq.s32.totalorder %s15, 0
    %p249 = por %p247, %p248
    %p250 = scmp.ne.s32.totalorder %s239, %s242
    %p251 = scmp.eq.s32.totalorder %s20, 1
    %p252 = por %p250, %p251
    %p253 = scmp.ne.s32.totalorder %s242, %s243
    %p254 = scmp.eq.s32.totalorder %s20, 0
    %p255 = por %p253, %p254
    %p256 = scmp.ne.s32.totalorder %s242, %s243
    %p257 = scmp.eq.s32.totalorder %s21, 1
    %p258 = por %p256, %p257
    %p260 = scmp.ne.s32.totalorder %s243, %s259
    %p261 = scmp.eq.s32.totalorder %s21, 0
    %p262 = por %p260, %p261
    %p263 = scmp.le.s32.totalorder 1, %s15
    %p264 = scmp.lt.s32.totalorder %s15, 3
    %p265 = pnand %p263, %p264
    %p266 = pneg %p265
    // Predicated region
    $region9: #{_lambda_.20} parent=5 // pred_check
      _
    $region10: #{_lambda_.20} parent=5 // pred_check_branch
      %268 = sbr.rel (%p265) target = $region12
    $region11: #{_lambda_.20} parent=5 // pred_region
      %s269 = ssub.s32 %s15, 1
      // Predicated region
      $region13: #{_lambda_.20} parent=11 // pred_check
        %p270 = pneg %p166
      $region14: #{_lambda_.20} parent=11 // pred_check_branch
        %272 = sbr.rel (%p270) target = $region16
      $region15: #{_lambda_.20} parent=11 // pred_region
        _
      $region16: #{_lambda_.20} parent=11 // pred_fallthru
        _
      // Predicated region
      $region17: #{_lambda_.20} parent=11 // pred_check
        %p273 = pneg %p187
      $region18: #{_lambda_.20} parent=11 // pred_check_branch
        %275 = sbr.rel (%p273) target = $region20
      $region19: #{_lambda_.20} parent=11 // pred_region
        _
      $region20: #{_lambda_.20} parent=11 // pred_fallthru
        _
      // Predicated region
      $region21: #{_lambda_.20} parent=11 // pred_check
        %p276 = pneg %p208
      $region22: #{_lambda_.20} parent=11 // pred_check_branch
        %278 = sbr.rel (%p276) target = $region24
      $region23: #{_lambda_.20} parent=11 // pred_region
        _
      $region24: #{_lambda_.20} parent=11 // pred_fallthru
        _
      // Predicated region
      $region25: #{_lambda_.20} parent=11 // pred_check
        %p279 = pneg %p229
      $region26: #{_lambda_.20} parent=11 // pred_check_branch
        %281 = sbr.rel (%p279) target = $region28
      $region27: #{_lambda_.20} parent=11 // pred_region
        _
      $region28: #{_lambda_.20} parent=11 // pred_fallthru
        _
    $region12: #{_lambda_.20} parent=5 // pred_fallthru
      _
    %p282 = scmp.lt.s32.totalorder %s15, 2
    // Predicated region
    $region29: #{_lambda_.20} parent=5 // pred_check
      %p283 = pneg %p282
    $region30: #{_lambda_.20} parent=5 // pred_check_branch
      %285 = sbr.rel (%p283) target = $region32
    $region31: #{_lambda_.20} parent=5 // pred_region
      // Predicated region
      $region33: #{_lambda_.20} parent=31 // pred_check
        %p286 = pneg %p35
      $region34: #{_lambda_.20} parent=31 // pred_check_branch
        %288 = sbr.rel (%p286) target = $region36
      $region35: #{_lambda_.20} parent=31 // pred_region
        %p289 = scmp.lt.s32.totalorder %s15, 1
        %s290 = scalar_select %p289, %s15, 1
        %s291 = smul.addr %s290, 4
        %s292 = scalar_lea.vmem %s0, %s291
      $region36: #{_lambda_.20} parent=31 // pred_fallthru
        _
      // Predicated region
      $region37: #{_lambda_.20} parent=31 // pred_check
        %p293 = pneg %p61
      $region38: #{_lambda_.20} parent=31 // pred_check_branch
        %295 = sbr.rel (%p293) target = $region40
      $region39: #{_lambda_.20} parent=31 // pred_region
        %p296 = scmp.lt.s32.totalorder %s15, 1
        %s297 = scalar_select %p296, %s15, 1
        %s298 = smul.addr %s297, 4
        %s299 = scalar_lea.vmem %s1, %s298
      $region40: #{_lambda_.20} parent=31 // pred_fallthru
        _
      // Predicated region
      $region41: #{_lambda_.20} parent=31 // pred_check
        %p300 = pneg %p87
      $region42: #{_lambda_.20} parent=31 // pred_check_branch
        %302 = sbr.rel (%p300) target = $region44
      $region43: #{_lambda_.20} parent=31 // pred_region
        %p303 = scmp.lt.s32.totalorder %s15, 1
        %s304 = scalar_select %p303, %s15, 1
        %s305 = smul.addr %s304, 8
        %s306 = scalar_lea.vmem %s2, %s305
      $region44: #{_lambda_.20} parent=31 // pred_fallthru
        _
      // Predicated region
      $region45: #{_lambda_.20} parent=31 // pred_check
        %p307 = pneg %p113
      $region46: #{_lambda_.20} parent=31 // pred_check_branch
        %309 = sbr.rel (%p307) target = $region48
      $region47: #{_lambda_.20} parent=31 // pred_region
        %p310 = scmp.lt.s32.totalorder %s15, 1
        %s311 = scalar_select %p310, %s15, 1
        %s312 = scalar_lea.vmem %s3, %s311
      $region48: #{_lambda_.20} parent=31 // pred_fallthru
        _
      // Predicated region
      $region49: #{_lambda_.20} parent=31 // pred_check
        %p313 = pneg %p139
      $region50: #{_lambda_.20} parent=31 // pred_check_branch
        %315 = sbr.rel (%p313) target = $region52
      $region51: #{_lambda_.20} parent=31 // pred_region
        %p316 = scmp.lt.s32.totalorder %s15, 1
        %s317 = scalar_select %p316, %s15, 1
        %s318 = smul.addr %s317, 4
        %s319 = scalar_lea.vmem %s4, %s318
      $region52: #{_lambda_.20} parent=31 // pred_fallthru
        _
    $region32: #{_lambda_.20} parent=5 // pred_fallthru
      _
    %p320 = scmp.le.s32.totalorder 1, %s15
    %p321 = scmp.lt.s32.totalorder %s15, 3
    %p322 = pnand %p320, %p321
    %p323 = pneg %p322
    // Predicated region
    $region53: #{_lambda_.20} parent=5 // pred_check
      _
    $region54: #{_lambda_.20} parent=5 // pred_check_branch
      %325 = sbr.rel (%p322) target = $region56
    $region55: #{_lambda_.20} parent=5 // pred_region
      %s326 = ssub.s32 %s15, 1
      %p327 = scmp.lt.s32.totalorder %s20, 1
      %s328 = scalar_select %p327, %s20, 1
      %s329 = smul.addr %s328, 4
      %s330 = scalar_lea.vmem %s0, %s329
      %p331 = pneg %p41
      %p332 = pneg %p38
      %p333 = scmp.lt.s32.totalorder %s20, 1
      %s334 = scalar_select %p333, %s20, 1
      %s335 = smul.addr %s334, 4
      %s336 = scalar_lea.vmem %s1, %s335
      %p337 = pneg %p67
      %p338 = pneg %p64
      %p339 = scmp.lt.s32.totalorder %s20, 1
      %s340 = scalar_select %p339, %s20, 1
      %s341 = smul.addr %s340, 8
      %s342 = scalar_lea.vmem %s2, %s341
      %p343 = pneg %p93
      %p344 = pneg %p90
      %p345 = scmp.lt.s32.totalorder %s20, 1
      %s346 = scalar_select %p345, %s20, 1
      %s347 = scalar_lea.vmem %s3, %s346
      %p348 = pneg %p119
      %p349 = pneg %p116
      %p350 = scmp.lt.s32.totalorder %s20, 1
      %s351 = scalar_select %p350, %s20, 1
      %s352 = smul.addr %s351, 4
      %s353 = scalar_lea.vmem %s4, %s352
      %p354 = pneg %p145
      %p355 = pneg %p142
      %p356 = pneg %p166
      %p357 = pneg %p163
      %p358 = pneg %p187
      %p359 = pneg %p184
      %p360 = pneg %p208
      %p361 = pneg %p205
      %p362 = pneg %p229
      %p363 = pneg %p226
      %p364 = pneg %p255
      %p365 = pneg %p252
      %p366 = scmp.lt.s32.totalorder %s20, 1
      %s367 = scalar_select %p366, %s20, 1
      %s368 = smul.addr %s367, 4
      %s369 = scalar_lea.vmem %s9, %s368
      %p370 = scmp.lt.s32.totalorder %s20, 1
      %s371 = scalar_select %p370, %s20, 1
      %s372 = smul.addr %s371, 4
      %s373 = scalar_lea.vmem %s0, %s372
      %p374 = scmp.lt.s32.totalorder %s20, 1
      %s375 = scalar_select %p374, %s20, 1
      %s376 = smul.addr %s375, 4
      %s377 = scalar_lea.vmem %s1, %s376
      %p378 = scmp.lt.s32.totalorder %s20, 1
      %s379 = scalar_select %p378, %s20, 1
      %s380 = smul.addr %s379, 8
      %s381 = scalar_lea.vmem %s2, %s380
      %p382 = scmp.lt.s32.totalorder %s20, 1
      %s383 = scalar_select %p382, %s20, 1
      %s384 = scalar_lea.vmem %s3, %s383
      %p385 = scmp.lt.s32.totalorder %s20, 1
      %s386 = scalar_select %p385, %s20, 1
      %s387 = smul.addr %s386, 4
      %s388 = scalar_lea.vmem %s4, %s387
      %p389 = scmp.lt.s32.totalorder %s20, 1
      %s390 = scalar_select %p389, %s20, 1
      %s391 = smul.addr %s390, 4
      %s392 = scalar_lea.vmem %s9, %s391
      %v394 = vld [vmem:[%s373] sm:$0xf]
      %v395 = vld [vmem:[%s377] sm:$0xf]
      %v396 = vld [vmem:[%s381] sm:$0xff]
      %v397 = vld [vmem:[%s384] sm:$0x1]
      %399 = vset.pattern.permute.xlu0 0
      %400 = vperm.xlu0 %399, %v396
      %v401 = vpop.permute.xlu0 %400
      %v404 = vlaneseq
      %v405 = vshrl.u32 %v404, 7
      %v406 = vsub.s32 0, %v405
      %v407 = vrot.slane %v397, %v406
      %v409 = vmul.f32 %v401, %v407
      %vm410 = vcmp.gt.f32.partialorder %v409, 0.0
      %v411 = vld [vmem:[%s5] sm:$0xf]
      %v412 = vld [vmem:[%s5 + $0x4] sm:$0xf]
      %v413 = vld [vmem:[%s5 + $0x8] sm:$0xf]
      %v414 = vld [vmem:[%s5 + $0xc] sm:$0xf]
      %vm415 = vcmask 64512
      %v417 = vsel %vm415, %v394, 0
      %v420 = vsel %vm415, %v395, 0
      %422 = vmatprep.subr.bf16.mxu0 0
      %423 = vmatpush1.bf16.xpose.msra.mxu0 %v420
      %424 = vmatprep.subr.bf16.mxu0 0
      %425 = vmatpush1.bf16.xpose.msra.mxu0 0
      %426 = vmatprep.subr.bf16.mxu0 0
      %427 = vmatpush1.bf16.xpose.msra.mxu0 0
      %428 = vmatprep.subr.bf16.mxu0 0
      %429 = vmatpush1.bf16.xpose.msra.mxu0 0
      %430 = vmatprep.subr.bf16.mxu0 0
      %431 = vmatpush1.bf16.xpose.msra.mxu0 0
      %432 = vmatprep.subr.bf16.mxu0 0
      %433 = vmatpush1.bf16.xpose.msra.mxu0 0
      %434 = vmatprep.subr.bf16.mxu0 0
      %435 = vmatpush1.bf16.xpose.msra.mxu0 0
      %436 = vmatprep.subr.bf16.mxu0 0
      %437 = vmatpush1.bf16.xpose.msra.mxu0 0
      %438 = vmatprep.subr.bf16.mxu0 0
      %439 = vmatpush1.bf16.xpose.msra.mxu0 0
      %440 = vmatprep.subr.bf16.mxu0 0
      %441 = vmatpush1.bf16.xpose.msra.mxu0 0
      %442 = vmatprep.subr.bf16.mxu0 0
      %443 = vmatpush1.bf16.xpose.msra.mxu0 0
      %444 = vmatprep.subr.bf16.mxu0 0
      %445 = vmatpush1.bf16.xpose.msra.mxu0 0
      %446 = vmatprep.subr.bf16.mxu0 0
      %447 = vmatpush1.bf16.xpose.msra.mxu0 0
      %448 = vmatprep.subr.bf16.mxu0 0
      %449 = vmatpush1.bf16.xpose.msra.mxu0 0
      %450 = vmatprep.subr.bf16.mxu0 0
      %451 = vmatpush1.bf16.xpose.msra.mxu0 0
      %452 = vmatprep.subr.bf16.mxu0 0
      %453 = vmatpush1.bf16.xpose.msra.mxu0 0
      %454 = vmatprep.mubr.bf16.mxu0 0
      %455 = vmatmul.mubr.bf16.gmra.mrb[0].mxu0 %v417
      %v456 = vpop.f32.mrb[0].mxu0
      %v457 = vadd.f32 0.0, %v456
      %v458 = vpop.f32.mrb[0].mxu0
      %v459 = vpop.f32.mrb[0].mxu0
      %v460 = vpop.f32.mrb[0].mxu0
      %461 = vdwg.mxu0
      %v462 = vmul.f32 %v457, 0.35355338
      %v463 = vsel %vm410, %v462, -10000.0
      %v464 = vsel %vm415, %v463, -inf
      %465 = vmax.xlane.f32.xlu0 %v464
      %v466 = vpop.xlane.xlu0 %465
      %v467 = vsub.f32 %v463, %v466
      %v468 = vmul.f32 %v467, 1.442695
      %v469 = vpow.pop %v468
      %v470 = vsel %vm415, %v469, 0.0
      %471 = vadd.xlane.f32.xlu0 %v470
      %v472 = vpop.xlane.xlu0 %471
      %v473 = vrcp.pop %v472
      %v474 = vmul.f32 %v469, %v473
      %v475 = vpack.c.bf16 %v474, %v474
      %v477 = vunpack.c.l.b16 %v395
      %v478 = vpack.c.b16 %v477, %v477
      %479 = vrot.lane.b32.xlu0 %v478, 96
      %v480 = vpop.permute.xlu0 %479
      %v482 = vsel %vm415, %v475, 0
      %vm484 = vcmask 1043456
      %v486 = vsel %vm484, %v480, 0
      %488 = vmatprep.subr.bf16.mxu0 0
      %489 = vmatpush1.bf16.msra.mxu0 %v486
      %490 = vmatprep.subr.bf16.mxu0 0
      %491 = vmatpush1.bf16.msra.mxu0 0
      %492 = vmatprep.subr.bf16.mxu0 0
      %493 = vmatpush1.bf16.msra.mxu0 0
      %494 = vmatprep.subr.bf16.mxu0 0
      %495 = vmatpush1.bf16.msra.mxu0 0
      %496 = vmatprep.subr.bf16.mxu0 0
      %497 = vmatpush1.bf16.msra.mxu0 0
      %498 = vmatprep.subr.bf16.mxu0 0
      %499 = vmatpush1.bf16.msra.mxu0 0
      %500 = vmatprep.subr.bf16.mxu0 0
      %501 = vmatpush1.bf16.msra.mxu0 0
      %502 = vmatprep.subr.bf16.mxu0 0
      %503 = vmatpush1.bf16.msra.mxu0 0
      %504 = vmatprep.subr.bf16.mxu0 0
      %505 = vmatpush1.bf16.msra.mxu0 0
      %506 = vmatprep.subr.bf16.mxu0 0
      %507 = vmatpush1.bf16.msra.mxu0 0
      %508 = vmatprep.subr.bf16.mxu0 0
      %509 = vmatpush1.bf16.msra.mxu0 0
      %510 = vmatprep.subr.bf16.mxu0 0
      %511 = vmatpush1.bf16.msra.mxu0 0
      %512 = vmatprep.subr.bf16.mxu0 0
      %513 = vmatpush1.bf16.msra.mxu0 0
      %514 = vmatprep.subr.bf16.mxu0 0
      %515 = vmatpush1.bf16.msra.mxu0 0
      %516 = vmatprep.subr.bf16.mxu0 0
      %517 = vmatpush1.bf16.msra.mxu0 0
      %518 = vmatprep.subr.bf16.mxu0 0
      %519 = vmatpush1.bf16.msra.mxu0 0
      %520 = vmatprep.mubr.bf16.mxu0 0
      %521 = vmatmul.mubr.bf16.gmra.mrb[0].mxu0 %v482
      %v522 = vpop.f32.mrb[0].mxu0
      %v523 = vadd.f32 0.0, %v522
      %v524 = vpop.f32.mrb[0].mxu0
      %v525 = vpop.f32.mrb[0].mxu0
      %v526 = vpop.f32.mrb[0].mxu0
      %527 = vdwg.mxu0
      %v528 = vpack.c.bf16 %v523, %v523
      %v530 = vunpack.c.l.b16 %v394
      %v531 = vpack.c.b16 %v530, %v530
      %532 = vrot.lane.b32.xlu0 %v531, 120
      %v533 = vpop.permute.xlu0 %532
      %534 = vrot.lane.b32.xlu0 %v478, 120
      %v535 = vpop.permute.xlu0 %534
      %v537 = vsel %vm415, %v533, 0
      %v540 = vsel %vm415, %v535, 0
      %542 = vmatprep.subr.bf16.mxu0 0
      %543 = vmatpush1.bf16.xpose.msra.mxu0 %v540
      %544 = vmatprep.subr.bf16.mxu0 0
      %545 = vmatpush1.bf16.xpose.msra.mxu0 0
      %546 = vmatprep.subr.bf16.mxu0 0
      %547 = vmatpush1.bf16.xpose.msra.mxu0 0
      %548 = vmatprep.subr.bf16.mxu0 0
      %549 = vmatpush1.bf16.xpose.msra.mxu0 0
      %550 = vmatprep.subr.bf16.mxu0 0
      %551 = vmatpush1.bf16.xpose.msra.mxu0 0
      %552 = vmatprep.subr.bf16.mxu0 0
      %553 = vmatpush1.bf16.xpose.msra.mxu0 0
      %554 = vmatprep.subr.bf16.mxu0 0
      %555 = vmatpush1.bf16.xpose.msra.mxu0 0
      %556 = vmatprep.subr.bf16.mxu0 0
      %557 = vmatpush1.bf16.xpose.msra.mxu0 0
      %558 = vmatprep.subr.bf16.mxu0 0
      %559 = vmatpush1.bf16.xpose.msra.mxu0 0
      %560 = vmatprep.subr.bf16.mxu0 0
      %561 = vmatpush1.bf16.xpose.msra.mxu0 0
      %562 = vmatprep.subr.bf16.mxu0 0
      %563 = vmatpush1.bf16.xpose.msra.mxu0 0
      %564 = vmatprep.subr.bf16.mxu0 0
      %565 = vmatpush1.bf16.xpose.msra.mxu0 0
      %566 = vmatprep.subr.bf16.mxu0 0
      %567 = vmatpush1.bf16.xpose.msra.mxu0 0
      %568 = vmatprep.subr.bf16.mxu0 0
      %569 = vmatpush1.bf16.xpose.msra.mxu0 0
      %570 = vmatprep.subr.bf16.mxu0 0
      %571 = vmatpush1.bf16.xpose.msra.mxu0 0
      %572 = vmatprep.subr.bf16.mxu0 0
      %573 = vmatpush1.bf16.xpose.msra.mxu0 0
      %574 = vmatprep.mubr.bf16.mxu0 0
      %575 = vmatmul.mubr.bf16.gmra.mrb[0].mxu0 %v537
      %v576 = vpop.f32.mrb[0].mxu0
      %v577 = vadd.f32 0.0, %v576
      %v578 = vpop.f32.mrb[0].mxu0
      %v579 = vpop.f32.mrb[0].mxu0
      %v580 = vpop.f32.mrb[0].mxu0
      %581 = vdwg.mxu0
      %v582 = vmul.f32 %v577, 0.35355338
      %v583 = vsel %vm410, %v582, -10000.0
      %v584 = vsel %vm415, %v583, -inf
      %585 = vmax.xlane.f32.xlu0 %v584
      %v586 = vpop.xlane.xlu0 %585
      %v587 = vsub.f32 %v583, %v586
      %v588 = vmul.f32 %v587, 1.442695
      %v589 = vpow.pop %v588
      %v590 = vsel %vm415, %v589, 0.0
      %591 = vadd.xlane.f32.xlu0 %v590
      %v592 = vpop.xlane.xlu0 %591
      %v593 = vrcp.pop %v592
      %v594 = vmul.f32 %v589, %v593
      %v595 = vpack.c.bf16 %v594, %v594
      %596 = vrot.lane.b32.xlu0 %v478, 88
      %v597 = vpop.permute.xlu0 %596
      %v599 = vsel %vm415, %v595, 0
      %v602 = vsel %vm484, %v597, 0
      %604 = vmatprep.subr.bf16.mxu0 0
      %605 = vmatpush1.bf16.msra.mxu0 %v602
      %606 = vmatprep.subr.bf16.mxu0 0
      %607 = vmatpush1.bf16.msra.mxu0 0
      %608 = vmatprep.subr.bf16.mxu0 0
      %609 = vmatpush1.bf16.msra.mxu0 0
      %610 = vmatprep.subr.bf16.mxu0 0
      %611 = vmatpush1.bf16.msra.mxu0 0
      %612 = vmatprep.subr.bf16.mxu0 0
      %613 = vmatpush1.bf16.msra.mxu0 0
      %614 = vmatprep.subr.bf16.mxu0 0
      %615 = vmatpush1.bf16.msra.mxu0 0
      %616 = vmatprep.subr.bf16.mxu0 0
      %617 = vmatpush1.bf16.msra.mxu0 0
      %618 = vmatprep.subr.bf16.mxu0 0
      %619 = vmatpush1.bf16.msra.mxu0 0
      %620 = vmatprep.subr.bf16.mxu0 0
      %621 = vmatpush1.bf16.msra.mxu0 0
      %622 = vmatprep.subr.bf16.mxu0 0
      %623 = vmatpush1.bf16.msra.mxu0 0
      %624 = vmatprep.subr.bf16.mxu0 0
      %625 = vmatpush1.bf16.msra.mxu0 0
      %626 = vmatprep.subr.bf16.mxu0 0
      %627 = vmatpush1.bf16.msra.mxu0 0
      %628 = vmatprep.subr.bf16.mxu0 0
      %629 = vmatpush1.bf16.msra.mxu0 0
      %630 = vmatprep.subr.bf16.mxu0 0
      %631 = vmatpush1.bf16.msra.mxu0 0
      %632 = vmatprep.subr.bf16.mxu0 0
      %633 = vmatpush1.bf16.msra.mxu0 0
      %634 = vmatprep.subr.bf16.mxu0 0
      %635 = vmatpush1.bf16.msra.mxu0 0
      %636 = vmatprep.mubr.bf16.mxu0 0
      %637 = vmatmul.mubr.bf16.gmra.mrb[0].mxu0 %v599
      %v638 = vpop.f32.mrb[0].mxu0
      %v639 = vadd.f32 0.0, %v638
      %v640 = vpop.f32.mrb[0].mxu0
      %v641 = vpop.f32.mrb[0].mxu0
      %v642 = vpop.f32.mrb[0].mxu0
      %643 = vdwg.mxu0
      %v644 = vpack.c.bf16 %v639, %v639
      %v646 = vsel %vm415, %v644, 0
      %v649 = vsel %vm484, %v412, 0
      %651 = vmatprep.subr.bf16.mxu0 0
      %652 = vmatpush1.bf16.msra.mxu0 %v649
      %653 = vmatprep.subr.bf16.mxu0 0
      %654 = vmatpush1.bf16.msra.mxu0 0
      %655 = vmatprep.subr.bf16.mxu0 0
      %656 = vmatpush1.bf16.msra.mxu0 0
      %657 = vmatprep.subr.bf16.mxu0 0
      %658 = vmatpush1.bf16.msra.mxu0 0
      %659 = vmatprep.subr.bf16.mxu0 0
      %660 = vmatpush1.bf16.msra.mxu0 0
      %661 = vmatprep.subr.bf16.mxu0 0
      %662 = vmatpush1.bf16.msra.mxu0 0
      %663 = vmatprep.subr.bf16.mxu0 0
      %664 = vmatpush1.bf16.msra.mxu0 0
      %665 = vmatprep.subr.bf16.mxu0 0
      %666 = vmatpush1.bf16.msra.mxu0 0
      %667 = vmatprep.subr.bf16.mxu0 0
      %668 = vmatpush1.bf16.msra.mxu0 0
      %669 = vmatprep.subr.bf16.mxu0 0
      %670 = vmatpush1.bf16.msra.mxu0 0
      %671 = vmatprep.subr.bf16.mxu0 0
      %672 = vmatpush1.bf16.msra.mxu0 0
      %673 = vmatprep.subr.bf16.mxu0 0
      %674 = vmatpush1.bf16.msra.mxu0 0
      %675 = vmatprep.subr.bf16.mxu0 0
      %676 = vmatpush1.bf16.msra.mxu0 0
      %677 = vmatprep.subr.bf16.mxu0 0
      %678 = vmatpush1.bf16.msra.mxu0 0
      %679 = vmatprep.subr.bf16.mxu0 0
      %680 = vmatpush1.bf16.msra.mxu0 0
      %681 = vmatprep.subr.bf16.mxu0 0
      %682 = vmatpush1.bf16.msra.mxu0 0
      %683 = vmatprep.mubr.bf16.mxu0 0
      %684 = vmatmul.mubr.bf16.gmra.mrb[0].mxu0 %v646
      %v685 = vpop.f32.mrb[0].mxu0
      %v686 = vadd.f32 0.0, %v685
      %v687 = vpop.f32.mrb[0].mxu0
      %v688 = vpop.f32.mrb[0].mxu0
      %v689 = vpop.f32.mrb[0].mxu0
      %690 = vdwg.mxu0
      %v692 = vsel %vm415, %v528, 0
      %v695 = vsel %vm484, %v411, 0
      %697 = vmatprep.subr.bf16.mxu0 0
      %698 = vmatpush1.bf16.msra.mxu0 %v695
      %699 = vmatprep.subr.bf16.mxu0 0
      %700 = vmatpush1.bf16.msra.mxu0 0
      %701 = vmatprep.subr.bf16.mxu0 0
      %702 = vmatpush1.bf16.msra.mxu0 0
      %703 = vmatprep.subr.bf16.mxu0 0
      %704 = vmatpush1.bf16.msra.mxu0 0
      %705 = vmatprep.subr.bf16.mxu0 0
      %706 = vmatpush1.bf16.msra.mxu0 0
      %707 = vmatprep.subr.bf16.mxu0 0
      %708 = vmatpush1.bf16.msra.mxu0 0
      %709 = vmatprep.subr.bf16.mxu0 0
      %710 = vmatpush1.bf16.msra.mxu0 0
      %711 = vmatprep.subr.bf16.mxu0 0
      %712 = vmatpush1.bf16.msra.mxu0 0
      %713 = vmatprep.subr.bf16.mxu0 0
      %714 = vmatpush1.bf16.msra.mxu0 0
      %715 = vmatprep.subr.bf16.mxu0 0
      %716 = vmatpush1.bf16.msra.mxu0 0
      %717 = vmatprep.subr.bf16.mxu0 0
      %718 = vmatpush1.bf16.msra.mxu0 0
      %719 = vmatprep.subr.bf16.mxu0 0
      %720 = vmatpush1.bf16.msra.mxu0 0
      %721 = vmatprep.subr.bf16.mxu0 0
      %722 = vmatpush1.bf16.msra.mxu0 0
      %723 = vmatprep.subr.bf16.mxu0 0
      %724 = vmatpush1.bf16.msra.mxu0 0
      %725 = vmatprep.subr.bf16.mxu0 0
      %726 = vmatpush1.bf16.msra.mxu0 0
      %727 = vmatprep.subr.bf16.mxu0 0
      %728 = vmatpush1.bf16.msra.mxu0 0
      %729 = vmatprep.mubr.bf16.mxu0 0
      %730 = vmatmul.mubr.bf16.gmra.mrb[0].mxu0 %v692
      %v731 = vpop.f32.mrb[0].mxu0
      %v732 = vadd.f32 %v686, %v731
      %v733 = vpop.f32.mrb[0].mxu0
      %v734 = vpop.f32.mrb[0].mxu0
      %v735 = vpop.f32.mrb[0].mxu0
      %736 = vdwg.mxu0
      %737 = vrot.lane.b32.xlu0 %v531, 112
      %v738 = vpop.permute.xlu0 %737
      %739 = vrot.lane.b32.xlu0 %v478, 112
      %v740 = vpop.permute.xlu0 %739
      %v742 = vsel %vm415, %v738, 0
      %v745 = vsel %vm415, %v740, 0
      %747 = vmatprep.subr.bf16.mxu0 0
      %748 = vmatpush1.bf16.xpose.msra.mxu0 %v745
      %749 = vmatprep.subr.bf16.mxu0 0
      %750 = vmatpush1.bf16.xpose.msra.mxu0 0
      %751 = vmatprep.subr.bf16.mxu0 0
      %752 = vmatpush1.bf16.xpose.msra.mxu0 0
      %753 = vmatprep.subr.bf16.mxu0 0
      %754 = vmatpush1.bf16.xpose.msra.mxu0 0
      %755 = vmatprep.subr.bf16.mxu0 0
      %756 = vmatpush1.bf16.xpose.msra.mxu0 0
      %757 = vmatprep.subr.bf16.mxu0 0
      %758 = vmatpush1.bf16.xpose.msra.mxu0 0
      %759 = vmatprep.subr.bf16.mxu0 0
      %760 = vmatpush1.bf16.xpose.msra.mxu0 0
      %761 = vmatprep.subr.bf16.mxu0 0
      %762 = vmatpush1.bf16.xpose.msra.mxu0 0
      %763 = vmatprep.subr.bf16.mxu0 0
      %764 = vmatpush1.bf16.xpose.msra.mxu0 0
      %765 = vmatprep.subr.bf16.mxu0 0
      %766 = vmatpush1.bf16.xpose.msra.mxu0 0
      %767 = vmatprep.subr.bf16.mxu0 0
      %768 = vmatpush1.bf16.xpose.msra.mxu0 0
      %769 = vmatprep.subr.bf16.mxu0 0
      %770 = vmatpush1.bf16.xpose.msra.mxu0 0
      %771 = vmatprep.subr.bf16.mxu0 0
      %772 = vmatpush1.bf16.xpose.msra.mxu0 0
      %773 = vmatprep.subr.bf16.mxu0 0
      %774 = vmatpush1.bf16.xpose.msra.mxu0 0
      %775 = vmatprep.subr.bf16.mxu0 0
      %776 = vmatpush1.bf16.xpose.msra.mxu0 0
      %777 = vmatprep.subr.bf16.mxu0 0
      %778 = vmatpush1.bf16.xpose.msra.mxu0 0
      %779 = vmatprep.mubr.bf16.mxu0 0
      %780 = vmatmul.mubr.bf16.gmra.mrb[0].mxu0 %v742
      %v781 = vpop.f32.mrb[0].mxu0
      %v782 = vadd.f32 0.0, %v781
      %v783 = vpop.f32.mrb[0].mxu0
      %v784 = vpop.f32.mrb[0].mxu0
      %v785 = vpop.f32.mrb[0].mxu0
      %786 = vdwg.mxu0
      %v787 = vmul.f32 %v782, 0.35355338
      %v788 = vsel %vm410, %v787, -10000.0
      %v789 = vsel %vm415, %v788, -inf
      %790 = vmax.xlane.f32.xlu0 %v789
      %v791 = vpop.xlane.xlu0 %790
      %v792 = vsub.f32 %v788, %v791
      %v793 = vmul.f32 %v792, 1.442695
      %v794 = vpow.pop %v793
      %v795 = vsel %vm415, %v794, 0.0
      %796 = vadd.xlane.f32.xlu0 %v795
      %v797 = vpop.xlane.xlu0 %796
      %v798 = vrcp.pop %v797
      %v799 = vmul.f32 %v794, %v798
      %v800 = vpack.c.bf16 %v799, %v799
      %801 = vrot.lane.b32.xlu0 %v478, 80
      %v802 = vpop.permute.xlu0 %801
      %v804 = vsel %vm415, %v800, 0
      %v807 = vsel %vm484, %v802, 0
      %809 = vmatprep.subr.bf16.mxu0 0
      %810 = vmatpush1.bf16.msra.mxu0 %v807
      %811 = vmatprep.subr.bf16.mxu0 0
      %812 = vmatpush1.bf16.msra.mxu0 0
      %813 = vmatprep.subr.bf16.mxu0 0
      %814 = vmatpush1.bf16.msra.mxu0 0
      %815 = vmatprep.subr.bf16.mxu0 0
      %816 = vmatpush1.bf16.msra.mxu0 0
      %817 = vmatprep.subr.bf16.mxu0 0
      %818 = vmatpush1.bf16.msra.mxu0 0
      %819 = vmatprep.subr.bf16.mxu0 0
      %820 = vmatpush1.bf16.msra.mxu0 0
      %821 = vmatprep.subr.bf16.mxu0 0
      %822 = vmatpush1.bf16.msra.mxu0 0
      %823 = vmatprep.subr.bf16.mxu0 0
      %824 = vmatpush1.bf16.msra.mxu0 0
      %825 = vmatprep.subr.bf16.mxu0 0
      %826 = vmatpush1.bf16.msra.mxu0 0
      %827 = vmatprep.subr.bf16.mxu0 0
      %828 = vmatpush1.bf16.msra.mxu0 0
      %829 = vmatprep.subr.bf16.mxu0 0
      %830 = vmatpush1.bf16.msra.mxu0 0
      %831 = vmatprep.subr.bf16.mxu0 0
      %832 = vmatpush1.bf16.msra.mxu0 0
      %833 = vmatprep.subr.bf16.mxu0 0
      %834 = vmatpush1.bf16.msra.mxu0 0
      %835 = vmatprep.subr.bf16.mxu0 0
      %836 = vmatpush1.bf16.msra.mxu0 0
      %837 = vmatprep.subr.bf16.mxu0 0
      %838 = vmatpush1.bf16.msra.mxu0 0
      %839 = vmatprep.subr.bf16.mxu0 0
      %840 = vmatpush1.bf16.msra.mxu0 0
      %841 = vmatprep.mubr.bf16.mxu0 0
      %842 = vmatmul.mubr.bf16.gmra.mrb[0].mxu0 %v804
      %v843 = vpop.f32.mrb[0].mxu0
      %v844 = vadd.f32 0.0, %v843
      %v845 = vpop.f32.mrb[0].mxu0
      %v846 = vpop.f32.mrb[0].mxu0
      %v847 = vpop.f32.mrb[0].mxu0
      %848 = vdwg.mxu0
      %v849 = vpack.c.bf16 %v844, %v844
      %v851 = vsel %vm415, %v849, 0
      %v854 = vsel %vm484, %v413, 0
      %856 = vmatprep.subr.bf16.mxu0 0
      %857 = vmatpush1.bf16.msra.mxu0 %v854
      %858 = vmatprep.subr.bf16.mxu0 0
      %859 = vmatpush1.bf16.msra.mxu0 0
      %860 = vmatprep.subr.bf16.mxu0 0
      %861 = vmatpush1.bf16.msra.mxu0 0
      %862 = vmatprep.subr.bf16.mxu0 0
      %863 = vmatpush1.bf16.msra.mxu0 0
      %864 = vmatprep.subr.bf16.mxu0 0
      %865 = vmatpush1.bf16.msra.mxu0 0
      %866 = vmatprep.subr.bf16.mxu0 0
      %867 = vmatpush1.bf16.msra.mxu0 0
      %868 = vmatprep.subr.bf16.mxu0 0
      %869 = vmatpush1.bf16.msra.mxu0 0
      %870 = vmatprep.subr.bf16.mxu0 0
      %871 = vmatpush1.bf16.msra.mxu0 0
      %872 = vmatprep.subr.bf16.mxu0 0
      %873 = vmatpush1.bf16.msra.mxu0 0
      %874 = vmatprep.subr.bf16.mxu0 0
      %875 = vmatpush1.bf16.msra.mxu0 0
      %876 = vmatprep.subr.bf16.mxu0 0
      %877 = vmatpush1.bf16.msra.mxu0 0
      %878 = vmatprep.subr.bf16.mxu0 0
      %879 = vmatpush1.bf16.msra.mxu0 0
      %880 = vmatprep.subr.bf16.mxu0 0
      %881 = vmatpush1.bf16.msra.mxu0 0
      %882 = vmatprep.subr.bf16.mxu0 0
      %883 = vmatpush1.bf16.msra.mxu0 0
      %884 = vmatprep.subr.bf16.mxu0 0
      %885 = vmatpush1.bf16.msra.mxu0 0
      %886 = vmatprep.subr.bf16.mxu0 0
      %887 = vmatpush1.bf16.msra.mxu0 0
      %888 = vmatprep.mubr.bf16.mxu0 0
      %889 = vmatmul.mubr.bf16.gmra.mrb[0].mxu0 %v851
      %v890 = vpop.f32.mrb[0].mxu0
      %v891 = vadd.f32 0.0, %v890
      %v892 = vpop.f32.mrb[0].mxu0
      %v893 = vpop.f32.mrb[0].mxu0
      %v894 = vpop.f32.mrb[0].mxu0
      %895 = vdwg.mxu0
      %v896 = vadd.f32 %v732, %v891
      %897 = vrot.lane.b32.xlu0 %v531, 104
      %v898 = vpop.permute.xlu0 %897
      %899 = vrot.lane.b32.xlu0 %v478, 104
      %v900 = vpop.permute.xlu0 %899
      %v902 = vsel %vm415, %v898, 0
      %v905 = vsel %vm415, %v900, 0
      %907 = vmatprep.subr.bf16.mxu0 0
      %908 = vmatpush1.bf16.xpose.msra.mxu0 %v905
      %909 = vmatprep.subr.bf16.mxu0 0
      %910 = vmatpush1.bf16.xpose.msra.mxu0 0
      %911 = vmatprep.subr.bf16.mxu0 0
      %912 = vmatpush1.bf16.xpose.msra.mxu0 0
      %913 = vmatprep.subr.bf16.mxu0 0
      %914 = vmatpush1.bf16.xpose.msra.mxu0 0
      %915 = vmatprep.subr.bf16.mxu0 0
      %916 = vmatpush1.bf16.xpose.msra.mxu0 0
      %917 = vmatprep.subr.bf16.mxu0 0
      %918 = vmatpush1.bf16.xpose.msra.mxu0 0
      %919 = vmatprep.subr.bf16.mxu0 0
      %920 = vmatpush1.bf16.xpose.msra.mxu0 0
      %921 = vmatprep.subr.bf16.mxu0 0
      %922 = vmatpush1.bf16.xpose.msra.mxu0 0
      %923 = vmatprep.subr.bf16.mxu0 0
      %924 = vmatpush1.bf16.xpose.msra.mxu0 0
      %925 = vmatprep.subr.bf16.mxu0 0
      %926 = vmatpush1.bf16.xpose.msra.mxu0 0
      %927 = vmatprep.subr.bf16.mxu0 0
      %928 = vmatpush1.bf16.xpose.msra.mxu0 0
      %929 = vmatprep.subr.bf16.mxu0 0
      %930 = vmatpush1.bf16.xpose.msra.mxu0 0
      %931 = vmatprep.subr.bf16.mxu0 0
      %932 = vmatpush1.bf16.xpose.msra.mxu0 0
      %933 = vmatprep.subr.bf16.mxu0 0
      %934 = vmatpush1.bf16.xpose.msra.mxu0 0
      %935 = vmatprep.subr.bf16.mxu0 0
      %936 = vmatpush1.bf16.xpose.msra.mxu0 0
      %937 = vmatprep.subr.bf16.mxu0 0
      %938 = vmatpush1.bf16.xpose.msra.mxu0 0
      %939 = vmatprep.mubr.bf16.mxu0 0
      %940 = vmatmul.mubr.bf16.gmra.mrb[0].mxu0 %v902
      %v941 = vpop.f32.mrb[0].mxu0
      %v942 = vadd.f32 0.0, %v941
      %v943 = vpop.f32.mrb[0].mxu0
      %v944 = vpop.f32.mrb[0].mxu0
      %v945 = vpop.f32.mrb[0].mxu0
      %946 = vdwg.mxu0
      %v947 = vmul.f32 %v942, 0.35355338
      %v948 = vsel %vm410, %v947, -10000.0
      %v949 = vsel %vm415, %v948, -inf
      %950 = vmax.xlane.f32.xlu0 %v949
      %v951 = vpop.xlane.xlu0 %950
      %v952 = vsub.f32 %v948, %v951
      %v953 = vmul.f32 %v952, 1.442695
      %v954 = vpow.pop %v953
      %v955 = vsel %vm415, %v954, 0.0
      %956 = vadd.xlane.f32.xlu0 %v955
      %v957 = vpop.xlane.xlu0 %956
      %v958 = vrcp.pop %v957
      %v959 = vmul.f32 %v954, %v958
      %v960 = vpack.c.bf16 %v959, %v959
      %961 = vrot.lane.b32.xlu0 %v478, 72
      %v962 = vpop.permute.xlu0 %961
      %v964 = vsel %vm415, %v960, 0
      %v967 = vsel %vm484, %v962, 0
      %969 = vmatprep.subr.bf16.mxu0 0
      %970 = vmatpush1.bf16.msra.mxu0 %v967
      %971 = vmatprep.subr.bf16.mxu0 0
      %972 = vmatpush1.bf16.msra.mxu0 0
      %973 = vmatprep.subr.bf16.mxu0 0
      %974 = vmatpush1.bf16.msra.mxu0 0
      %975 = vmatprep.subr.bf16.mxu0 0
      %976 = vmatpush1.bf16.msra.mxu0 0
      %977 = vmatprep.subr.bf16.mxu0 0
      %978 = vmatpush1.bf16.msra.mxu0 0
      %979 = vmatprep.subr.bf16.mxu0 0
      %980 = vmatpush1.bf16.msra.mxu0 0
      %981 = vmatprep.subr.bf16.mxu0 0
      %982 = vmatpush1.bf16.msra.mxu0 0
      %983 = vmatprep.subr.bf16.mxu0 0
      %984 = vmatpush1.bf16.msra.mxu0 0
      %985 = vmatprep.subr.bf16.mxu0 0
      %986 = vmatpush1.bf16.msra.mxu0 0
      %987 = vmatprep.subr.bf16.mxu0 0
      %988 = vmatpush1.bf16.msra.mxu0 0
      %989 = vmatprep.subr.bf16.mxu0 0
      %990 = vmatpush1.bf16.msra.mxu0 0
      %991 = vmatprep.subr.bf16.mxu0 0
      %992 = vmatpush1.bf16.msra.mxu0 0
      %993 = vmatprep.subr.bf16.mxu0 0
      %994 = vmatpush1.bf16.msra.mxu0 0
      %995 = vmatprep.subr.bf16.mxu0 0
      %996 = vmatpush1.bf16.msra.mxu0 0
      %997 = vmatprep.subr.bf16.mxu0 0
      %998 = vmatpush1.bf16.msra.mxu0 0
      %999 = vmatprep.subr.bf16.mxu0 0
      %1000 = vmatpush1.bf16.msra.mxu0 0
      %1001 = vmatprep.mubr.bf16.mxu0 0
      %1002 = vmatmul.mubr.bf16.gmra.mrb[0].mxu0 %v964
      %v1003 = vpop.f32.mrb[0].mxu0
      %v1004 = vadd.f32 0.0, %v1003
      %v1005 = vpop.f32.mrb[0].mxu0
      %v1006 = vpop.f32.mrb[0].mxu0
      %v1007 = vpop.f32.mrb[0].mxu0
      %1008 = vdwg.mxu0
      %v1009 = vpack.c.bf16 %v1004, %v1004
      %v1011 = vsel %vm415, %v1009, 0
      %v1014 = vsel %vm484, %v414, 0
      %1016 = vmatprep.subr.bf16.mxu0 0
      %1017 = vmatpush1.bf16.msra.mxu0 %v1014
      %1018 = vmatprep.subr.bf16.mxu0 0
      %1019 = vmatpush1.bf16.msra.mxu0 0
      %1020 = vmatprep.subr.bf16.mxu0 0
      %1021 = vmatpush1.bf16.msra.mxu0 0
      %1022 = vmatprep.subr.bf16.mxu0 0
      %1023 = vmatpush1.bf16.msra.mxu0 0
      %1024 = vmatprep.subr.bf16.mxu0 0
      %1025 = vmatpush1.bf16.msra.mxu0 0
      %1026 = vmatprep.subr.bf16.mxu0 0
      %1027 = vmatpush1.bf16.msra.mxu0 0
      %1028 = vmatprep.subr.bf16.mxu0 0
      %1029 = vmatpush1.bf16.msra.mxu0 0
      %1030 = vmatprep.subr.bf16.mxu0 0
      %1031 = vmatpush1.bf16.msra.mxu0 0
      %1032 = vmatprep.subr.bf16.mxu0 0
      %1033 = vmatpush1.bf16.msra.mxu0 0
      %1034 = vmatprep.subr.bf16.mxu0 0
      %1035 = vmatpush1.bf16.msra.mxu0 0
      %1036 = vmatprep.subr.bf16.mxu0 0
      %1037 = vmatpush1.bf16.msra.mxu0 0
      %1038 = vmatprep.subr.bf16.mxu0 0
      %1039 = vmatpush1.bf16.msra.mxu0 0
      %1040 = vmatprep.subr.bf16.mxu0 0
      %1041 = vmatpush1.bf16.msra.mxu0 0
      %1042 = vmatprep.subr.bf16.mxu0 0
      %1043 = vmatpush1.bf16.msra.mxu0 0
      %1044 = vmatprep.subr.bf16.mxu0 0
      %1045 = vmatpush1.bf16.msra.mxu0 0
      %1046 = vmatprep.subr.bf16.mxu0 0
      %1047 = vmatpush1.bf16.msra.mxu0 0
      %1048 = vmatprep.mubr.bf16.mxu0 0
      %1049 = vmatmul.mubr.bf16.gmra.mrb[0].mxu0 %v1011
      %v1050 = vpop.f32.mrb[0].mxu0
      %v1051 = vadd.f32 0.0, %v1050
      %v1052 = vpop.f32.mrb[0].mxu0
      %v1053 = vpop.f32.mrb[0].mxu0
      %v1054 = vpop.f32.mrb[0].mxu0
      %1055 = vdwg.mxu0
      %v1056 = vadd.f32 %v896, %v1051
      %v1057 = vld [vmem:[%s6] sm:$0x1]
      %v1059 = vlaneseq
      %v1060 = vshrl.u32 %v1059, 7
      %v1061 = vsub.s32 0, %v1060
      %v1062 = vrot.slane %v1057, %v1061
      %v1064 = vadd.f32 %v1056, %v1062
      %v1065 = vld [vmem:[%s388] sm:$0xf]
      %v1066 = vunpack.c.l.bf16 %v1065
      %v1067 = vadd.f32 %v1064, %v1066
      %v1068 = vld [vmem:[%s7] sm:$0x1]
      %v1069 = vld [vmem:[%s8] sm:$0x1]
      %vm1070 = vcmask 261120
      %v1071 = vsel %vm1070, %v1067, 0.0
      %1072 = vadd.xlane.f32.xlu0 %v1071
      %v1073 = vpop.xlane.xlu0 %1072
      %v1074 = vrcp.pop 32.0
      %v1075 = vmul.f32 %v1073, %v1074
      %v1076 = vsub.f32 %v1067, %v1075
      %v1077 = vmul.f32 %v1076, %v1076
      %v1078 = vsel %vm1070, %v1077, 0.0
      %1079 = vadd.xlane.f32.xlu0 %v1078
      %v1080 = vpop.xlane.xlu0 %1079
      %v1081 = vmul.f32 %v1080, %v1074
      %v1082 = vadd.f32 %v1081, 1e-05
      %v1083 = vrsqrt.pop %v1082
      %v1084 = vmul.f32 %v1076, %v1083
      %v1086 = vlaneseq
      %v1087 = vshrl.u32 %v1086, 7
      %v1088 = vsub.s32 0, %v1087
      %v1089 = vrot.slane %v1068, %v1088
      %v1091 = vmul.f32 %v1084, %v1089
      %v1093 = vlaneseq
      %v1094 = vshrl.u32 %v1093, 7
      %v1095 = vsub.s32 0, %v1094
      %v1096 = vrot.slane %v1069, %v1095
      %v1098 = vadd.f32 %v1091, %v1096
      %v1099 = vpack.c.bf16 %v1098, %v1098
      %vm1100 = vcmask 257024
      %1101 = vst.msk [vmem:[%s392] sm:$0xf] %vm1100, %v1099
      %p1102 = scmp.lt.s32.totalorder %s20, 1
      %s1103 = scalar_select %p1102, %s20, 1
      %s1104 = smul.addr %s1103, 4
      %s1105 = scalar_lea.vmem %s9, %s1104
      // Predicated region
      $region57: #{_lambda_.20} parent=55 // pred_check
        %p1106 = pneg %p252
      $region58: #{_lambda_.20} parent=55 // pred_check_branch
        %1108 = sbr.rel (%p1106) target = $region60
      $region59: #{_lambda_.20} parent=55 // pred_region
        _
      $region60: #{_lambda_.20} parent=55 // pred_fallthru
        _
    $region56: #{_lambda_.20} parent=5 // pred_fallthru
      _
    %p1109 = scmp.le.s32.totalorder 2, %s15
    // Predicated region
    $region61: #{_lambda_.20} parent=5 // pred_check
      %p1110 = pneg %p1109
    $region62: #{_lambda_.20} parent=5 // pred_check_branch
      %1112 = sbr.rel (%p1110) target = $region64
    $region63: #{_lambda_.20} parent=5 // pred_region
      %s1113 = ssub.s32 %s15, 2
      // Predicated region
      $region65: #{_lambda_.20} parent=63 // pred_check
        %p1114 = pneg %p258
      $region66: #{_lambda_.20} parent=63 // pred_check_branch
        %1116 = sbr.rel (%p1114) target = $region68
      $region67: #{_lambda_.20} parent=63 // pred_region
        %p1117 = scmp.lt.s32.totalorder %s21, 1
        %s1118 = scalar_select %p1117, %s21, 1
        %s1119 = smul.addr %s1118, 4
        %s1120 = scalar_lea.vmem %s9, %s1119
      $region68: #{_lambda_.20} parent=63 // pred_fallthru
        _
    $region64: #{_lambda_.20} parent=5 // pred_fallthru
      _
  $region6: #{_lambda_.20} parent=0 // loop_footer
    %s19 = sadd.s32 1, %s15
  $region7: #{_lambda_.20} parent=0 // loop_footer_branch
    %14 = sbr.rel target = $region3
  $region8: #{_lambda_.20} parent=0 // loop_exit
    _

// kernel: _lambda_.27
$region0: #{_lambda_.27}
  #allocation0 [shape = 'u32[]', space=smem, size = 0x4, offset = 0x4, fixed_abs, tag = 'smem constant byte address 0x4 - core index']
  #allocation1 [shape = 'u32[144,128]{1,0:T(1,128)}', space=vmem, size = 0x12000, scoped, tag = 'internal scratch']
  %s0 = inlined_call_operand.vmem [shape: bf16[16,32], index: 0, kind: input, shape index: {}]
  %s1 = inlined_call_operand.vmem [shape: bf16[32,32], index: 1, kind: input, shape index: {}]
  %s2 = inlined_call_operand.vmem [shape: f32[1,32], index: 2, kind: input, shape index: {}]
  %s3 = inlined_call_operand.vmem [shape: bf16[16,32], index: 3, kind: output, shape index: {}]
  %s4 = sld [smem:[#allocation0]]
  $region22: #{_lambda_.27} parent=0
    _
  %s6 = ssub.s32 1, %s4
  %s7 = scalar_select 0, %s6, %s4
  // Predicated region
  $region2: #{_lambda_.27} parent=0 // pred_check
    _
  $region3: #{_lambda_.27} parent=0 // pred_check_branch
    %9 = sbr.rel (0) target = $region5
  $region4: #{_lambda_.27} parent=0 // pred_region
    _
  $region5: #{_lambda_.27} parent=0 // pred_fallthru
    _
  // Predicated region
  $region6: #{_lambda_.27} parent=0 // pred_check
    _
  $region7: #{_lambda_.27} parent=0 // pred_check_branch
    %11 = sbr.rel (0) target = $region9
  $region8: #{_lambda_.27} parent=0 // pred_region
    _
  $region9: #{_lambda_.27} parent=0 // pred_fallthru
    _
  // Predicated region
  $region10: #{_lambda_.27} parent=0 // pred_check
    _
  $region11: #{_lambda_.27} parent=0 // pred_check_branch
    %13 = sbr.rel (0) target = $region13
  $region12: #{_lambda_.27} parent=0 // pred_region
    _
  $region13: #{_lambda_.27} parent=0 // pred_fallthru
    _
  %v15 = vld [vmem:[%s0] sm:$0xf]
  %v16 = vld [vmem:[%s0 + $0x4] sm:$0xf]
  %v17 = vld [vmem:[%s1] sm:$0xf]
  %v18 = vld [vmem:[%s1 + $0x4] sm:$0xf]
  %v19 = vld [vmem:[%s1 + $0x8] sm:$0xf]
  %v20 = vld [vmem:[%s1 + $0xc] sm:$0xf]
  %v21 = vld [vmem:[%s2] sm:$0x1]
  %v23 = vlaneseq
  %v24 = vshrl.u32 %v23, 7
  %v25 = vsub.s32 0, %v24
  %v26 = vrot.slane %v21, %v25
  %v30 = vunpack.c.l.b16 %v15
  %v31 = vunpack.c.l.b16 %v16
  %v32 = vpack.c.b16 %v31, %v30
  %v37 = vunpack.c.l.b16 %v17
  %v38 = vunpack.c.l.b16 %v18
  %v39 = vunpack.c.l.b16 %v19
  %v40 = vunpack.c.l.b16 %v20
  %v41 = vpack.c.b16 %v38, %v37
  %v42 = vpack.c.b16 %v40, %v39
  %vm45 = vcmask 261120
  %v47 = vsel %vm45, %v32, 0
  %49 = vmatprep.subr.bf16.mxu0 0
  %50 = vmatpush1.bf16.msra.mxu0 %v41
  %51 = vmatprep.subr.bf16.mxu0 0
  %52 = vmatpush1.bf16.msra.mxu0 %v42
  %53 = vmatprep.subr.bf16.mxu0 0
  %54 = vmatpush1.bf16.msra.mxu0 0
  %55 = vmatprep.subr.bf16.mxu0 0
  %56 = vmatpush1.bf16.msra.mxu0 0
  %57 = vmatprep.subr.bf16.mxu0 0
  %58 = vmatpush1.bf16.msra.mxu0 0
  %59 = vmatprep.subr.bf16.mxu0 0
  %60 = vmatpush1.bf16.msra.mxu0 0
  %61 = vmatprep.subr.bf16.mxu0 0
  %62 = vmatpush1.bf16.msra.mxu0 0
  %63 = vmatprep.subr.bf16.mxu0 0
  %64 = vmatpush1.bf16.msra.mxu0 0
  %65 = vmatprep.subr.bf16.mxu0 0
  %66 = vmatpush1.bf16.msra.mxu0 0
  %67 = vmatprep.subr.bf16.mxu0 0
  %68 = vmatpush1.bf16.msra.mxu0 0
  %69 = vmatprep.subr.bf16.mxu0 0
  %70 = vmatpush1.bf16.msra.mxu0 0
  %71 = vmatprep.subr.bf16.mxu0 0
  %72 = vmatpush1.bf16.msra.mxu0 0
  %73 = vmatprep.subr.bf16.mxu0 0
  %74 = vmatpush1.bf16.msra.mxu0 0
  %75 = vmatprep.subr.bf16.mxu0 0
  %76 = vmatpush1.bf16.msra.mxu0 0
  %77 = vmatprep.subr.bf16.mxu0 0
  %78 = vmatpush1.bf16.msra.mxu0 0
  %79 = vmatprep.subr.bf16.mxu0 0
  %80 = vmatpush1.bf16.msra.mxu0 0
  %81 = vmatprep.mubr.bf16.mxu0 0
  %82 = vmatmul.mubr.bf16.gmra.mrb[0].mxu0 %v47
  %v83 = vpop.f32.mrb[0].mxu0
  %v84 = vadd.f32 %v26, %v83
  %v85 = vpop.f32.mrb[0].mxu0
  %v86 = vpop.f32.mrb[0].mxu0
  %v87 = vadd.f32 %v26, %v86
  %v88 = vpop.f32.mrb[0].mxu0
  %89 = vdwg.mxu0
  %v90 = vpack.c.bf16 %v87, %v84
  %v92 = vunpack.c.l.b16 %v90
  %v93 = vunpack.c.h.b16 %v90
  %v94 = vpack.c.b16 %v92, %v92
  %v95 = vpack.c.b16 %v93, %v93
  %vm98 = vcmask 257024
  %99 = vst.msk [vmem:[%s3] sm:$0xf] %vm98, %v94
  %100 = vst.msk [vmem:[%s3 + $0x4] sm:$0xf] %vm98, %v95
  // Predicated region
  $region14: #{_lambda_.27} parent=0 // pred_check
    _
  $region15: #{_lambda_.27} parent=0 // pred_check_branch
    %102 = sbr.rel (0) target = $region17
  $region16: #{_lambda_.27} parent=0 // pred_region
    _
  $region17: #{_lambda_.27} parent=0 // pred_fallthru
    _
  // Predicated region
  $region18: #{_lambda_.27} parent=0 // pred_check
    _
  $region19: #{_lambda_.27} parent=0 // pred_check_branch
    %104 = sbr.rel (0) target = $region21
  $region20: #{_lambda_.27} parent=0 // pred_region
    _
  $region21: #{_lambda_.27} parent=0 // pred_fallthru
    _

// kernel: _lambda_.37
$region0: #{_lambda_.37}
  #allocation0 [shape = 'u32[]', space=smem, size = 0x4, offset = 0x4, fixed_abs, tag = 'smem constant byte address 0x4 - core index']
  #allocation1 [shape = 'u32[144,128]{1,0:T(1,128)}', space=vmem, size = 0x12000, scoped, tag = 'internal scratch']
  %s0 = inlined_call_operand.vmem [shape: bf16[16,32], index: 0, kind: input, shape index: {}]
  %s1 = inlined_call_operand.vmem [shape: bf16[32,16], index: 1, kind: input, shape index: {}]
  %s2 = inlined_call_operand.vmem [shape: f32[1,16], index: 2, kind: input, shape index: {}]
  %s3 = inlined_call_operand.hbm [shape: f32[16,16], index: 3, kind: output, shape index: {}]
  %s4 = sld [smem:[#allocation0]]
  $region22: #{_lambda_.37} parent=0
    _
  %s6 = ssub.s32 1, %s4
  %s7 = scalar_select 0, %s6, %s4
  $region1: #{_lambda_.37} parent=0
    #allocation2 [shape = 'u8[8192]{0}', space=vmem, size = 0x2000, scoped, tag = 'output window, operand 0, single buffered']
    #allocation3 [shape = 's32[1]{0}', space=sflag, size = 0x4, scoped, tag = 'scoped memory for _lambda_.37']
    %8 = vsyncpa [#allocation3], 0
    // Predicated region
    $region2: #{_lambda_.37} parent=1 // pred_check
      _
    $region3: #{_lambda_.37} parent=1 // pred_check_branch
      %10 = sbr.rel (0) target = $region5
    $region4: #{_lambda_.37} parent=1 // pred_region
      _
    $region5: #{_lambda_.37} parent=1 // pred_fallthru
      _
    // Predicated region
    $region6: #{_lambda_.37} parent=1 // pred_check
      _
    $region7: #{_lambda_.37} parent=1 // pred_check_branch
      %12 = sbr.rel (0) target = $region9
    $region8: #{_lambda_.37} parent=1 // pred_region
      _
    $region9: #{_lambda_.37} parent=1 // pred_fallthru
      _
    // Predicated region
    $region10: #{_lambda_.37} parent=1 // pred_check
      _
    $region11: #{_lambda_.37} parent=1 // pred_check_branch
      %14 = sbr.rel (0) target = $region13
    $region12: #{_lambda_.37} parent=1 // pred_region
      _
    $region13: #{_lambda_.37} parent=1 // pred_fallthru
      _
    %v16 = vld [vmem:[%s0] sm:$0xf]
    %v17 = vld [vmem:[%s0 + $0x4] sm:$0xf]
    %v18 = vld [vmem:[%s1] sm:$0xf]
    %v19 = vld [vmem:[%s1 + $0x4] sm:$0xf]
    %v20 = vld [vmem:[%s1 + $0x8] sm:$0xf]
    %v21 = vld [vmem:[%s1 + $0xc] sm:$0xf]
    %v22 = vld [vmem:[%s2] sm:$0x1]
    %v24 = vlaneseq
    %v25 = vshrl.u32 %v24, 7
    %v26 = vsub.s32 0, %v25
    %v27 = vrot.slane %v22, %v26
    %v31 = vunpack.c.l.b16 %v16
    %v32 = vunpack.c.l.b16 %v17
    %v33 = vpack.c.b16 %v32, %v31
    %v38 = vunpack.c.l.b16 %v18
    %v39 = vunpack.c.l.b16 %v19
    %v40 = vunpack.c.l.b16 %v20
    %v41 = vunpack.c.l.b16 %v21
    %v42 = vpack.c.b16 %v39, %v38
    %v43 = vpack.c.b16 %v41, %v40
    %vm46 = vcmask 261120
    %v48 = vsel %vm46, %v33, 0
    %50 = vmatprep.subr.bf16.mxu0 0
    %51 = vmatpush1.bf16.msra.mxu0 %v42
    %52 = vmatprep.subr.bf16.mxu0 0
    %53 = vmatpush1.bf16.msra.mxu0 %v43
    %54 = vmatprep.subr.bf16.mxu0 0
    %55 = vmatpush1.bf16.msra.mxu0 0
    %56 = vmatprep.subr.bf16.mxu0 0
    %57 = vmatpush1.bf16.msra.mxu0 0
    %58 = vmatprep.subr.bf16.mxu0 0
    %59 = vmatpush1.bf16.msra.mxu0 0
    %60 = vmatprep.subr.bf16.mxu0 0
    %61 = vmatpush1.bf16.msra.mxu0 0
    %62 = vmatprep.subr.bf16.mxu0 0
    %63 = vmatpush1.bf16.msra.mxu0 0
    %64 = vmatprep.subr.bf16.mxu0 0
    %65 = vmatpush1.bf16.msra.mxu0 0
    %66 = vmatprep.subr.bf16.mxu0 0
    %67 = vmatpush1.bf16.msra.mxu0 0
    %68 = vmatprep.subr.bf16.mxu0 0
    %69 = vmatpush1.bf16.msra.mxu0 0
    %70 = vmatprep.subr.bf16.mxu0 0
    %71 = vmatpush1.bf16.msra.mxu0 0
    %72 = vmatprep.subr.bf16.mxu0 0
    %73 = vmatpush1.bf16.msra.mxu0 0
    %74 = vmatprep.subr.bf16.mxu0 0
    %75 = vmatpush1.bf16.msra.mxu0 0
    %76 = vmatprep.subr.bf16.mxu0 0
    %77 = vmatpush1.bf16.msra.mxu0 0
    %78 = vmatprep.subr.bf16.mxu0 0
    %79 = vmatpush1.bf16.msra.mxu0 0
    %80 = vmatprep.subr.bf16.mxu0 0
    %81 = vmatpush1.bf16.msra.mxu0 0
    %82 = vmatprep.mubr.bf16.mxu0 0
    %83 = vmatmul.mubr.bf16.gmra.mrb[0].mxu0 %v48
    %v84 = vpop.f32.mrb[0].mxu0
    %v85 = vadd.f32 %v27, %v84
    %v86 = vpop.f32.mrb[0].mxu0
    %v87 = vpop.f32.mrb[0].mxu0
    %v88 = vadd.f32 %v27, %v87
    %v89 = vpop.f32.mrb[0].mxu0
    %90 = vdwg.mxu0
    %vm91 = vcmask 130048
    %v92 = vsel %vm91, %v85, -inf
    %93 = vmax.xlane.f32.xlu0 %v92
    %v94 = vpop.xlane.xlu0 %93
    %v95 = vsel %vm91, %v88, -inf
    %96 = vmax.xlane.f32.xlu0 %v95
    %v97 = vpop.xlane.xlu0 %96
    %v98 = vsub.f32 %v85, %v94
    %v99 = vsub.f32 %v88, %v97
    %v100 = vmul.f32 %v98, 1.442695
    %v101 = vpow.pop %v100
    %v102 = vmul.f32 %v99, 1.442695
    %v103 = vpow.pop %v102
    %v104 = vsel %vm91, %v101, 0.0
    %105 = vadd.xlane.f32.xlu0 %v104
    %v106 = vpop.xlane.xlu0 %105
    %v107 = vsel %vm91, %v103, 0.0
    %108 = vadd.xlane.f32.xlu0 %v107
    %v109 = vpop.xlane.xlu0 %108
    %v110 = vlog2.pop %v106
    %v111 = vmul.f32 %v110, 0.6931472
    %v112 = vlog2.pop %v109
    %v113 = vmul.f32 %v112, 0.6931472
    %v114 = vadd.f32 %v111, %v94
    %v115 = vadd.f32 %v113, %v97
    %v116 = vsub.f32 %v85, %v114
    %v117 = vsub.f32 %v88, %v115
    %118 = vst.msk [vmem:[#allocation2] sm:$0xff] %vm91, %v116
    %119 = vst.msk [vmem:[#allocation2 + $0x8] sm:$0xff] %vm91, %v117
    // Predicated region
    $region14: #{_lambda_.37} parent=1 // pred_check
      _
    $region15: #{_lambda_.37} parent=1 // pred_check_branch
      %121 = sbr.rel (0) target = $region17
    $region16: #{_lambda_.37} parent=1 // pred_region
      %s123 = ssub.s32 256, 256
      %124 = vsyncadd [#allocation3], %s123
      %s125 = sshll.u32 [#allocation2], 4
      %s126 = int_to_ptr.vmem [resolvable:$true] %s125
      %131 = dma.vmem_to_hbm [thread:$0]  %s126, 256, %s3, [#allocation3], 128, 128, 8
    $region17: #{_lambda_.37} parent=1 // pred_fallthru
      _
    // Predicated region
    $region18: #{_lambda_.37} parent=1 // pred_check
      _
    $region19: #{_lambda_.37} parent=1 // pred_check_branch
      %133 = sbr.rel (0) target = $region21
    $region20: #{_lambda_.37} parent=1 // pred_region
      %134 = dma.done [#allocation3], 256
    $region21: #{_lambda_.37} parent=1 // pred_fallthru
      _
    %135 = vsyncpa [#allocation3], 1

// kernel: _lambda_.26
$region0: #{_lambda_.26}
  #allocation0 [shape = 'u32[]', space=smem, size = 0x4, offset = 0x4, fixed_abs, tag = 'smem constant byte address 0x4 - core index']
  #allocation1 [shape = 'u32[144,128]{1,0:T(1,128)}', space=vmem, size = 0x12000, scoped, tag = 'internal scratch']
  %s0 = inlined_call_operand.vmem [shape: bf16[2,8,32], index: 0, kind: input, shape index: {}]
  %s1 = inlined_call_operand.vmem [shape: bf16[2,8,64], index: 1, kind: input, shape index: {}]
  %s2 = inlined_call_operand.vmem [shape: f32[2,8,1], index: 2, kind: input, shape index: {}]
  %s3 = inlined_call_operand.vmem [shape: f32[2,1,8], index: 3, kind: input, shape index: {}]
  %s4 = inlined_call_operand.vmem [shape: bf16[2,8,32], index: 4, kind: input, shape index: {}]
  %s5 = inlined_call_operand.vmem [shape: bf16[32,32], index: 5, kind: input, shape index: {}]
  %s6 = inlined_call_operand.vmem [shape: f32[1,32], index: 6, kind: input, shape index: {}]
  %s7 = inlined_call_operand.vmem [shape: f32[1,32], index: 7, kind: input, shape index: {}]
  %s8 = inlined_call_operand.vmem [shape: f32[1,32], index: 8, kind: input, shape index: {}]
  %s9 = inlined_call_operand.vmem [shape: bf16[2,8,32], index: 9, kind: output, shape index: {}]
  %s10 = sld [smem:[#allocation0]]
  $region69: #{_lambda_.26} parent=0
    _
  %s12 = ssub.s32 1, %s10
  %s13 = scalar_select 0, %s12, %s10
  loop: start=0, step=1, limit=4
  $region2: #{_lambda_.26} parent=0 // loop_pre_header
    _
  $region3: #{_lambda_.26} parent=0 // loop_header
    %s15 = sphi 0, %s19
    %p16 = scmp.ge.s32.totalorder %s15, 4
    %s25 = sphi 0, %s27
    %s28 = sphi 0, %s25
    %s29 = sphi 0, %s28
    %s45 = sphi 0, %s29
    %s51 = sphi 0, %s53
    %s54 = sphi 0, %s51
    %s55 = sphi 0, %s54
    %s71 = sphi 0, %s55
    %s77 = sphi 0, %s79
    %s80 = sphi 0, %s77
    %s81 = sphi 0, %s80
    %s97 = sphi 0, %s81
    %s103 = sphi 0, %s105
    %s106 = sphi 0, %s103
    %s107 = sphi 0, %s106
    %s123 = sphi 0, %s107
    %s129 = sphi 0, %s131
    %s132 = sphi 0, %s129
    %s133 = sphi 0, %s132
    %s149 = sphi 0, %s133
    %s153 = sphi 0, %s153
    %s155 = sphi 0, %s153
    %s156 = sphi 0, %s155
    %s170 = sphi 0, %s156
    %s174 = sphi 0, %s174
    %s176 = sphi 0, %s174
    %s177 = sphi 0, %s176
    %s191 = sphi 0, %s177
    %s195 = sphi 0, %s195
    %s197 = sphi 0, %s195
    %s198 = sphi 0, %s197
    %s212 = sphi 0, %s198
    %s216 = sphi 0, %s216
    %s218 = sphi 0, %s216
    %s219 = sphi 0, %s218
    %s233 = sphi 0, %s219
    %s239 = sphi 0, %s241
    %s242 = sphi 0, %s239
    %s243 = sphi 0, %s242
    %s259 = sphi 0, %s243
  $region4: #{_lambda_.26} parent=0 // loop_header_branch
    %18 = sbr.rel (%p16) target = $region8
  $region5: #{_lambda_.26} parent=0 // loop_body
    %s20 = ssub.s32 %s15, 1
    %s21 = ssub.s32 %s15, 2
    %s22 = sadd.s32 %s15, 1
    %s23 = ssub.s32 %s15, %s22
    %p24 = scmp.eq.s32.totalorder %s23, 0
    %s26 = sadd.s32 %s25, 1
    %s27 = scalar_select %p24, %s25, %s26
    %p30 = pneg %p24
    %p31 = scmp.eq.s32.totalorder %s15, 1
    %p32 = por %p30, %p31
    %p33 = scmp.ne.s32.totalorder %s25, %s28
    %p34 = scmp.eq.s32.totalorder %s15, 0
    %p35 = por %p33, %p34
    %p36 = scmp.ne.s32.totalorder %s25, %s28
    %p37 = scmp.eq.s32.totalorder %s20, 1
    %p38 = por %p36, %p37
    %p39 = scmp.ne.s32.totalorder %s28, %s29
    %p40 = scmp.eq.s32.totalorder %s20, 0
    %p41 = por %p39, %p40
    %p42 = scmp.ne.s32.totalorder %s28, %s29
    %p43 = scmp.eq.s32.totalorder %s21, 1
    %p44 = por %p42, %p43
    %p46 = scmp.ne.s32.totalorder %s29, %s45
    %p47 = scmp.eq.s32.totalorder %s21, 0
    %p48 = por %p46, %p47
    %s49 = ssub.s32 %s15, %s22
    %p50 = scmp.eq.s32.totalorder %s49, 0
    %s52 = sadd.s32 %s51, 1
    %s53 = scalar_select %p50, %s51, %s52
    %p56 = pneg %p50
    %p57 = scmp.eq.s32.totalorder %s15, 1
    %p58 = por %p56, %p57
    %p59 = scmp.ne.s32.totalorder %s51, %s54
    %p60 = scmp.eq.s32.totalorder %s15, 0
    %p61 = por %p59, %p60
    %p62 = scmp.ne.s32.totalorder %s51, %s54
    %p63 = scmp.eq.s32.totalorder %s20, 1
    %p64 = por %p62, %p63
    %p65 = scmp.ne.s32.totalorder %s54, %s55
    %p66 = scmp.eq.s32.totalorder %s20, 0
    %p67 = por %p65, %p66
    %p68 = scmp.ne.s32.totalorder %s54, %s55
    %p69 = scmp.eq.s32.totalorder %s21, 1
    %p70 = por %p68, %p69
    %p72 = scmp.ne.s32.totalorder %s55, %s71
    %p73 = scmp.eq.s32.totalorder %s21, 0
    %p74 = por %p72, %p73
    %s75 = ssub.s32 %s15, %s22
    %p76 = scmp.eq.s32.totalorder %s75, 0
    %s78 = sadd.s32 %s77, 1
    %s79 = scalar_select %p76, %s77, %s78
    %p82 = pneg %p76
    %p83 = scmp.eq.s32.totalorder %s15, 1
    %p84 = por %p82, %p83
    %p85 = scmp.ne.s32.totalorder %s77, %s80
    %p86 = scmp.eq.s32.totalorder %s15, 0
    %p87 = por %p85, %p86
    %p88 = scmp.ne.s32.totalorder %s77, %s80
    %p89 = scmp.eq.s32.totalorder %s20, 1
    %p90 = por %p88, %p89
    %p91 = scmp.ne.s32.totalorder %s80, %s81
    %p92 = scmp.eq.s32.totalorder %s20, 0
    %p93 = por %p91, %p92
    %p94 = scmp.ne.s32.totalorder %s80, %s81
    %p95 = scmp.eq.s32.totalorder %s21, 1
    %p96 = por %p94, %p95
    %p98 = scmp.ne.s32.totalorder %s81, %s97
    %p99 = scmp.eq.s32.totalorder %s21, 0
    %p100 = por %p98, %p99
    %s101 = ssub.s32 %s15, %s22
    %p102 = scmp.eq.s32.totalorder %s101, 0
    %s104 = sadd.s32 %s103, 1
    %s105 = scalar_select %p102, %s103, %s104
    %p108 = pneg %p102
    %p109 = scmp.eq.s32.totalorder %s15, 1
    %p110 = por %p108, %p109
    %p111 = scmp.ne.s32.totalorder %s103, %s106
    %p112 = scmp.eq.s32.totalorder %s15, 0
    %p113 = por %p111, %p112
    %p114 = scmp.ne.s32.totalorder %s103, %s106
    %p115 = scmp.eq.s32.totalorder %s20, 1
    %p116 = por %p114, %p115
    %p117 = scmp.ne.s32.totalorder %s106, %s107
    %p118 = scmp.eq.s32.totalorder %s20, 0
    %p119 = por %p117, %p118
    %p120 = scmp.ne.s32.totalorder %s106, %s107
    %p121 = scmp.eq.s32.totalorder %s21, 1
    %p122 = por %p120, %p121
    %p124 = scmp.ne.s32.totalorder %s107, %s123
    %p125 = scmp.eq.s32.totalorder %s21, 0
    %p126 = por %p124, %p125
    %s127 = ssub.s32 %s15, %s22
    %p128 = scmp.eq.s32.totalorder %s127, 0
    %s130 = sadd.s32 %s129, 1
    %s131 = scalar_select %p128, %s129, %s130
    %p134 = pneg %p128
    %p135 = scmp.eq.s32.totalorder %s15, 1
    %p136 = por %p134, %p135
    %p137 = scmp.ne.s32.totalorder %s129, %s132
    %p138 = scmp.eq.s32.totalorder %s15, 0
    %p139 = por %p137, %p138
    %p140 = scmp.ne.s32.totalorder %s129, %s132
    %p141 = scmp.eq.s32.totalorder %s20, 1
    %p142 = por %p140, %p141
    %p143 = scmp.ne.s32.totalorder %s132, %s133
    %p144 = scmp.eq.s32.totalorder %s20, 0
    %p145 = por %p143, %p144
    %p146 = scmp.ne.s32.totalorder %s132, %s133
    %p147 = scmp.eq.s32.totalorder %s21, 1
    %p148 = por %p146, %p147
    %p150 = scmp.ne.s32.totalorder %s133, %s149
    %p151 = scmp.eq.s32.totalorder %s21, 0
    %p152 = por %p150, %p151
    %s154 = sadd.s32 %s153, 1
    %p157 = scmp.eq.s32.totalorder %s15, 1
    %p158 = scmp.ne.s32.totalorder %s153, %s155
    %p159 = scmp.eq.s32.totalorder %s15, 0
    %p160 = por %p158, %p159
    %p161 = scmp.ne.s32.totalorder %s153, %s155
    %p162 = scmp.eq.s32.totalorder %s20, 1
    %p163 = por %p161, %p162
    %p164 = scmp.ne.s32.totalorder %s155, %s156
    %p165 = scmp.eq.s32.totalorder %s20, 0
    %p166 = por %p164, %p165
    %p167 = scmp.ne.s32.totalorder %s155, %s156
    %p168 = scmp.eq.s32.totalorder %s21, 1
    %p169 = por %p167, %p168
    %p171 = scmp.ne.s32.totalorder %s156, %s170
    %p172 = scmp.eq.s32.totalorder %s21, 0
    %p173 = por %p171, %p172
    %s175 = sadd.s32 %s174, 1
    %p178 = scmp.eq.s32.totalorder %s15, 1
    %p179 = scmp.ne.s32.totalorder %s174, %s176
    %p180 = scmp.eq.s32.totalorder %s15, 0
    %p181 = por %p179, %p180
    %p182 = scmp.ne.s32.totalorder %s174, %s176
    %p183 = scmp.eq.s32.totalorder %s20, 1
    %p184 = por %p182, %p183
    %p185 = scmp.ne.s32.totalorder %s176, %s177
    %p186 = scmp.eq.s32.totalorder %s20, 0
    %p187 = por %p185, %p186
    %p188 = scmp.ne.s32.totalorder %s176, %s177
    %p189 = scmp.eq.s32.totalorder %s21, 1
    %p190 = por %p188, %p189
    %p192 = scmp.ne.s32.totalorder %s177, %s191
    %p193 = scmp.eq.s32.totalorder %s21, 0
    %p194 = por %p192, %p193
    %s196 = sadd.s32 %s195, 1
    %p199 = scmp.eq.s32.totalorder %s15, 1
    %p200 = scmp.ne.s32.totalorder %s195, %s197
    %p201 = scmp.eq.s32.totalorder %s15, 0
    %p202 = por %p200, %p201
    %p203 = scmp.ne.s32.totalorder %s195, %s197
    %p204 = scmp.eq.s32.totalorder %s20, 1
    %p205 = por %p203, %p204
    %p206 = scmp.ne.s32.totalorder %s197, %s198
    %p207 = scmp.eq.s32.totalorder %s20, 0
    %p208 = por %p206, %p207
    %p209 = scmp.ne.s32.totalorder %s197, %s198
    %p210 = scmp.eq.s32.totalorder %s21, 1
    %p211 = por %p209, %p210
    %p213 = scmp.ne.s32.totalorder %s198, %s212
    %p214 = scmp.eq.s32.totalorder %s21, 0
    %p215 = por %p213, %p214
    %s217 = sadd.s32 %s216, 1
    %p220 = scmp.eq.s32.totalorder %s15, 1
    %p221 = scmp.ne.s32.totalorder %s216, %s218
    %p222 = scmp.eq.s32.totalorder %s15, 0
    %p223 = por %p221, %p222
    %p224 = scmp.ne.s32.totalorder %s216, %s218
    %p225 = scmp.eq.s32.totalorder %s20, 1
    %p226 = por %p224, %p225
    %p227 = scmp.ne.s32.totalorder %s218, %s219
    %p228 = scmp.eq.s32.totalorder %s20, 0
    %p229 = por %p227, %p228
    %p230 = scmp.ne.s32.totalorder %s218, %s219
    %p231 = scmp.eq.s32.totalorder %s21, 1
    %p232 = por %p230, %p231
    %p234 = scmp.ne.s32.totalorder %s219, %s233
    %p235 = scmp.eq.s32.totalorder %s21, 0
    %p236 = por %p234, %p235
    %s237 = ssub.s32 %s15, %s22
    %p238 = scmp.eq.s32.totalorder %s237, 0
    %s240 = sadd.s32 %s239, 1
    %s241 = scalar_select %p238, %s239, %s240
    %p244 = pneg %p238
    %p245 = scmp.eq.s32.totalorder %s15, 1
    %p246 = por %p244, %p245
    %p247 = scmp.ne.s32.totalorder %s239, %s242
    %p248 = scmp.eq.s32.totalorder %s15, 0
    %p249 = por %p247, %p248
    %p250 = scmp.ne.s32.totalorder %s239, %s242
    %p251 = scmp.eq.s32.totalorder %s20, 1
    %p252 = por %p250, %p251
    %p253 = scmp.ne.s32.totalorder %s242, %s243
    %p254 = scmp.eq.s32.totalorder %s20, 0
    %p255 = por %p253, %p254
    %p256 = scmp.ne.s32.totalorder %s242, %s243
    %p257 = scmp.eq.s32.totalorder %s21, 1
    %p258 = por %p256, %p257
    %p260 = scmp.ne.s32.totalorder %s243, %s259
    %p261 = scmp.eq.s32.totalorder %s21, 0
    %p262 = por %p260, %p261
    %p263 = scmp.le.s32.totalorder 1, %s15
    %p264 = scmp.lt.s32.totalorder %s15, 3
    %p265 = pnand %p263, %p264
    %p266 = pneg %p265
    // Predicated region
    $region9: #{_lambda_.26} parent=5 // pred_check
      _
    $region10: #{_lambda_.26} parent=5 // pred_check_branch
      %268 = sbr.rel (%p265) target = $region12
    $region11: #{_lambda_.26} parent=5 // pred_region
      %s269 = ssub.s32 %s15, 1
      // Predicated region
      $region13: #{_lambda_.26} parent=11 // pred_check
        %p270 = pneg %p166
      $region14: #{_lambda_.26} parent=11 // pred_check_branch
        %272 = sbr.rel (%p270) target = $region16
      $region15: #{_lambda_.26} parent=11 // pred_region
        _
      $region16: #{_lambda_.26} parent=11 // pred_fallthru
        _
      // Predicated region
      $region17: #{_lambda_.26} parent=11 // pred_check
        %p273 = pneg %p187
      $region18: #{_lambda_.26} parent=11 // pred_check_branch
        %275 = sbr.rel (%p273) target = $region20
      $region19: #{_lambda_.26} parent=11 // pred_region
        _
      $region20: #{_lambda_.26} parent=11 // pred_fallthru
        _
      // Predicated region
      $region21: #{_lambda_.26} parent=11 // pred_check
        %p276 = pneg %p208
      $region22: #{_lambda_.26} parent=11 // pred_check_branch
        %278 = sbr.rel (%p276) target = $region24
      $region23: #{_lambda_.26} parent=11 // pred_region
        _
      $region24: #{_lambda_.26} parent=11 // pred_fallthru
        _
      // Predicated region
      $region25: #{_lambda_.26} parent=11 // pred_check
        %p279 = pneg %p229
      $region26: #{_lambda_.26} parent=11 // pred_check_branch
        %281 = sbr.rel (%p279) target = $region28
      $region27: #{_lambda_.26} parent=11 // pred_region
        _
      $region28: #{_lambda_.26} parent=11 // pred_fallthru
        _
    $region12: #{_lambda_.26} parent=5 // pred_fallthru
      _
    %p282 = scmp.lt.s32.totalorder %s15, 2
    // Predicated region
    $region29: #{_lambda_.26} parent=5 // pred_check
      %p283 = pneg %p282
    $region30: #{_lambda_.26} parent=5 // pred_check_branch
      %285 = sbr.rel (%p283) target = $region32
    $region31: #{_lambda_.26} parent=5 // pred_region
      // Predicated region
      $region33: #{_lambda_.26} parent=31 // pred_check
        %p286 = pneg %p35
      $region34: #{_lambda_.26} parent=31 // pred_check_branch
        %288 = sbr.rel (%p286) target = $region36
      $region35: #{_lambda_.26} parent=31 // pred_region
        %p289 = scmp.lt.s32.totalorder %s15, 1
        %s290 = scalar_select %p289, %s15, 1
        %s291 = smul.addr %s290, 4
        %s292 = scalar_lea.vmem %s0, %s291
      $region36: #{_lambda_.26} parent=31 // pred_fallthru
        _
      // Predicated region
      $region37: #{_lambda_.26} parent=31 // pred_check
        %p293 = pneg %p61
      $region38: #{_lambda_.26} parent=31 // pred_check_branch
        %295 = sbr.rel (%p293) target = $region40
      $region39: #{_lambda_.26} parent=31 // pred_region
        %p296 = scmp.lt.s32.totalorder %s15, 1
        %s297 = scalar_select %p296, %s15, 1
        %s298 = smul.addr %s297, 4
        %s299 = scalar_lea.vmem %s1, %s298
      $region40: #{_lambda_.26} parent=31 // pred_fallthru
        _
      // Predicated region
      $region41: #{_lambda_.26} parent=31 // pred_check
        %p300 = pneg %p87
      $region42: #{_lambda_.26} parent=31 // pred_check_branch
        %302 = sbr.rel (%p300) target = $region44
      $region43: #{_lambda_.26} parent=31 // pred_region
        %p303 = scmp.lt.s32.totalorder %s15, 1
        %s304 = scalar_select %p303, %s15, 1
        %s305 = smul.addr %s304, 8
        %s306 = scalar_lea.vmem %s2, %s305
      $region44: #{_lambda_.26} parent=31 // pred_fallthru
        _
      // Predicated region
      $region45: #{_lambda_.26} parent=31 // pred_check
        %p307 = pneg %p113
      $region46: #{_lambda_.26} parent=31 // pred_check_branch
        %309 = sbr.rel (%p307) target = $region48
      $region47: #{_lambda_.26} parent=31 // pred_region
        %p310 = scmp.lt.s32.totalorder %s15, 1
        %s311 = scalar_select %p310, %s15, 1
        %s312 = scalar_lea.vmem %s3, %s311
      $region48: #{_lambda_.26} parent=31 // pred_fallthru
        _
      // Predicated region
      $region49: #{_lambda_.26} parent=31 // pred_check
        %p313 = pneg %p139
      $region50: #{_lambda_.26} parent=31 // pred_check_branch
        %315 = sbr.rel (%p313) target = $region52
      $region51: #{_lambda_.26} parent=31 // pred_region
        %p316 = scmp.lt.s32.totalorder %s15, 1
        %s317 = scalar_select %p316, %s15, 1
        %s318 = smul.addr %s317, 4
        %s319 = scalar_lea.vmem %s4, %s318
      $region52: #{_lambda_.26} parent=31 // pred_fallthru
        _
    $region32: #{_lambda_.26} parent=5 // pred_fallthru
      _
    %p320 = scmp.le.s32.totalorder 1, %s15
    %p321 = scmp.lt.s32.totalorder %s15, 3
    %p322 = pnand %p320, %p321
    %p323 = pneg %p322
    // Predicated region
    $region53: #{_lambda_.26} parent=5 // pred_check
      _
    $region54: #{_lambda_.26} parent=5 // pred_check_branch
      %325 = sbr.rel (%p322) target = $region56
    $region55: #{_lambda_.26} parent=5 // pred_region
      %s326 = ssub.s32 %s15, 1
      %p327 = scmp.lt.s32.totalorder %s20, 1
      %s328 = scalar_select %p327, %s20, 1
      %s329 = smul.addr %s328, 4
      %s330 = scalar_lea.vmem %s0, %s329
      %p331 = pneg %p41
      %p332 = pneg %p38
      %p333 = scmp.lt.s32.totalorder %s20, 1
      %s334 = scalar_select %p333, %s20, 1
      %s335 = smul.addr %s334, 4
      %s336 = scalar_lea.vmem %s1, %s335
      %p337 = pneg %p67
      %p338 = pneg %p64
      %p339 = scmp.lt.s32.totalorder %s20, 1
      %s340 = scalar_select %p339, %s20, 1
      %s341 = smul.addr %s340, 8
      %s342 = scalar_lea.vmem %s2, %s341
      %p343 = pneg %p93
      %p344 = pneg %p90
      %p345 = scmp.lt.s32.totalorder %s20, 1
      %s346 = scalar_select %p345, %s20, 1
      %s347 = scalar_lea.vmem %s3, %s346
      %p348 = pneg %p119
      %p349 = pneg %p116
      %p350 = scmp.lt.s32.totalorder %s20, 1
      %s351 = scalar_select %p350, %s20, 1
      %s352 = smul.addr %s351, 4
      %s353 = scalar_lea.vmem %s4, %s352
      %p354 = pneg %p145
      %p355 = pneg %p142
      %p356 = pneg %p166
      %p357 = pneg %p163
      %p358 = pneg %p187
      %p359 = pneg %p184
      %p360 = pneg %p208
      %p361 = pneg %p205
      %p362 = pneg %p229
      %p363 = pneg %p226
      %p364 = pneg %p255
      %p365 = pneg %p252
      %p366 = scmp.lt.s32.totalorder %s20, 1
      %s367 = scalar_select %p366, %s20, 1
      %s368 = smul.addr %s367, 4
      %s369 = scalar_lea.vmem %s9, %s368
      %p370 = scmp.lt.s32.totalorder %s20, 1
      %s371 = scalar_select %p370, %s20, 1
      %s372 = smul.addr %s371, 4
      %s373 = scalar_lea.vmem %s0, %s372
      %p374 = scmp.lt.s32.totalorder %s20, 1
      %s375 = scalar_select %p374, %s20, 1
      %s376 = smul.addr %s375, 4
      %s377 = scalar_lea.vmem %s1, %s376
      %p378 = scmp.lt.s32.totalorder %s20, 1
      %s379 = scalar_select %p378, %s20, 1
      %s380 = smul.addr %s379, 8
      %s381 = scalar_lea.vmem %s2, %s380
      %p382 = scmp.lt.s32.totalorder %s20, 1
      %s383 = scalar_select %p382, %s20, 1
      %s384 = scalar_lea.vmem %s3, %s383
      %p385 = scmp.lt.s32.totalorder %s20, 1
      %s386 = scalar_select %p385, %s20, 1
      %s387 = smul.addr %s386, 4
      %s388 = scalar_lea.vmem %s4, %s387
      %p389 = scmp.lt.s32.totalorder %s20, 1
      %s390 = scalar_select %p389, %s20, 1
      %s391 = smul.addr %s390, 4
      %s392 = scalar_lea.vmem %s9, %s391
      %v394 = vld [vmem:[%s373] sm:$0xf]
      %v395 = vld [vmem:[%s377] sm:$0xf]
      %v396 = vld [vmem:[%s381] sm:$0xff]
      %v397 = vld [vmem:[%s384] sm:$0x1]
      %399 = vset.pattern.permute.xlu0 0
      %400 = vperm.xlu0 %399, %v396
      %v401 = vpop.permute.xlu0 %400
      %v404 = vlaneseq
      %v405 = vshrl.u32 %v404, 7
      %v406 = vsub.s32 0, %v405
      %v407 = vrot.slane %v397, %v406
      %v409 = vmul.f32 %v401, %v407
      %vm410 = vcmp.gt.f32.partialorder %v409, 0.0
      %v411 = vlaneseq
      %v412 = vshrl.u32 %v411, 7
      %v413 = vlaneseq
      %v414 = vand.u32 %v413, 127
      %vm415 = vcmp.ge.s32.totalorder %v412, %v414
      %vm416 = vmand %vm410, %vm415
      %v417 = vld [vmem:[%s5] sm:$0xf]
      %v418 = vld [vmem:[%s5 + $0x4] sm:$0xf]
      %v419 = vld [vmem:[%s5 + $0x8] sm:$0xf]
      %v420 = vld [vmem:[%s5 + $0xc] sm:$0xf]
      %vm421 = vcmask 64512
      %v423 = vsel %vm421, %v394, 0
      %v426 = vsel %vm421, %v395, 0
      %428 = vmatprep.subr.bf16.mxu0 0
      %429 = vmatpush1.bf16.xpose.msra.mxu0 %v426
      %430 = vmatprep.subr.bf16.mxu0 0
      %431 = vmatpush1.bf16.xpose.msra.mxu0 0
      %432 = vmatprep.subr.bf16.mxu0 0
      %433 = vmatpush1.bf16.xpose.msra.mxu0 0
      %434 = vmatprep.subr.bf16.mxu0 0
      %435 = vmatpush1.bf16.xpose.msra.mxu0 0
      %436 = vmatprep.subr.bf16.mxu0 0
      %437 = vmatpush1.bf16.xpose.msra.mxu0 0
      %438 = vmatprep.subr.bf16.mxu0 0
      %439 = vmatpush1.bf16.xpose.msra.mxu0 0
      %440 = vmatprep.subr.bf16.mxu0 0
      %441 = vmatpush1.bf16.xpose.msra.mxu0 0
      %442 = vmatprep.subr.bf16.mxu0 0
      %443 = vmatpush1.bf16.xpose.msra.mxu0 0
      %444 = vmatprep.subr.bf16.mxu0 0
      %445 = vmatpush1.bf16.xpose.msra.mxu0 0
      %446 = vmatprep.subr.bf16.mxu0 0
      %447 = vmatpush1.bf16.xpose.msra.mxu0 0
      %448 = vmatprep.subr.bf16.mxu0 0
      %449 = vmatpush1.bf16.xpose.msra.mxu0 0
      %450 = vmatprep.subr.bf16.mxu0 0
      %451 = vmatpush1.bf16.xpose.msra.mxu0 0
      %452 = vmatprep.subr.bf16.mxu0 0
      %453 = vmatpush1.bf16.xpose.msra.mxu0 0
      %454 = vmatprep.subr.bf16.mxu0 0
      %455 = vmatpush1.bf16.xpose.msra.mxu0 0
      %456 = vmatprep.subr.bf16.mxu0 0
      %457 = vmatpush1.bf16.xpose.msra.mxu0 0
      %458 = vmatprep.subr.bf16.mxu0 0
      %459 = vmatpush1.bf16.xpose.msra.mxu0 0
      %460 = vmatprep.mubr.bf16.mxu0 0
      %461 = vmatmul.mubr.bf16.gmra.mrb[0].mxu0 %v423
      %v462 = vpop.f32.mrb[0].mxu0
      %v463 = vadd.f32 0.0, %v462
      %v464 = vpop.f32.mrb[0].mxu0
      %v465 = vpop.f32.mrb[0].mxu0
      %v466 = vpop.f32.mrb[0].mxu0
      %467 = vdwg.mxu0
      %v468 = vmul.f32 %v463, 0.35355338
      %v469 = vsel %vm416, %v468, -10000.0
      %v470 = vsel %vm421, %v469, -inf
      %471 = vmax.xlane.f32.xlu0 %v470
      %v472 = vpop.xlane.xlu0 %471
      %v473 = vsub.f32 %v469, %v472
      %v474 = vmul.f32 %v473, 1.442695
      %v475 = vpow.pop %v474
      %v476 = vsel %vm421, %v475, 0.0
      %477 = vadd.xlane.f32.xlu0 %v476
      %v478 = vpop.xlane.xlu0 %477
      %v479 = vrcp.pop %v478
      %v480 = vmul.f32 %v475, %v479
      %v481 = vpack.c.bf16 %v480, %v480
      %v483 = vunpack.c.l.b16 %v395
      %v484 = vpack.c.b16 %v483, %v483
      %485 = vrot.lane.b32.xlu0 %v484, 96
      %v486 = vpop.permute.xlu0 %485
      %v488 = vsel %vm421, %v481, 0
      %vm490 = vcmask 1043456
      %v492 = vsel %vm490, %v486, 0
      %494 = vmatprep.subr.bf16.mxu0 0
      %495 = vmatpush1.bf16.msra.mxu0 %v492
      %496 = vmatprep.subr.bf16.mxu0 0
      %497 = vmatpush1.bf16.msra.mxu0 0
      %498 = vmatprep.subr.bf16.mxu0 0
      %499 = vmatpush1.bf16.msra.mxu0 0
      %500 = vmatprep.subr.bf16.mxu0 0
      %501 = vmatpush1.bf16.msra.mxu0 0
      %502 = vmatprep.subr.bf16.mxu0 0
      %503 = vmatpush1.bf16.msra.mxu0 0
      %504 = vmatprep.subr.bf16.mxu0 0
      %505 = vmatpush1.bf16.msra.mxu0 0
      %506 = vmatprep.subr.bf16.mxu0 0
      %507 = vmatpush1.bf16.msra.mxu0 0
      %508 = vmatprep.subr.bf16.mxu0 0
      %509 = vmatpush1.bf16.msra.mxu0 0
      %510 = vmatprep.subr.bf16.mxu0 0
      %511 = vmatpush1.bf16.msra.mxu0 0
      %512 = vmatprep.subr.bf16.mxu0 0
      %513 = vmatpush1.bf16.msra.mxu0 0
      %514 = vmatprep.subr.bf16.mxu0 0
      %515 = vmatpush1.bf16.msra.mxu0 0
      %516 = vmatprep.subr.bf16.mxu0 0
      %517 = vmatpush1.bf16.msra.mxu0 0
      %518 = vmatprep.subr.bf16.mxu0 0
      %519 = vmatpush1.bf16.msra.mxu0 0
      %520 = vmatprep.subr.bf16.mxu0 0
      %521 = vmatpush1.bf16.msra.mxu0 0
      %522 = vmatprep.subr.bf16.mxu0 0
      %523 = vmatpush1.bf16.msra.mxu0 0
      %524 = vmatprep.subr.bf16.mxu0 0
      %525 = vmatpush1.bf16.msra.mxu0 0
      %526 = vmatprep.mubr.bf16.mxu0 0
      %527 = vmatmul.mubr.bf16.gmra.mrb[0].mxu0 %v488
      %v528 = vpop.f32.mrb[0].mxu0
      %v529 = vadd.f32 0.0, %v528
      %v530 = vpop.f32.mrb[0].mxu0
      %v531 = vpop.f32.mrb[0].mxu0
      %v532 = vpop.f32.mrb[0].mxu0
      %533 = vdwg.mxu0
      %v534 = vpack.c.bf16 %v529, %v529
      %v536 = vunpack.c.l.b16 %v394
      %v537 = vpack.c.b16 %v536, %v536
      %538 = vrot.lane.b32.xlu0 %v537, 120
      %v539 = vpop.permute.xlu0 %538
      %540 = vrot.lane.b32.xlu0 %v484, 120
      %v541 = vpop.permute.xlu0 %540
      %v543 = vsel %vm421, %v539, 0
      %v546 = vsel %vm421, %v541, 0
      %548 = vmatprep.subr.bf16.mxu0 0
      %549 = vmatpush1.bf16.xpose.msra.mxu0 %v546
      %550 = vmatprep.subr.bf16.mxu0 0
      %551 = vmatpush1.bf16.xpose.msra.mxu0 0
      %552 = vmatprep.subr.bf16.mxu0 0
      %553 = vmatpush1.bf16.xpose.msra.mxu0 0
      %554 = vmatprep.subr.bf16.mxu0 0
      %555 = vmatpush1.bf16.xpose.msra.mxu0 0
      %556 = vmatprep.subr.bf16.mxu0 0
      %557 = vmatpush1.bf16.xpose.msra.mxu0 0
      %558 = vmatprep.subr.bf16.mxu0 0
      %559 = vmatpush1.bf16.xpose.msra.mxu0 0
      %560 = vmatprep.subr.bf16.mxu0 0
      %561 = vmatpush1.bf16.xpose.msra.mxu0 0
      %562 = vmatprep.subr.bf16.mxu0 0
      %563 = vmatpush1.bf16.xpose.msra.mxu0 0
      %564 = vmatprep.subr.bf16.mxu0 0
      %565 = vmatpush1.bf16.xpose.msra.mxu0 0
      %566 = vmatprep.subr.bf16.mxu0 0
      %567 = vmatpush1.bf16.xpose.msra.mxu0 0
      %568 = vmatprep.subr.bf16.mxu0 0
      %569 = vmatpush1.bf16.xpose.msra.mxu0 0
      %570 = vmatprep.subr.bf16.mxu0 0
      %571 = vmatpush1.bf16.xpose.msra.mxu0 0
      %572 = vmatprep.subr.bf16.mxu0 0
      %573 = vmatpush1.bf16.xpose.msra.mxu0 0
      %574 = vmatprep.subr.bf16.mxu0 0
      %575 = vmatpush1.bf16.xpose.msra.mxu0 0
      %576 = vmatprep.subr.bf16.mxu0 0
      %577 = vmatpush1.bf16.xpose.msra.mxu0 0
      %578 = vmatprep.subr.bf16.mxu0 0
      %579 = vmatpush1.bf16.xpose.msra.mxu0 0
      %580 = vmatprep.mubr.bf16.mxu0 0
      %581 = vmatmul.mubr.bf16.gmra.mrb[0].mxu0 %v543
      %v582 = vpop.f32.mrb[0].mxu0
      %v583 = vadd.f32 0.0, %v582
      %v584 = vpop.f32.mrb[0].mxu0
      %v585 = vpop.f32.mrb[0].mxu0
      %v586 = vpop.f32.mrb[0].mxu0
      %587 = vdwg.mxu0
      %v588 = vmul.f32 %v583, 0.35355338
      %v589 = vsel %vm416, %v588, -10000.0
      %v590 = vsel %vm421, %v589, -inf
      %591 = vmax.xlane.f32.xlu0 %v590
      %v592 = vpop.xlane.xlu0 %591
      %v593 = vsub.f32 %v589, %v592
      %v594 = vmul.f32 %v593, 1.442695
      %v595 = vpow.pop %v594
      %v596 = vsel %vm421, %v595, 0.0
      %597 = vadd.xlane.f32.xlu0 %v596
      %v598 = vpop.xlane.xlu0 %597
      %v599 = vrcp.pop %v598
      %v600 = vmul.f32 %v595, %v599
      %v601 = vpack.c.bf16 %v600, %v600
      %602 = vrot.lane.b32.xlu0 %v484, 88
      %v603 = vpop.permute.xlu0 %602
      %v605 = vsel %vm421, %v601, 0
      %v608 = vsel %vm490, %v603, 0
      %610 = vmatprep.subr.bf16.mxu0 0
      %611 = vmatpush1.bf16.msra.mxu0 %v608
      %612 = vmatprep.subr.bf16.mxu0 0
      %613 = vmatpush1.bf16.msra.mxu0 0
      %614 = vmatprep.subr.bf16.mxu0 0
      %615 = vmatpush1.bf16.msra.mxu0 0
      %616 = vmatprep.subr.bf16.mxu0 0
      %617 = vmatpush1.bf16.msra.mxu0 0
      %618 = vmatprep.subr.bf16.mxu0 0
      %619 = vmatpush1.bf16.msra.mxu0 0
      %620 = vmatprep.subr.bf16.mxu0 0
      %621 = vmatpush1.bf16.msra.mxu0 0
      %622 = vmatprep.subr.bf16.mxu0 0
      %623 = vmatpush1.bf16.msra.mxu0 0
      %624 = vmatprep.subr.bf16.mxu0 0
      %625 = vmatpush1.bf16.msra.mxu0 0
      %626 = vmatprep.subr.bf16.mxu0 0
      %627 = vmatpush1.bf16.msra.mxu0 0
      %628 = vmatprep.subr.bf16.mxu0 0
      %629 = vmatpush1.bf16.msra.mxu0 0
      %630 = vmatprep.subr.bf16.mxu0 0
      %631 = vmatpush1.bf16.msra.mxu0 0
      %632 = vmatprep.subr.bf16.mxu0 0
      %633 = vmatpush1.bf16.msra.mxu0 0
      %634 = vmatprep.subr.bf16.mxu0 0
      %635 = vmatpush1.bf16.msra.mxu0 0
      %636 = vmatprep.subr.bf16.mxu0 0
      %637 = vmatpush1.bf16.msra.mxu0 0
      %638 = vmatprep.subr.bf16.mxu0 0
      %639 = vmatpush1.bf16.msra.mxu0 0
      %640 = vmatprep.subr.bf16.mxu0 0
      %641 = vmatpush1.bf16.msra.mxu0 0
      %642 = vmatprep.mubr.bf16.mxu0 0
      %643 = vmatmul.mubr.bf16.gmra.mrb[0].mxu0 %v605
      %v644 = vpop.f32.mrb[0].mxu0
      %v645 = vadd.f32 0.0, %v644
      %v646 = vpop.f32.mrb[0].mxu0
      %v647 = vpop.f32.mrb[0].mxu0
      %v648 = vpop.f32.mrb[0].mxu0
      %649 = vdwg.mxu0
      %v650 = vpack.c.bf16 %v645, %v645
      %v652 = vsel %vm421, %v650, 0
      %v655 = vsel %vm490, %v418, 0
      %657 = vmatprep.subr.bf16.mxu0 0
      %658 = vmatpush1.bf16.msra.mxu0 %v655
      %659 = vmatprep.subr.bf16.mxu0 0
      %660 = vmatpush1.bf16.msra.mxu0 0
      %661 = vmatprep.subr.bf16.mxu0 0
      %662 = vmatpush1.bf16.msra.mxu0 0
      %663 = vmatprep.subr.bf16.mxu0 0
      %664 = vmatpush1.bf16.msra.mxu0 0
      %665 = vmatprep.subr.bf16.mxu0 0
      %666 = vmatpush1.bf16.msra.mxu0 0
      %667 = vmatprep.subr.bf16.mxu0 0
      %668 = vmatpush1.bf16.msra.mxu0 0
      %669 = vmatprep.subr.bf16.mxu0 0
      %670 = vmatpush1.bf16.msra.mxu0 0
      %671 = vmatprep.subr.bf16.mxu0 0
      %672 = vmatpush1.bf16.msra.mxu0 0
      %673 = vmatprep.subr.bf16.mxu0 0
      %674 = vmatpush1.bf16.msra.mxu0 0
      %675 = vmatprep.subr.bf16.mxu0 0
      %676 = vmatpush1.bf16.msra.mxu0 0
      %677 = vmatprep.subr.bf16.mxu0 0
      %678 = vmatpush1.bf16.msra.mxu0 0
      %679 = vmatprep.subr.bf16.mxu0 0
      %680 = vmatpush1.bf16.msra.mxu0 0
      %681 = vmatprep.subr.bf16.mxu0 0
      %682 = vmatpush1.bf16.msra.mxu0 0
      %683 = vmatprep.subr.bf16.mxu0 0
      %684 = vmatpush1.bf16.msra.mxu0 0
      %685 = vmatprep.subr.bf16.mxu0 0
      %686 = vmatpush1.bf16.msra.mxu0 0
      %687 = vmatprep.subr.bf16.mxu0 0
      %688 = vmatpush1.bf16.msra.mxu0 0
      %689 = vmatprep.mubr.bf16.mxu0 0
      %690 = vmatmul.mubr.bf16.gmra.mrb[0].mxu0 %v652
      %v691 = vpop.f32.mrb[0].mxu0
      %v692 = vadd.f32 0.0, %v691
      %v693 = vpop.f32.mrb[0].mxu0
      %v694 = vpop.f32.mrb[0].mxu0
      %v695 = vpop.f32.mrb[0].mxu0
      %696 = vdwg.mxu0
      %v698 = vsel %vm421, %v534, 0
      %v701 = vsel %vm490, %v417, 0
      %703 = vmatprep.subr.bf16.mxu0 0
      %704 = vmatpush1.bf16.msra.mxu0 %v701
      %705 = vmatprep.subr.bf16.mxu0 0
      %706 = vmatpush1.bf16.msra.mxu0 0
      %707 = vmatprep.subr.bf16.mxu0 0
      %708 = vmatpush1.bf16.msra.mxu0 0
      %709 = vmatprep.subr.bf16.mxu0 0
      %710 = vmatpush1.bf16.msra.mxu0 0
      %711 = vmatprep.subr.bf16.mxu0 0
      %712 = vmatpush1.bf16.msra.mxu0 0
      %713 = vmatprep.subr.bf16.mxu0 0
      %714 = vmatpush1.bf16.msra.mxu0 0
      %715 = vmatprep.subr.bf16.mxu0 0
      %716 = vmatpush1.bf16.msra.mxu0 0
      %717 = vmatprep.subr.bf16.mxu0 0
      %718 = vmatpush1.bf16.msra.mxu0 0
      %719 = vmatprep.subr.bf16.mxu0 0
      %720 = vmatpush1.bf16.msra.mxu0 0
      %721 = vmatprep.subr.bf16.mxu0 0
      %722 = vmatpush1.bf16.msra.mxu0 0
      %723 = vmatprep.subr.bf16.mxu0 0
      %724 = vmatpush1.bf16.msra.mxu0 0
      %725 = vmatprep.subr.bf16.mxu0 0
      %726 = vmatpush1.bf16.msra.mxu0 0
      %727 = vmatprep.subr.bf16.mxu0 0
      %728 = vmatpush1.bf16.msra.mxu0 0
      %729 = vmatprep.subr.bf16.mxu0 0
      %730 = vmatpush1.bf16.msra.mxu0 0
      %731 = vmatprep.subr.bf16.mxu0 0
      %732 = vmatpush1.bf16.msra.mxu0 0
      %733 = vmatprep.subr.bf16.mxu0 0
      %734 = vmatpush1.bf16.msra.mxu0 0
      %735 = vmatprep.mubr.bf16.mxu0 0
      %736 = vmatmul.mubr.bf16.gmra.mrb[0].mxu0 %v698
      %v737 = vpop.f32.mrb[0].mxu0
      %v738 = vadd.f32 %v692, %v737
      %v739 = vpop.f32.mrb[0].mxu0
      %v740 = vpop.f32.mrb[0].mxu0
      %v741 = vpop.f32.mrb[0].mxu0
      %742 = vdwg.mxu0
      %743 = vrot.lane.b32.xlu0 %v537, 112
      %v744 = vpop.permute.xlu0 %743
      %745 = vrot.lane.b32.xlu0 %v484, 112
      %v746 = vpop.permute.xlu0 %745
      %v748 = vsel %vm421, %v744, 0
      %v751 = vsel %vm421, %v746, 0
      %753 = vmatprep.subr.bf16.mxu0 0
      %754 = vmatpush1.bf16.xpose.msra.mxu0 %v751
      %755 = vmatprep.subr.bf16.mxu0 0
      %756 = vmatpush1.bf16.xpose.msra.mxu0 0
      %757 = vmatprep.subr.bf16.mxu0 0
      %758 = vmatpush1.bf16.xpose.msra.mxu0 0
      %759 = vmatprep.subr.bf16.mxu0 0
      %760 = vmatpush1.bf16.xpose.msra.mxu0 0
      %761 = vmatprep.subr.bf16.mxu0 0
      %762 = vmatpush1.bf16.xpose.msra.mxu0 0
      %763 = vmatprep.subr.bf16.mxu0 0
      %764 = vmatpush1.bf16.xpose.msra.mxu0 0
      %765 = vmatprep.subr.bf16.mxu0 0
      %766 = vmatpush1.bf16.xpose.msra.mxu0 0
      %767 = vmatprep.subr.bf16.mxu0 0
      %768 = vmatpush1.bf16.xpose.msra.mxu0 0
      %769 = vmatprep.subr.bf16.mxu0 0
      %770 = vmatpush1.bf16.xpose.msra.mxu0 0
      %771 = vmatprep.subr.bf16.mxu0 0
      %772 = vmatpush1.bf16.xpose.msra.mxu0 0
      %773 = vmatprep.subr.bf16.mxu0 0
      %774 = vmatpush1.bf16.xpose.msra.mxu0 0
      %775 = vmatprep.subr.bf16.mxu0 0
      %776 = vmatpush1.bf16.xpose.msra.mxu0 0
      %777 = vmatprep.subr.bf16.mxu0 0
      %778 = vmatpush1.bf16.xpose.msra.mxu0 0
      %779 = vmatprep.subr.bf16.mxu0 0
      %780 = vmatpush1.bf16.xpose.msra.mxu0 0
      %781 = vmatprep.subr.bf16.mxu0 0
      %782 = vmatpush1.bf16.xpose.msra.mxu0 0
      %783 = vmatprep.subr.bf16.mxu0 0
      %784 = vmatpush1.bf16.xpose.msra.mxu0 0
      %785 = vmatprep.mubr.bf16.mxu0 0
      %786 = vmatmul.mubr.bf16.gmra.mrb[0].mxu0 %v748
      %v787 = vpop.f32.mrb[0].mxu0
      %v788 = vadd.f32 0.0, %v787
      %v789 = vpop.f32.mrb[0].mxu0
      %v790 = vpop.f32.mrb[0].mxu0
      %v791 = vpop.f32.mrb[0].mxu0
      %792 = vdwg.mxu0
      %v793 = vmul.f32 %v788, 0.35355338
      %v794 = vsel %vm416, %v793, -10000.0
      %v795 = vsel %vm421, %v794, -inf
      %796 = vmax.xlane.f32.xlu0 %v795
      %v797 = vpop.xlane.xlu0 %796
      %v798 = vsub.f32 %v794, %v797
      %v799 = vmul.f32 %v798, 1.442695
      %v800 = vpow.pop %v799
      %v801 = vsel %vm421, %v800, 0.0
      %802 = vadd.xlane.f32.xlu0 %v801
      %v803 = vpop.xlane.xlu0 %802
      %v804 = vrcp.pop %v803
      %v805 = vmul.f32 %v800, %v804
      %v806 = vpack.c.bf16 %v805, %v805
      %807 = vrot.lane.b32.xlu0 %v484, 80
      %v808 = vpop.permute.xlu0 %807
      %v810 = vsel %vm421, %v806, 0
      %v813 = vsel %vm490, %v808, 0
      %815 = vmatprep.subr.bf16.mxu0 0
      %816 = vmatpush1.bf16.msra.mxu0 %v813
      %817 = vmatprep.subr.bf16.mxu0 0
      %818 = vmatpush1.bf16.msra.mxu0 0
      %819 = vmatprep.subr.bf16.mxu0 0
      %820 = vmatpush1.bf16.msra.mxu0 0
      %821 = vmatprep.subr.bf16.mxu0 0
      %822 = vmatpush1.bf16.msra.mxu0 0
      %823 = vmatprep.subr.bf16.mxu0 0
      %824 = vmatpush1.bf16.msra.mxu0 0
      %825 = vmatprep.subr.bf16.mxu0 0
      %826 = vmatpush1.bf16.msra.mxu0 0
      %827 = vmatprep.subr.bf16.mxu0 0
      %828 = vmatpush1.bf16.msra.mxu0 0
      %829 = vmatprep.subr.bf16.mxu0 0
      %830 = vmatpush1.bf16.msra.mxu0 0
      %831 = vmatprep.subr.bf16.mxu0 0
      %832 = vmatpush1.bf16.msra.mxu0 0
      %833 = vmatprep.subr.bf16.mxu0 0
      %834 = vmatpush1.bf16.msra.mxu0 0
      %835 = vmatprep.subr.bf16.mxu0 0
      %836 = vmatpush1.bf16.msra.mxu0 0
      %837 = vmatprep.subr.bf16.mxu0 0
      %838 = vmatpush1.bf16.msra.mxu0 0
      %839 = vmatprep.subr.bf16.mxu0 0
      %840 = vmatpush1.bf16.msra.mxu0 0
      %841 = vmatprep.subr.bf16.mxu0 0
      %842 = vmatpush1.bf16.msra.mxu0 0
      %843 = vmatprep.subr.bf16.mxu0 0
      %844 = vmatpush1.bf16.msra.mxu0 0
      %845 = vmatprep.subr.bf16.mxu0 0
      %846 = vmatpush1.bf16.msra.mxu0 0
      %847 = vmatprep.mubr.bf16.mxu0 0
      %848 = vmatmul.mubr.bf16.gmra.mrb[0].mxu0 %v810
      %v849 = vpop.f32.mrb[0].mxu0
      %v850 = vadd.f32 0.0, %v849
      %v851 = vpop.f32.mrb[0].mxu0
      %v852 = vpop.f32.mrb[0].mxu0
      %v853 = vpop.f32.mrb[0].mxu0
      %854 = vdwg.mxu0
      %v855 = vpack.c.bf16 %v850, %v850
      %v857 = vsel %vm421, %v855, 0
      %v860 = vsel %vm490, %v419, 0
      %862 = vmatprep.subr.bf16.mxu0 0
      %863 = vmatpush1.bf16.msra.mxu0 %v860
      %864 = vmatprep.subr.bf16.mxu0 0
      %865 = vmatpush1.bf16.msra.mxu0 0
      %866 = vmatprep.subr.bf16.mxu0 0
      %867 = vmatpush1.bf16.msra.mxu0 0
      %868 = vmatprep.subr.bf16.mxu0 0
      %869 = vmatpush1.bf16.msra.mxu0 0
      %870 = vmatprep.subr.bf16.mxu0 0
      %871 = vmatpush1.bf16.msra.mxu0 0
      %872 = vmatprep.subr.bf16.mxu0 0
      %873 = vmatpush1.bf16.msra.mxu0 0
      %874 = vmatprep.subr.bf16.mxu0 0
      %875 = vmatpush1.bf16.msra.mxu0 0
      %876 = vmatprep.subr.bf16.mxu0 0
      %877 = vmatpush1.bf16.msra.mxu0 0
      %878 = vmatprep.subr.bf16.mxu0 0
      %879 = vmatpush1.bf16.msra.mxu0 0
      %880 = vmatprep.subr.bf16.mxu0 0
      %881 = vmatpush1.bf16.msra.mxu0 0
      %882 = vmatprep.subr.bf16.mxu0 0
      %883 = vmatpush1.bf16.msra.mxu0 0
      %884 = vmatprep.subr.bf16.mxu0 0
      %885 = vmatpush1.bf16.msra.mxu0 0
      %886 = vmatprep.subr.bf16.mxu0 0
      %887 = vmatpush1.bf16.msra.mxu0 0
      %888 = vmatprep.subr.bf16.mxu0 0
      %889 = vmatpush1.bf16.msra.mxu0 0
      %890 = vmatprep.subr.bf16.mxu0 0
      %891 = vmatpush1.bf16.msra.mxu0 0
      %892 = vmatprep.subr.bf16.mxu0 0
      %893 = vmatpush1.bf16.msra.mxu0 0
      %894 = vmatprep.mubr.bf16.mxu0 0
      %895 = vmatmul.mubr.bf16.gmra.mrb[0].mxu0 %v857
      %v896 = vpop.f32.mrb[0].mxu0
      %v897 = vadd.f32 0.0, %v896
      %v898 = vpop.f32.mrb[0].mxu0
      %v899 = vpop.f32.mrb[0].mxu0
      %v900 = vpop.f32.mrb[0].mxu0
      %901 = vdwg.mxu0
      %v902 = vadd.f32 %v738, %v897
      %903 = vrot.lane.b32.xlu0 %v537, 104
      %v904 = vpop.permute.xlu0 %903
      %905 = vrot.lane.b32.xlu0 %v484, 104
      %v906 = vpop.permute.xlu0 %905
      %v908 = vsel %vm421, %v904, 0
      %v911 = vsel %vm421, %v906, 0
      %913 = vmatprep.subr.bf16.mxu0 0
      %914 = vmatpush1.bf16.xpose.msra.mxu0 %v911
      %915 = vmatprep.subr.bf16.mxu0 0
      %916 = vmatpush1.bf16.xpose.msra.mxu0 0
      %917 = vmatprep.subr.bf16.mxu0 0
      %918 = vmatpush1.bf16.xpose.msra.mxu0 0
      %919 = vmatprep.subr.bf16.mxu0 0
      %920 = vmatpush1.bf16.xpose.msra.mxu0 0
      %921 = vmatprep.subr.bf16.mxu0 0
      %922 = vmatpush1.bf16.xpose.msra.mxu0 0
      %923 = vmatprep.subr.bf16.mxu0 0
      %924 = vmatpush1.bf16.xpose.msra.mxu0 0
      %925 = vmatprep.subr.bf16.mxu0 0
      %926 = vmatpush1.bf16.xpose.msra.mxu0 0
      %927 = vmatprep.subr.bf16.mxu0 0
      %928 = vmatpush1.bf16.xpose.msra.mxu0 0
      %929 = vmatprep.subr.bf16.mxu0 0
      %930 = vmatpush1.bf16.xpose.msra.mxu0 0
      %931 = vmatprep.subr.bf16.mxu0 0
      %932 = vmatpush1.bf16.xpose.msra.mxu0 0
      %933 = vmatprep.subr.bf16.mxu0 0
      %934 = vmatpush1.bf16.xpose.msra.mxu0 0
      %935 = vmatprep.subr.bf16.mxu0 0
      %936 = vmatpush1.bf16.xpose.msra.mxu0 0
      %937 = vmatprep.subr.bf16.mxu0 0
      %938 = vmatpush1.bf16.xpose.msra.mxu0 0
      %939 = vmatprep.subr.bf16.mxu0 0
      %940 = vmatpush1.bf16.xpose.msra.mxu0 0
      %941 = vmatprep.subr.bf16.mxu0 0
      %942 = vmatpush1.bf16.xpose.msra.mxu0 0
      %943 = vmatprep.subr.bf16.mxu0 0
      %944 = vmatpush1.bf16.xpose.msra.mxu0 0
      %945 = vmatprep.mubr.bf16.mxu0 0
      %946 = vmatmul.mubr.bf16.gmra.mrb[0].mxu0 %v908
      %v947 = vpop.f32.mrb[0].mxu0
      %v948 = vadd.f32 0.0, %v947
      %v949 = vpop.f32.mrb[0].mxu0
      %v950 = vpop.f32.mrb[0].mxu0
      %v951 = vpop.f32.mrb[0].mxu0
      %952 = vdwg.mxu0
      %v953 = vmul.f32 %v948, 0.35355338
      %v954 = vsel %vm416, %v953, -10000.0
      %v955 = vsel %vm421, %v954, -inf
      %956 = vmax.xlane.f32.xlu0 %v955
      %v957 = vpop.xlane.xlu0 %956
      %v958 = vsub.f32 %v954, %v957
      %v959 = vmul.f32 %v958, 1.442695
      %v960 = vpow.pop %v959
      %v961 = vsel %vm421, %v960, 0.0
      %962 = vadd.xlane.f32.xlu0 %v961
      %v963 = vpop.xlane.xlu0 %962
      %v964 = vrcp.pop %v963
      %v965 = vmul.f32 %v960, %v964
      %v966 = vpack.c.bf16 %v965, %v965
      %967 = vrot.lane.b32.xlu0 %v484, 72
      %v968 = vpop.permute.xlu0 %967
      %v970 = vsel %vm421, %v966, 0
      %v973 = vsel %vm490, %v968, 0
      %975 = vmatprep.subr.bf16.mxu0 0
      %976 = vmatpush1.bf16.msra.mxu0 %v973
      %977 = vmatprep.subr.bf16.mxu0 0
      %978 = vmatpush1.bf16.msra.mxu0 0
      %979 = vmatprep.subr.bf16.mxu0 0
      %980 = vmatpush1.bf16.msra.mxu0 0
      %981 = vmatprep.subr.bf16.mxu0 0
      %982 = vmatpush1.bf16.msra.mxu0 0
      %983 = vmatprep.subr.bf16.mxu0 0
      %984 = vmatpush1.bf16.msra.mxu0 0
      %985 = vmatprep.subr.bf16.mxu0 0
      %986 = vmatpush1.bf16.msra.mxu0 0
      %987 = vmatprep.subr.bf16.mxu0 0
      %988 = vmatpush1.bf16.msra.mxu0 0
      %989 = vmatprep.subr.bf16.mxu0 0
      %990 = vmatpush1.bf16.msra.mxu0 0
      %991 = vmatprep.subr.bf16.mxu0 0
      %992 = vmatpush1.bf16.msra.mxu0 0
      %993 = vmatprep.subr.bf16.mxu0 0
      %994 = vmatpush1.bf16.msra.mxu0 0
      %995 = vmatprep.subr.bf16.mxu0 0
      %996 = vmatpush1.bf16.msra.mxu0 0
      %997 = vmatprep.subr.bf16.mxu0 0
      %998 = vmatpush1.bf16.msra.mxu0 0
      %999 = vmatprep.subr.bf16.mxu0 0
      %1000 = vmatpush1.bf16.msra.mxu0 0
      %1001 = vmatprep.subr.bf16.mxu0 0
      %1002 = vmatpush1.bf16.msra.mxu0 0
      %1003 = vmatprep.subr.bf16.mxu0 0
      %1004 = vmatpush1.bf16.msra.mxu0 0
      %1005 = vmatprep.subr.bf16.mxu0 0
      %1006 = vmatpush1.bf16.msra.mxu0 0
      %1007 = vmatprep.mubr.bf16.mxu0 0
      %1008 = vmatmul.mubr.bf16.gmra.mrb[0].mxu0 %v970
      %v1009 = vpop.f32.mrb[0].mxu0
      %v1010 = vadd.f32 0.0, %v1009
      %v1011 = vpop.f32.mrb[0].mxu0
      %v1012 = vpop.f32.mrb[0].mxu0
      %v1013 = vpop.f32.mrb[0].mxu0
      %1014 = vdwg.mxu0
      %v1015 = vpack.c.bf16 %v1010, %v1010
      %v1017 = vsel %vm421, %v1015, 0
      %v1020 = vsel %vm490, %v420, 0
      %1022 = vmatprep.subr.bf16.mxu0 0
      %1023 = vmatpush1.bf16.msra.mxu0 %v1020
      %1024 = vmatprep.subr.bf16.mxu0 0
      %1025 = vmatpush1.bf16.msra.mxu0 0
      %1026 = vmatprep.subr.bf16.mxu0 0
      %1027 = vmatpush1.bf16.msra.mxu0 0
      %1028 = vmatprep.subr.bf16.mxu0 0
      %1029 = vmatpush1.bf16.msra.mxu0 0
      %1030 = vmatprep.subr.bf16.mxu0 0
      %1031 = vmatpush1.bf16.msra.mxu0 0
      %1032 = vmatprep.subr.bf16.mxu0 0
      %1033 = vmatpush1.bf16.msra.mxu0 0
      %1034 = vmatprep.subr.bf16.mxu0 0
      %1035 = vmatpush1.bf16.msra.mxu0 0
      %1036 = vmatprep.subr.bf16.mxu0 0
      %1037 = vmatpush1.bf16.msra.mxu0 0
      %1038 = vmatprep.subr.bf16.mxu0 0
      %1039 = vmatpush1.bf16.msra.mxu0 0
      %1040 = vmatprep.subr.bf16.mxu0 0
      %1041 = vmatpush1.bf16.msra.mxu0 0
      %1042 = vmatprep.subr.bf16.mxu0 0
      %1043 = vmatpush1.bf16.msra.mxu0 0
      %1044 = vmatprep.subr.bf16.mxu0 0
      %1045 = vmatpush1.bf16.msra.mxu0 0
      %1046 = vmatprep.subr.bf16.mxu0 0
      %1047 = vmatpush1.bf16.msra.mxu0 0
      %1048 = vmatprep.subr.bf16.mxu0 0
      %1049 = vmatpush1.bf16.msra.mxu0 0
      %1050 = vmatprep.subr.bf16.mxu0 0
      %1051 = vmatpush1.bf16.msra.mxu0 0
      %1052 = vmatprep.subr.bf16.mxu0 0
      %1053 = vmatpush1.bf16.msra.mxu0 0
      %1054 = vmatprep.mubr.bf16.mxu0 0
      %1055 = vmatmul.mubr.bf16.gmra.mrb[0].mxu0 %v1017
      %v1056 = vpop.f32.mrb[0].mxu0
      %v1057 = vadd.f32 0.0, %v1056
      %v1058 = vpop.f32.mrb[0].mxu0
      %v1059 = vpop.f32.mrb[0].mxu0
      %v1060 = vpop.f32.mrb[0].mxu0
      %1061 = vdwg.mxu0
      %v1062 = vadd.f32 %v902, %v1057
      %v1063 = vld [vmem:[%s6] sm:$0x1]
      %v1065 = vlaneseq
      %v1066 = vshrl.u32 %v1065, 7
      %v1067 = vsub.s32 0, %v1066
      %v1068 = vrot.slane %v1063, %v1067
      %v1070 = vadd.f32 %v1062, %v1068
      %v1071 = vld [vmem:[%s388] sm:$0xf]
      %v1072 = vunpack.c.l.bf16 %v1071
      %v1073 = vadd.f32 %v1070, %v1072
      %v1074 = vld [vmem:[%s7] sm:$0x1]
      %v1075 = vld [vmem:[%s8] sm:$0x1]
      %vm1076 = vcmask 261120
      %v1077 = vsel %vm1076, %v1073, 0.0
      %1078 = vadd.xlane.f32.xlu0 %v1077
      %v1079 = vpop.xlane.xlu0 %1078
      %v1080 = vrcp.pop 32.0
      %v1081 = vmul.f32 %v1079, %v1080
      %v1082 = vsub.f32 %v1073, %v1081
      %v1083 = vmul.f32 %v1082, %v1082
      %v1084 = vsel %vm1076, %v1083, 0.0
      %1085 = vadd.xlane.f32.xlu0 %v1084
      %v1086 = vpop.xlane.xlu0 %1085
      %v1087 = vmul.f32 %v1086, %v1080
      %v1088 = vadd.f32 %v1087, 1e-05
      %v1089 = vrsqrt.pop %v1088
      %v1090 = vmul.f32 %v1082, %v1089
      %v1092 = vlaneseq
      %v1093 = vshrl.u32 %v1092, 7
      %v1094 = vsub.s32 0, %v1093
      %v1095 = vrot.slane %v1074, %v1094
      %v1097 = vmul.f32 %v1090, %v1095
      %v1099 = vlaneseq
      %v1100 = vshrl.u32 %v1099, 7
      %v1101 = vsub.s32 0, %v1100
      %v1102 = vrot.slane %v1075, %v1101
      %v1104 = vadd.f32 %v1097, %v1102
      %v1105 = vpack.c.bf16 %v1104, %v1104
      %vm1106 = vcmask 257024
      %1107 = vst.msk [vmem:[%s392] sm:$0xf] %vm1106, %v1105
      %p1108 = scmp.lt.s32.totalorder %s20, 1
      %s1109 = scalar_select %p1108, %s20, 1
      %s1110 = smul.addr %s1109, 4
      %s1111 = scalar_lea.vmem %s9, %s1110
      // Predicated region
      $region57: #{_lambda_.26} parent=55 // pred_check
        %p1112 = pneg %p252
      $region58: #{_lambda_.26} parent=55 // pred_check_branch
        %1114 = sbr.rel (%p1112) target = $region60
      $region59: #{_lambda_.26} parent=55 // pred_region
        _
      $region60: #{_lambda_.26} parent=55 // pred_fallthru
        _
    $region56: #{_lambda_.26} parent=5 // pred_fallthru
      _
    %p1115 = scmp.le.s32.totalorder 2, %s15
    // Predicated region
    $region61: #{_lambda_.26} parent=5 // pred_check
      %p1116 = pneg %p1115
    $region62: #{_lambda_.26} parent=5 // pred_check_branch
      %1118 = sbr.rel (%p1116) target = $region64
    $region63: #{_lambda_.26} parent=5 // pred_region
      %s1119 = ssub.s32 %s15, 2
      // Predicated region
      $region65: #{_lambda_.26} parent=63 // pred_check
        %p1120 = pneg %p258
      $region66: #{_lambda_.26} parent=63 // pred_check_branch
        %1122 = sbr.rel (%p1120) target = $region68
      $region67: #{_lambda_.26} parent=63 // pred_region
        %p1123 = scmp.lt.s32.totalorder %s21, 1
        %s1124 = scalar_select %p1123, %s21, 1
        %s1125 = smul.addr %s1124, 4
        %s1126 = scalar_lea.vmem %s9, %s1125
      $region68: #{_lambda_.26} parent=63 // pred_fallthru
        _
    $region64: #{_lambda_.26} parent=5 // pred_fallthru
      _
  $region6: #{_lambda_.26} parent=0 // loop_footer
    %s19 = sadd.s32 1, %s15
  $region7: #{_lambda_.26} parent=0 // loop_footer_branch
    %14 = sbr.rel target = $region3
  $region8: #{_lambda_.26} parent=0 // loop_exit
    _

</llo_original>
